<compile_context>
chip_gen: v5e
topology: v5e:2x2
jax: 0.10.0
libtpu: 0.0.40
codegen_flags: <defaults>
</compile_context>

<pallas_src>
import functools

import jax
import jax.numpy as jnp
import numpy as np
from jax.experimental import pallas as pl
from jax.experimental.pallas import tpu as pltpu

# "Not-transposed x not-transposed-T" contraction: contract last axis of both operands.
_NT_DIMS = (((1,), (1,)), ((), ()))


def _layernorm(v, g, b, eps=1e-6):
    mu = jnp.mean(v, axis=-1, keepdims=True)
    var = jnp.mean((v - mu) ** 2, axis=-1, keepdims=True)
    return (v - mu) * jax.lax.rsqrt(var + eps) * g + b


def token_refiner_kernel(
    x_ref, mod1_ref, mod2_ref, kbias_ref,
    g1_ref, b1_ref,
    wqkv_ref, bqkv_ref,
    wproj_ref, bproj_ref,
    g2_ref, b2_ref,
    wm1_ref, bm1_ref,
    wm2_ref, bm2_ref,
    o_ref,
    o_all_ref,               # VMEM scratch (L, H) f32: per-head attention outputs
    *, heads, head_dim,
):
    H = heads * head_dim
    bf16 = jnp.bfloat16

    x = x_ref[...]           # (L, H) f32
    kbias = kbias_ref[...]   # (1, L) f32 additive key bias (0 valid / -1e4 masked)
    mod1 = mod1_ref[...]     # (1, H) f32
    mod2 = mod2_ref[...]     # (1, H) f32

    # ---- norm1 (f32) + QKV projection (bf16 MXU, f32 accumulation) ----
    nx = _layernorm(x, g1_ref[...], b1_ref[...])
    qkv = jnp.dot(nx.astype(bf16), wqkv_ref[...],
                  preferred_element_type=jnp.float32) + bqkv_ref[...]      # (L, 3H) f32
    # Single f32->bf16 cast; per-head slices below reuse it.  The 1/sqrt(head_dim)
    # attention scale is already folded into the Q columns of wqkv/bqkv.
    qkv = qkv.astype(bf16)                                                  # (L, 3H) bf16

    # ---- multi-head attention ----
    # Per head: scores via dot_general contracting the last axis of Q and K (no explicit
    # K transpose), finite-bias masking + f32 softmax with the EUP approximate reciprocal,
    # then the head output is written into the (L, H) VMEM scratch.  The output projection
    # is a single full-depth (L,H) @ (H,H) matmul after the loop.
    # NOTE: pl.reciprocal(approx=True) gives ~2^-12 relative error per row (fine at the
    # 3e-2 tolerance); the key bias uses a finite -1e4 so fully-masked rows never hit
    # (-inf) - (-inf) NaNs.
    # TODO(synk): at heads=24 convert this Python loop to a grid axis / fori_loop.
    for h in range(heads):
        lo = h * head_dim
        q_h = qkv[:, lo:lo + head_dim]                                      # (L, d) bf16
        k_h = qkv[:, H + lo:H + lo + head_dim]                              # (L, d) bf16
        v_h = qkv[:, 2 * H + lo:2 * H + lo + head_dim]                      # (L, d) bf16

        s = jax.lax.dot_general(q_h, k_h, _NT_DIMS,
                                preferred_element_type=jnp.float32) + kbias  # (L, L) f32
        s = s - jnp.max(s, axis=-1, keepdims=True)
        p = jnp.exp(s)
        p = p * pl.reciprocal(jnp.sum(p, axis=-1, keepdims=True), approx=True)

        o_all_ref[:, lo:lo + head_dim] = jnp.dot(
            p.astype(bf16), v_h, preferred_element_type=jnp.float32)        # (L, d) f32

    proj = jnp.dot(o_all_ref[...].astype(bf16), wproj_ref[...],
                   preferred_element_type=jnp.float32) + bproj_ref[...]     # (L, H) f32

    # ---- gated residual 1 ----
    x1 = x + proj * mod1

    # ---- norm2 + MLP (Linear -> SiLU -> Linear) + gated residual 2 ----
    nx2 = _layernorm(x1, g2_ref[...], b2_ref[...])
    h1 = jnp.dot(nx2.astype(bf16), wm1_ref[...],
                 preferred_element_type=jnp.float32) + bm1_ref[...]
    h1 = h1 * jax.nn.sigmoid(h1)                                            # SiLU in f32
    mlp = jnp.dot(h1.astype(bf16), wm2_ref[...],
                  preferred_element_type=jnp.float32) + bm2_ref[...]

    o_ref[...] = (x1 + mlp * mod2).astype(o_ref.dtype)


def prepare_params(params, *, heads):
    """One-time weight preprocessing, hoisted out of the per-call path.

    Folds the 1/sqrt(head_dim) attention scale into the Q columns of Wqkv/bqkv and
    casts the large projection weights to bf16 (MXU operands); accumulation stays f32
    inside the kernel.
    """
    H = params["wqkv"].shape[0]
    head_dim = H // heads
    scale = 1.0 / float(head_dim) ** 0.5
    wqkv = params["wqkv"].at[:, :H].multiply(scale)
    bqkv = params["bqkv"].at[:, :H].multiply(scale)
    bf16 = jnp.bfloat16
    return {
        "wmod": params["wmod"], "bmod": params["bmod"],
        "g1": params["g1"], "b1": params["b1"],
        "wqkv": wqkv.astype(bf16), "bqkv": bqkv,
        "wproj": params["wproj"].astype(bf16), "bproj": params["bproj"],
        "g2": params["g2"], "b2": params["b2"],
        "wm1": params["wm1"].astype(bf16), "bm1": params["bm1"],
        "wm2": params["wm2"].astype(bf16), "bm2": params["bm2"],
    }


def token_refiner_block(x, c, key_valid, prepared, *, heads):
    """x: (B, L, H) f32, c: (B, H) f32, key_valid: (B, L) bool per-token key validity."""
    B, L, H = x.shape
    head_dim = H // heads

    # ---- adaLN modulation hoisted out of the kernel (tiny GEMV; frees VMEM) ----
    mod = jax.nn.silu(c) @ prepared["wmod"] + prepared["bmod"][0]           # (B, 2H) f32
    mod1 = mod[:, :H].reshape(B, 1, H)
    mod2 = mod[:, H:].reshape(B, 1, H)

    # ---- O(L) additive key bias instead of the O(L^2) dense mask ----
    kbias = jnp.where(key_valid, 0.0, -1e4).astype(jnp.float32).reshape(B, 1, L)

    weights = [
        prepared["g1"], prepared["b1"],
        prepared["wqkv"], prepared["bqkv"],
        prepared["wproj"], prepared["bproj"],
        prepared["g2"], prepared["b2"],
        prepared["wm1"], prepared["bm1"],
        prepared["wm2"], prepared["bm2"],
    ]

    def batch_spec(d1, d2):
        # Leading batch dim squeezed away: the kernel sees a lane-dense 2D ref.
        return pl.BlockSpec((pl.Squeezed(), d1, d2), lambda b: (b, 0, 0))

    def const_spec(arr):
        # Whole (2D) weight resident; constant block index across the grid.
        # TODO(synk): v7x -- single-buffer these with pipeline_mode=pl.Buffered(1) to
        # avoid pointless double-buffering of constant-index weight blocks.
        return pl.BlockSpec(arr.shape, lambda b: (0, 0))

    kernel = functools.partial(token_refiner_kernel, heads=heads, head_dim=head_dim)

    return pl.pallas_call(
        kernel,
        grid=(B,),
        in_specs=[
            batch_spec(L, H),   # x
            batch_spec(1, H),   # mod1
            batch_spec(1, H),   # mod2
            batch_spec(1, L),   # additive key bias
        ] + [const_spec(w) for w in weights],
        out_specs=batch_spec(L, H),
        out_shape=jax.ShapeDtypeStruct((B, L, H), jnp.float32),
        scratch_shapes=[pltpu.VMEM((L, H), jnp.float32)],
        compiler_params=pltpu.CompilerParams(
            dimension_semantics=("parallel",),
            vmem_limit_bytes=32 * 1024 * 1024,
        ),
    )(x, mod1, mod2, kbias, *weights)


def ref_forward(x, c, key_valid, params, *, heads):
    """Pure-JAX f32 reference mirroring the PyTorch forward (raw, unprocessed params)."""
    B, L, H = x.shape
    hd = H // heads

    def ln(v, g, b):
        mu = v.mean(-1, keepdims=True)
        var = ((v - mu) ** 2).mean(-1, keepdims=True)
        return (v - mu) / jnp.sqrt(var + 1e-6) * g + b

    mod = jax.nn.silu(c) @ params["wmod"] + params["bmod"][0]
    mod1, mod2 = mod[:, :H], mod[:, H:]

    nx = ln(x, params["g1"][0], params["b1"][0])
    qkv = nx @ params["wqkv"] + params["bqkv"][0]                       # (B, L, 3H)
    qkv = qkv.reshape(B, L, 3, heads, hd).transpose(2, 0, 3, 1, 4)      # (3, B, heads, L, hd)
    q, k, v = qkv[0], qkv[1], qkv[2]
    bias = jnp.where(key_valid, 0.0, -1e4)[:, None, None, :]            # (B, 1, 1, L)
    s = jnp.einsum("bhld,bhmd->bhlm", q, k) / jnp.sqrt(hd) + bias
    p = jax.nn.softmax(s, axis=-1)
    attn = jnp.einsum("bhlm,bhmd->bhld", p, v)                          # (B, heads, L, hd)
    attn = attn.transpose(0, 2, 1, 3).reshape(B, L, H)

    x1 = x + (attn @ params["wproj"] + params["bproj"][0]) * mod1[:, None, :]
    nx2 = ln(x1, params["g2"][0], params["b2"][0])
    h1 = jax.nn.silu(nx2 @ params["wm1"] + params["bm1"][0])
    mlp = h1 @ params["wm2"] + params["bm2"][0]
    return x1 + mlp * mod2[:, None, :]


def make_params(key, H):
    mlp_hidden = 4 * H
    ks = jax.random.split(key, 8)
    s = 0.05
    arange = jnp.arange(H, dtype=jnp.float32)[None]
    return {
        # adaLN_modulation: Linear(H, 2H, bias=True)
        "wmod": jax.random.normal(ks[0], (H, 2 * H), jnp.float32) * s,
        "bmod": jax.random.normal(ks[1], (1, 2 * H), jnp.float32) * s,
        # norm1 (elementwise affine)
        "g1": jnp.ones((1, H), jnp.float32) + 0.01 * arange,
        "b1": 0.01 * arange,
        # self_attn.qkv: Linear(H, 3H, bias=True)
        "wqkv": jax.random.normal(ks[2], (H, 3 * H), jnp.float32) * s,
        "bqkv": jax.random.normal(ks[3], (1, 3 * H), jnp.float32) * s,
        # self_attn.proj: Linear(H, H, bias=True)
        "wproj": jax.random.normal(ks[4], (H, H), jnp.float32) * s,
        "bproj": jax.random.normal(ks[5], (1, H), jnp.float32) * s,
        # norm2 (elementwise affine)
        "g2": jnp.ones((1, H), jnp.float32) - 0.005 * arange,
        "b2": -0.01 * arange,
        # mlp: Linear(H, 4H) -> SiLU -> Linear(4H, H)
        "wm1": jax.random.normal(ks[6], (H, mlp_hidden), jnp.float32) * s,
        "bm1": jax.random.normal(ks[7], (1, mlp_hidden), jnp.float32) * s,
        "wm2": jax.random.normal(jax.random.fold_in(key, 99), (mlp_hidden, H), jnp.float32) * s,
        "bm2": jax.random.normal(jax.random.fold_in(key, 100), (1, H), jnp.float32) * s,
    }


if __name__ == "__main__":
    B, L, heads, head_dim = 2, 64, 4, 32
    H = heads * head_dim  # 128

    key = jax.random.PRNGKey(0)
    kx, kc, kp = jax.random.split(key, 3)

    x = jax.random.normal(kx, (B, L, H), jnp.float32) * 0.5
    c = jax.random.normal(kc, (B, H), jnp.float32) * 0.5
    # Per-token key validity (HunyuanVideo-style padding mask): batch 0 fully valid,
    # batch 1 has the last 16 tokens padded out.
    key_valid = jnp.stack([
        jnp.ones((L,), jnp.bool_),
        jnp.arange(L) < (L - 16),
    ])

    params = make_params(kp, H)
    prepared = prepare_params(params, heads=heads)   # one-time weight prep (outside hot path)

    fwd = jax.jit(functools.partial(token_refiner_block, heads=heads))
    out = fwd(x, c, key_valid, prepared)
    out = jax.block_until_ready(out)

    ref = ref_forward(x, c, key_valid, params, heads=heads)
    # bf16 MXU operands with f32 accumulation -> bf16-level tolerance vs. the f32 reference.
    np.testing.assert_allclose(np.asarray(out), np.asarray(ref), rtol=3e-2, atol=3e-2)

    print("KERNEL_OK")
</pallas_src>

<mosaic_0001>
module attributes {stable_mosaic.version = 11 : i64} {
  func.func @token_refiner_kernel(%arg0: i32, %arg1: memref<1x64x128xf32, #tpu.memory_space<vmem>>, %arg2: memref<1x1x128xf32, #tpu.memory_space<vmem>>, %arg3: memref<1x1x128xf32, #tpu.memory_space<vmem>>, %arg4: memref<1x1x64xf32, #tpu.memory_space<vmem>>, %arg5: memref<1x128xf32, #tpu.memory_space<vmem>>, %arg6: memref<1x128xf32, #tpu.memory_space<vmem>>, %arg7: memref<128x384xbf16, #tpu.memory_space<vmem>>, %arg8: memref<1x384xf32, #tpu.memory_space<vmem>>, %arg9: memref<128x128xbf16, #tpu.memory_space<vmem>>, %arg10: memref<1x128xf32, #tpu.memory_space<vmem>>, %arg11: memref<1x128xf32, #tpu.memory_space<vmem>>, %arg12: memref<1x128xf32, #tpu.memory_space<vmem>>, %arg13: memref<128x512xbf16, #tpu.memory_space<vmem>>, %arg14: memref<1x512xf32, #tpu.memory_space<vmem>>, %arg15: memref<512x128xbf16, #tpu.memory_space<vmem>>, %arg16: memref<1x128xf32, #tpu.memory_space<vmem>>, %arg17: memref<1x64x128xf32, #tpu.memory_space<vmem>>, %arg18: memref<64x128xf32, #tpu.memory_space<vmem>>) attributes {dimension_semantics = [#tpu.dimension_semantics<parallel>], iteration_bounds = array<i64: 2>, scalar_prefetch = 0 : i64, scratch_operands = 1 : i64, tpu.core_type = #tpu.core_type<tc>, window_params = [{transform_indices = @transform_0, window_bounds = array<i64: 1, 64, 128>}, {transform_indices = @transform_1, window_bounds = array<i64: 1, 1, 128>}, {transform_indices = @transform_2, window_bounds = array<i64: 1, 1, 128>}, {transform_indices = @transform_3, window_bounds = array<i64: 1, 1, 64>}, {pipeline_mode = #tpu.pipeline_mode<synchronous>, transform_indices = @transform_4, window_bounds = array<i64: 1, 128>}, {pipeline_mode = #tpu.pipeline_mode<synchronous>, transform_indices = @transform_5, window_bounds = array<i64: 1, 128>}, {pipeline_mode = #tpu.pipeline_mode<synchronous>, transform_indices = @transform_6, window_bounds = array<i64: 128, 384>}, {pipeline_mode = #tpu.pipeline_mode<synchronous>, transform_indices = @transform_7, window_bounds = array<i64: 1, 384>}, {pipeline_mode = #tpu.pipeline_mode<synchronous>, transform_indices = @transform_8, window_bounds = array<i64: 128, 128>}, {pipeline_mode = #tpu.pipeline_mode<synchronous>, transform_indices = @transform_9, window_bounds = array<i64: 1, 128>}, {pipeline_mode = #tpu.pipeline_mode<synchronous>, transform_indices = @transform_10, window_bounds = array<i64: 1, 128>}, {pipeline_mode = #tpu.pipeline_mode<synchronous>, transform_indices = @transform_11, window_bounds = array<i64: 1, 128>}, {pipeline_mode = #tpu.pipeline_mode<synchronous>, transform_indices = @transform_12, window_bounds = array<i64: 128, 512>}, {pipeline_mode = #tpu.pipeline_mode<synchronous>, transform_indices = @transform_13, window_bounds = array<i64: 1, 512>}, {pipeline_mode = #tpu.pipeline_mode<synchronous>, transform_indices = @transform_14, window_bounds = array<i64: 512, 128>}, {pipeline_mode = #tpu.pipeline_mode<synchronous>, transform_indices = @transform_15, window_bounds = array<i64: 1, 128>}, {transform_indices = @transform_16, window_bounds = array<i64: 1, 64, 128>}]} {
    %c0 = arith.constant 0 : index
    %c0_0 = arith.constant 0 : index
    %c0_1 = arith.constant 0 : index
    %0 = vector.load %arg1[%c0, %c0_0, %c0_1] : memref<1x64x128xf32, #tpu.memory_space<vmem>>, vector<1x64x128xf32>
    %1 = vector.shape_cast %0 : vector<1x64x128xf32> to vector<64x128xf32>
    %c0_2 = arith.constant 0 : index
    %c0_3 = arith.constant 0 : index
    %c0_4 = arith.constant 0 : index
    %2 = vector.load %arg4[%c0_2, %c0_3, %c0_4] : memref<1x1x64xf32, #tpu.memory_space<vmem>>, vector<1x1x64xf32>
    %3 = vector.shape_cast %2 : vector<1x1x64xf32> to vector<1x64xf32>
    %c0_5 = arith.constant 0 : index
    %c0_6 = arith.constant 0 : index
    %c0_7 = arith.constant 0 : index
    %4 = vector.load %arg2[%c0_5, %c0_6, %c0_7] : memref<1x1x128xf32, #tpu.memory_space<vmem>>, vector<1x1x128xf32>
    %5 = vector.shape_cast %4 : vector<1x1x128xf32> to vector<1x128xf32>
    %c0_8 = arith.constant 0 : index
    %c0_9 = arith.constant 0 : index
    %c0_10 = arith.constant 0 : index
    %6 = vector.load %arg3[%c0_8, %c0_9, %c0_10] : memref<1x1x128xf32, #tpu.memory_space<vmem>>, vector<1x1x128xf32>
    %7 = vector.shape_cast %6 : vector<1x1x128xf32> to vector<1x128xf32>
    %c0_11 = arith.constant 0 : index
    %c0_12 = arith.constant 0 : index
    %8 = vector.load %arg5[%c0_11, %c0_12] : memref<1x128xf32, #tpu.memory_space<vmem>>, vector<1x128xf32>
    %c0_13 = arith.constant 0 : index
    %c0_14 = arith.constant 0 : index
    %9 = vector.load %arg6[%c0_13, %c0_14] : memref<1x128xf32, #tpu.memory_space<vmem>>, vector<1x128xf32>
    %cst = arith.constant dense<0.000000e+00> : vector<64xf32>
    %10 = vector.multi_reduction <add>, %1, %cst [1] : vector<64x128xf32> to vector<64xf32>
    %11 = vector.shape_cast %10 : vector<64xf32> to vector<64x1xf32>
    %cst_15 = arith.constant 1.280000e+02 : f32
    %12 = vector.broadcast %cst_15 : f32 to vector<64x1xf32>
    %13 = arith.divf %11, %12 : vector<64x1xf32>
    %14 = vector.broadcast %13 : vector<64x1xf32> to vector<64x128xf32>
    %15 = arith.subf %1, %14 : vector<64x128xf32>
    %16 = arith.mulf %15, %15 : vector<64x128xf32>
    %cst_16 = arith.constant dense<0.000000e+00> : vector<64xf32>
    %17 = vector.multi_reduction <add>, %16, %cst_16 [1] : vector<64x128xf32> to vector<64xf32>
    %18 = vector.shape_cast %17 : vector<64xf32> to vector<64x1xf32>
    %cst_17 = arith.constant 1.280000e+02 : f32
    %19 = vector.broadcast %cst_17 : f32 to vector<64x1xf32>
    %20 = arith.divf %18, %19 : vector<64x1xf32>
    %21 = vector.broadcast %13 : vector<64x1xf32> to vector<64x128xf32>
    %22 = arith.subf %1, %21 : vector<64x128xf32>
    %cst_18 = arith.constant 9.99999997E-7 : f32
    %23 = vector.broadcast %cst_18 : f32 to vector<64x1xf32>
    %24 = arith.addf %20, %23 : vector<64x1xf32>
    %25 = math.rsqrt %24 : vector<64x1xf32>
    %26 = vector.broadcast %25 : vector<64x1xf32> to vector<64x128xf32>
    %27 = arith.mulf %22, %26 : vector<64x128xf32>
    %28 = vector.broadcast %8 : vector<1x128xf32> to vector<64x128xf32>
    %29 = arith.mulf %27, %28 : vector<64x128xf32>
    %30 = vector.broadcast %9 : vector<1x128xf32> to vector<64x128xf32>
    %31 = arith.addf %29, %30 : vector<64x128xf32>
    %32 = arith.truncf %31 : vector<64x128xf32> to vector<64x128xbf16>
    %c0_19 = arith.constant 0 : index
    %c0_20 = arith.constant 0 : index
    %33 = vector.load %arg7[%c0_19, %c0_20] : memref<128x384xbf16, #tpu.memory_space<vmem>>, vector<128x384xbf16>
    %cst_21 = arith.constant dense<0.000000e+00> : vector<64x384xf32>
    %34 = tpu.matmul %32, %33, %cst_21 {dimension_numbers = #tpu.dot_dimension_numbers<[1], [0], [0], [1], [0, 0, 1, 1], [], []>} : vector<64x128xbf16>, vector<128x384xbf16>, vector<64x384xf32> -> vector<64x384xf32>
    %c0_22 = arith.constant 0 : index
    %c0_23 = arith.constant 0 : index
    %35 = vector.load %arg8[%c0_22, %c0_23] : memref<1x384xf32, #tpu.memory_space<vmem>>, vector<1x384xf32>
    %36 = vector.broadcast %35 : vector<1x384xf32> to vector<64x384xf32>
    %37 = arith.addf %34, %36 : vector<64x384xf32>
    %38 = arith.truncf %37 : vector<64x384xf32> to vector<64x384xbf16>
    %39 = vector.extract_strided_slice %38 {offsets = [0, 0], sizes = [64, 32], strides = [1, 1]} : vector<64x384xbf16> to vector<64x32xbf16>
    %40 = vector.extract_strided_slice %38 {offsets = [0, 128], sizes = [64, 32], strides = [1, 1]} : vector<64x384xbf16> to vector<64x32xbf16>
    %41 = vector.extract_strided_slice %38 {offsets = [0, 256], sizes = [64, 32], strides = [1, 1]} : vector<64x384xbf16> to vector<64x32xbf16>
    %cst_24 = arith.constant dense<0.000000e+00> : vector<64x64xf32>
    %42 = tpu.matmul %39, %40, %cst_24 {dimension_numbers = #tpu.dot_dimension_numbers<[1], [1], [0], [0], [0, 0, 1, 0], [], []>} : vector<64x32xbf16>, vector<64x32xbf16>, vector<64x64xf32> -> vector<64x64xf32>
    %43 = vector.broadcast %3 : vector<1x64xf32> to vector<64x64xf32>
    %44 = arith.addf %42, %43 : vector<64x64xf32>
    %cst_25 = arith.constant dense<0xFF800000> : vector<64xf32>
    %45 = vector.multi_reduction <maximumf>, %44, %cst_25 [1] : vector<64x64xf32> to vector<64xf32>
    %46 = vector.shape_cast %45 : vector<64xf32> to vector<64x1xf32>
    %47 = vector.broadcast %46 : vector<64x1xf32> to vector<64x64xf32>
    %48 = arith.subf %44, %47 : vector<64x64xf32>
    %49 = math.exp %48 : vector<64x64xf32>
    %cst_26 = arith.constant dense<0.000000e+00> : vector<64xf32>
    %50 = vector.multi_reduction <add>, %49, %cst_26 [1] : vector<64x64xf32> to vector<64xf32>
    %51 = vector.shape_cast %50 : vector<64xf32> to vector<64x1xf32>
    %52 = tpu.reciprocal %51 {approx = true} : vector<64x1xf32> -> vector<64x1xf32>
    %53 = vector.broadcast %52 : vector<64x1xf32> to vector<64x64xf32>
    %54 = arith.mulf %49, %53 : vector<64x64xf32>
    %55 = arith.truncf %54 : vector<64x64xf32> to vector<64x64xbf16>
    %cst_27 = arith.constant dense<0.000000e+00> : vector<64x32xf32>
    %56 = tpu.matmul %55, %41, %cst_27 {dimension_numbers = #tpu.dot_dimension_numbers<[1], [0], [0], [1], [0, 0, 1, 1], [], []>} : vector<64x64xbf16>, vector<64x32xbf16>, vector<64x32xf32> -> vector<64x32xf32>
    %c0_28 = arith.constant 0 : index
    %c0_29 = arith.constant 0 : index
    %57 = vector.load %arg18[%c0_28, %c0_29] : memref<64x128xf32, #tpu.memory_space<vmem>>, vector<64x32xf32>
    tpu.vector_store %arg18[%c0_28, %c0_29], %56 {strides = array<i32>} : memref<64x128xf32, #tpu.memory_space<vmem>>, vector<64x32xf32>,
    %58 = vector.extract_strided_slice %38 {offsets = [0, 32], sizes = [64, 32], strides = [1, 1]} : vector<64x384xbf16> to vector<64x32xbf16>
    %59 = vector.extract_strided_slice %38 {offsets = [0, 160], sizes = [64, 32], strides = [1, 1]} : vector<64x384xbf16> to vector<64x32xbf16>
    %60 = vector.extract_strided_slice %38 {offsets = [0, 288], sizes = [64, 32], strides = [1, 1]} : vector<64x384xbf16> to vector<64x32xbf16>
    %cst_30 = arith.constant dense<0.000000e+00> : vector<64x64xf32>
    %61 = tpu.matmul %58, %59, %cst_30 {dimension_numbers = #tpu.dot_dimension_numbers<[1], [1], [0], [0], [0, 0, 1, 0], [], []>} : vector<64x32xbf16>, vector<64x32xbf16>, vector<64x64xf32> -> vector<64x64xf32>
    %62 = vector.broadcast %3 : vector<1x64xf32> to vector<64x64xf32>
    %63 = arith.addf %61, %62 : vector<64x64xf32>
    %cst_31 = arith.constant dense<0xFF800000> : vector<64xf32>
    %64 = vector.multi_reduction <maximumf>, %63, %cst_31 [1] : vector<64x64xf32> to vector<64xf32>
    %65 = vector.shape_cast %64 : vector<64xf32> to vector<64x1xf32>
    %66 = vector.broadcast %65 : vector<64x1xf32> to vector<64x64xf32>
    %67 = arith.subf %63, %66 : vector<64x64xf32>
    %68 = math.exp %67 : vector<64x64xf32>
    %cst_32 = arith.constant dense<0.000000e+00> : vector<64xf32>
    %69 = vector.multi_reduction <add>, %68, %cst_32 [1] : vector<64x64xf32> to vector<64xf32>
    %70 = vector.shape_cast %69 : vector<64xf32> to vector<64x1xf32>
    %71 = tpu.reciprocal %70 {approx = true} : vector<64x1xf32> -> vector<64x1xf32>
    %72 = vector.broadcast %71 : vector<64x1xf32> to vector<64x64xf32>
    %73 = arith.mulf %68, %72 : vector<64x64xf32>
    %74 = arith.truncf %73 : vector<64x64xf32> to vector<64x64xbf16>
    %cst_33 = arith.constant dense<0.000000e+00> : vector<64x32xf32>
    %75 = tpu.matmul %74, %60, %cst_33 {dimension_numbers = #tpu.dot_dimension_numbers<[1], [0], [0], [1], [0, 0, 1, 1], [], []>} : vector<64x64xbf16>, vector<64x32xbf16>, vector<64x32xf32> -> vector<64x32xf32>
    %c0_34 = arith.constant 0 : index
    %c32 = arith.constant 32 : index
    %76 = vector.load %arg18[%c0_34, %c32] : memref<64x128xf32, #tpu.memory_space<vmem>>, vector<64x32xf32>
    tpu.vector_store %arg18[%c0_34, %c32], %75 {strides = array<i32>} : memref<64x128xf32, #tpu.memory_space<vmem>>, vector<64x32xf32>,
    %77 = vector.extract_strided_slice %38 {offsets = [0, 64], sizes = [64, 32], strides = [1, 1]} : vector<64x384xbf16> to vector<64x32xbf16>
    %78 = vector.extract_strided_slice %38 {offsets = [0, 192], sizes = [64, 32], strides = [1, 1]} : vector<64x384xbf16> to vector<64x32xbf16>
    %79 = vector.extract_strided_slice %38 {offsets = [0, 320], sizes = [64, 32], strides = [1, 1]} : vector<64x384xbf16> to vector<64x32xbf16>
    %cst_35 = arith.constant dense<0.000000e+00> : vector<64x64xf32>
    %80 = tpu.matmul %77, %78, %cst_35 {dimension_numbers = #tpu.dot_dimension_numbers<[1], [1], [0], [0], [0, 0, 1, 0], [], []>} : vector<64x32xbf16>, vector<64x32xbf16>, vector<64x64xf32> -> vector<64x64xf32>
    %81 = vector.broadcast %3 : vector<1x64xf32> to vector<64x64xf32>
    %82 = arith.addf %80, %81 : vector<64x64xf32>
    %cst_36 = arith.constant dense<0xFF800000> : vector<64xf32>
    %83 = vector.multi_reduction <maximumf>, %82, %cst_36 [1] : vector<64x64xf32> to vector<64xf32>
    %84 = vector.shape_cast %83 : vector<64xf32> to vector<64x1xf32>
    %85 = vector.broadcast %84 : vector<64x1xf32> to vector<64x64xf32>
    %86 = arith.subf %82, %85 : vector<64x64xf32>
    %87 = math.exp %86 : vector<64x64xf32>
    %cst_37 = arith.constant dense<0.000000e+00> : vector<64xf32>
    %88 = vector.multi_reduction <add>, %87, %cst_37 [1] : vector<64x64xf32> to vector<64xf32>
    %89 = vector.shape_cast %88 : vector<64xf32> to vector<64x1xf32>
    %90 = tpu.reciprocal %89 {approx = true} : vector<64x1xf32> -> vector<64x1xf32>
    %91 = vector.broadcast %90 : vector<64x1xf32> to vector<64x64xf32>
    %92 = arith.mulf %87, %91 : vector<64x64xf32>
    %93 = arith.truncf %92 : vector<64x64xf32> to vector<64x64xbf16>
    %cst_38 = arith.constant dense<0.000000e+00> : vector<64x32xf32>
    %94 = tpu.matmul %93, %79, %cst_38 {dimension_numbers = #tpu.dot_dimension_numbers<[1], [0], [0], [1], [0, 0, 1, 1], [], []>} : vector<64x64xbf16>, vector<64x32xbf16>, vector<64x32xf32> -> vector<64x32xf32>
    %c0_39 = arith.constant 0 : index
    %c64 = arith.constant 64 : index
    %95 = vector.load %arg18[%c0_39, %c64] : memref<64x128xf32, #tpu.memory_space<vmem>>, vector<64x32xf32>
    tpu.vector_store %arg18[%c0_39, %c64], %94 {strides = array<i32>} : memref<64x128xf32, #tpu.memory_space<vmem>>, vector<64x32xf32>,
    %96 = vector.extract_strided_slice %38 {offsets = [0, 96], sizes = [64, 32], strides = [1, 1]} : vector<64x384xbf16> to vector<64x32xbf16>
    %97 = vector.extract_strided_slice %38 {offsets = [0, 224], sizes = [64, 32], strides = [1, 1]} : vector<64x384xbf16> to vector<64x32xbf16>
    %98 = vector.extract_strided_slice %38 {offsets = [0, 352], sizes = [64, 32], strides = [1, 1]} : vector<64x384xbf16> to vector<64x32xbf16>
    %cst_40 = arith.constant dense<0.000000e+00> : vector<64x64xf32>
    %99 = tpu.matmul %96, %97, %cst_40 {dimension_numbers = #tpu.dot_dimension_numbers<[1], [1], [0], [0], [0, 0, 1, 0], [], []>} : vector<64x32xbf16>, vector<64x32xbf16>, vector<64x64xf32> -> vector<64x64xf32>
    %100 = vector.broadcast %3 : vector<1x64xf32> to vector<64x64xf32>
    %101 = arith.addf %99, %100 : vector<64x64xf32>
    %cst_41 = arith.constant dense<0xFF800000> : vector<64xf32>
    %102 = vector.multi_reduction <maximumf>, %101, %cst_41 [1] : vector<64x64xf32> to vector<64xf32>
    %103 = vector.shape_cast %102 : vector<64xf32> to vector<64x1xf32>
    %104 = vector.broadcast %103 : vector<64x1xf32> to vector<64x64xf32>
    %105 = arith.subf %101, %104 : vector<64x64xf32>
    %106 = math.exp %105 : vector<64x64xf32>
    %cst_42 = arith.constant dense<0.000000e+00> : vector<64xf32>
    %107 = vector.multi_reduction <add>, %106, %cst_42 [1] : vector<64x64xf32> to vector<64xf32>
    %108 = vector.shape_cast %107 : vector<64xf32> to vector<64x1xf32>
    %109 = tpu.reciprocal %108 {approx = true} : vector<64x1xf32> -> vector<64x1xf32>
    %110 = vector.broadcast %109 : vector<64x1xf32> to vector<64x64xf32>
    %111 = arith.mulf %106, %110 : vector<64x64xf32>
    %112 = arith.truncf %111 : vector<64x64xf32> to vector<64x64xbf16>
    %cst_43 = arith.constant dense<0.000000e+00> : vector<64x32xf32>
    %113 = tpu.matmul %112, %98, %cst_43 {dimension_numbers = #tpu.dot_dimension_numbers<[1], [0], [0], [1], [0, 0, 1, 1], [], []>} : vector<64x64xbf16>, vector<64x32xbf16>, vector<64x32xf32> -> vector<64x32xf32>
    %c0_44 = arith.constant 0 : index
    %c96 = arith.constant 96 : index
    %114 = vector.load %arg18[%c0_44, %c96] : memref<64x128xf32, #tpu.memory_space<vmem>>, vector<64x32xf32>
    tpu.vector_store %arg18[%c0_44, %c96], %113 {strides = array<i32>} : memref<64x128xf32, #tpu.memory_space<vmem>>, vector<64x32xf32>,
    %c0_45 = arith.constant 0 : index
    %c0_46 = arith.constant 0 : index
    %115 = vector.load %arg18[%c0_45, %c0_46] : memref<64x128xf32, #tpu.memory_space<vmem>>, vector<64x128xf32>
    %116 = arith.truncf %115 : vector<64x128xf32> to vector<64x128xbf16>
    %c0_47 = arith.constant 0 : index
    %c0_48 = arith.constant 0 : index
    %117 = vector.load %arg9[%c0_47, %c0_48] : memref<128x128xbf16, #tpu.memory_space<vmem>>, vector<128x128xbf16>
    %cst_49 = arith.constant dense<0.000000e+00> : vector<64x128xf32>
    %118 = tpu.matmul %116, %117, %cst_49 {dimension_numbers = #tpu.dot_dimension_numbers<[1], [0], [0], [1], [0, 0, 1, 1], [], []>} : vector<64x128xbf16>, vector<128x128xbf16>, vector<64x128xf32> -> vector<64x128xf32>
    %c0_50 = arith.constant 0 : index
    %c0_51 = arith.constant 0 : index
    %119 = vector.load %arg10[%c0_50, %c0_51] : memref<1x128xf32, #tpu.memory_space<vmem>>, vector<1x128xf32>
    %120 = vector.broadcast %119 : vector<1x128xf32> to vector<64x128xf32>
    %121 = arith.addf %118, %120 : vector<64x128xf32>
    %122 = vector.broadcast %5 : vector<1x128xf32> to vector<64x128xf32>
    %123 = arith.mulf %121, %122 : vector<64x128xf32>
    %124 = arith.addf %1, %123 : vector<64x128xf32>
    %c0_52 = arith.constant 0 : index
    %c0_53 = arith.constant 0 : index
    %125 = vector.load %arg11[%c0_52, %c0_53] : memref<1x128xf32, #tpu.memory_space<vmem>>, vector<1x128xf32>
    %c0_54 = arith.constant 0 : index
    %c0_55 = arith.constant 0 : index
    %126 = vector.load %arg12[%c0_54, %c0_55] : memref<1x128xf32, #tpu.memory_space<vmem>>, vector<1x128xf32>
    %cst_56 = arith.constant dense<0.000000e+00> : vector<64xf32>
    %127 = vector.multi_reduction <add>, %124, %cst_56 [1] : vector<64x128xf32> to vector<64xf32>
    %128 = vector.shape_cast %127 : vector<64xf32> to vector<64x1xf32>
    %cst_57 = arith.constant 1.280000e+02 : f32
    %129 = vector.broadcast %cst_57 : f32 to vector<64x1xf32>
    %130 = arith.divf %128, %129 : vector<64x1xf32>
    %131 = vector.broadcast %130 : vector<64x1xf32> to vector<64x128xf32>
    %132 = arith.subf %124, %131 : vector<64x128xf32>
    %133 = arith.mulf %132, %132 : vector<64x128xf32>
    %cst_58 = arith.constant dense<0.000000e+00> : vector<64xf32>
    %134 = vector.multi_reduction <add>, %133, %cst_58 [1] : vector<64x128xf32> to vector<64xf32>
    %135 = vector.shape_cast %134 : vector<64xf32> to vector<64x1xf32>
    %cst_59 = arith.constant 1.280000e+02 : f32
    %136 = vector.broadcast %cst_59 : f32 to vector<64x1xf32>
    %137 = arith.divf %135, %136 : vector<64x1xf32>
    %138 = vector.broadcast %130 : vector<64x1xf32> to vector<64x128xf32>
    %139 = arith.subf %124, %138 : vector<64x128xf32>
    %cst_60 = arith.constant 9.99999997E-7 : f32
    %140 = vector.broadcast %cst_60 : f32 to vector<64x1xf32>
    %141 = arith.addf %137, %140 : vector<64x1xf32>
    %142 = math.rsqrt %141 : vector<64x1xf32>
    %143 = vector.broadcast %142 : vector<64x1xf32> to vector<64x128xf32>
    %144 = arith.mulf %139, %143 : vector<64x128xf32>
    %145 = vector.broadcast %125 : vector<1x128xf32> to vector<64x128xf32>
    %146 = arith.mulf %144, %145 : vector<64x128xf32>
    %147 = vector.broadcast %126 : vector<1x128xf32> to vector<64x128xf32>
    %148 = arith.addf %146, %147 : vector<64x128xf32>
    %149 = arith.truncf %148 : vector<64x128xf32> to vector<64x128xbf16>
    %c0_61 = arith.constant 0 : index
    %c0_62 = arith.constant 0 : index
    %150 = vector.load %arg13[%c0_61, %c0_62] : memref<128x512xbf16, #tpu.memory_space<vmem>>, vector<128x512xbf16>
    %cst_63 = arith.constant dense<0.000000e+00> : vector<64x512xf32>
    %151 = tpu.matmul %149, %150, %cst_63 {dimension_numbers = #tpu.dot_dimension_numbers<[1], [0], [0], [1], [0, 0, 1, 1], [], []>} : vector<64x128xbf16>, vector<128x512xbf16>, vector<64x512xf32> -> vector<64x512xf32>
    %c0_64 = arith.constant 0 : index
    %c0_65 = arith.constant 0 : index
    %152 = vector.load %arg14[%c0_64, %c0_65] : memref<1x512xf32, #tpu.memory_space<vmem>>, vector<1x512xf32>
    %153 = vector.broadcast %152 : vector<1x512xf32> to vector<64x512xf32>
    %154 = arith.addf %151, %153 : vector<64x512xf32>
    %155 = arith.negf %154 : vector<64x512xf32>
    %156 = math.exp %155 : vector<64x512xf32>
    %cst_66 = arith.constant 1.000000e+00 : f32
    %157 = vector.broadcast %cst_66 : f32 to vector<64x512xf32>
    %158 = arith.addf %157, %156 : vector<64x512xf32>
    %159 = arith.divf %157, %158 : vector<64x512xf32>
    %160 = arith.mulf %154, %159 : vector<64x512xf32>
    %161 = arith.truncf %160 : vector<64x512xf32> to vector<64x512xbf16>
    %c0_67 = arith.constant 0 : index
    %c0_68 = arith.constant 0 : index
    %162 = vector.load %arg15[%c0_67, %c0_68] : memref<512x128xbf16, #tpu.memory_space<vmem>>, vector<512x128xbf16>
    %cst_69 = arith.constant dense<0.000000e+00> : vector<64x128xf32>
    %163 = tpu.matmul %161, %162, %cst_69 {dimension_numbers = #tpu.dot_dimension_numbers<[1], [0], [0], [1], [0, 0, 1, 1], [], []>} : vector<64x512xbf16>, vector<512x128xbf16>, vector<64x128xf32> -> vector<64x128xf32>
    %c0_70 = arith.constant 0 : index
    %c0_71 = arith.constant 0 : index
    %164 = vector.load %arg16[%c0_70, %c0_71] : memref<1x128xf32, #tpu.memory_space<vmem>>, vector<1x128xf32>
    %165 = vector.broadcast %164 : vector<1x128xf32> to vector<64x128xf32>
    %166 = arith.addf %163, %165 : vector<64x128xf32>
    %167 = vector.broadcast %7 : vector<1x128xf32> to vector<64x128xf32>
    %168 = arith.mulf %166, %167 : vector<64x128xf32>
    %169 = arith.addf %124, %168 : vector<64x128xf32>
    %c0_72 = arith.constant 0 : index
    %c0_73 = arith.constant 0 : index
    %c0_74 = arith.constant 0 : index
    %170 = vector.load %arg17[%c0_72, %c0_73, %c0_74] : memref<1x64x128xf32, #tpu.memory_space<vmem>>, vector<1x64x128xf32>
    %171 = vector.shape_cast %170 : vector<1x64x128xf32> to vector<64x128xf32>
    %172 = vector.shape_cast %169 : vector<64x128xf32> to vector<1x64x128xf32>
    tpu.vector_store %arg17[%c0_72, %c0_73, %c0_74], %172 {strides = array<i32>} : memref<1x64x128xf32, #tpu.memory_space<vmem>>, vector<1x64x128xf32>,
    return
  }
  func.func @transform_0(%arg0: i32) -> (i32, i32, i32) {
    %c0_i32 = arith.constant 0 : i32
    %c0_i32_0 = arith.constant 0 : i32
    %c0_i32_1 = arith.constant 0 : i32
    return %arg0, %c0_i32, %c0_i32_0 : i32, i32, i32
  }
  func.func @transform_1(%arg0: i32) -> (i32, i32, i32) {
    %c0_i32 = arith.constant 0 : i32
    %c0_i32_0 = arith.constant 0 : i32
    %c0_i32_1 = arith.constant 0 : i32
    return %arg0, %c0_i32, %c0_i32_0 : i32, i32, i32
  }
  func.func @transform_2(%arg0: i32) -> (i32, i32, i32) {
    %c0_i32 = arith.constant 0 : i32
    %c0_i32_0 = arith.constant 0 : i32
    %c0_i32_1 = arith.constant 0 : i32
    return %arg0, %c0_i32, %c0_i32_0 : i32, i32, i32
  }
  func.func @transform_3(%arg0: i32) -> (i32, i32, i32) {
    %c0_i32 = arith.constant 0 : i32
    %c0_i32_0 = arith.constant 0 : i32
    %c0_i32_1 = arith.constant 0 : i32
    return %arg0, %c0_i32, %c0_i32_0 : i32, i32, i32
  }
  func.func @transform_4(%arg0: i32) -> (i32, i32) {
    %c0_i32 = arith.constant 0 : i32
    %c0_i32_0 = arith.constant 0 : i32
    %c0_i32_1 = arith.constant 0 : i32
    return %c0_i32, %c0_i32_0 : i32, i32
  }
  func.func @transform_5(%arg0: i32) -> (i32, i32) {
    %c0_i32 = arith.constant 0 : i32
    %c0_i32_0 = arith.constant 0 : i32
    %c0_i32_1 = arith.constant 0 : i32
    return %c0_i32, %c0_i32_0 : i32, i32
  }
  func.func @transform_6(%arg0: i32) -> (i32, i32) {
    %c0_i32 = arith.constant 0 : i32
    %c0_i32_0 = arith.constant 0 : i32
    %c0_i32_1 = arith.constant 0 : i32
    return %c0_i32, %c0_i32_0 : i32, i32
  }
  func.func @transform_7(%arg0: i32) -> (i32, i32) {
    %c0_i32 = arith.constant 0 : i32
    %c0_i32_0 = arith.constant 0 : i32
    %c0_i32_1 = arith.constant 0 : i32
    return %c0_i32, %c0_i32_0 : i32, i32
  }
  func.func @transform_8(%arg0: i32) -> (i32, i32) {
    %c0_i32 = arith.constant 0 : i32
    %c0_i32_0 = arith.constant 0 : i32
    %c0_i32_1 = arith.constant 0 : i32
    return %c0_i32, %c0_i32_0 : i32, i32
  }
  func.func @transform_9(%arg0: i32) -> (i32, i32) {
    %c0_i32 = arith.constant 0 : i32
    %c0_i32_0 = arith.constant 0 : i32
    %c0_i32_1 = arith.constant 0 : i32
    return %c0_i32, %c0_i32_0 : i32, i32
  }
  func.func @transform_10(%arg0: i32) -> (i32, i32) {
    %c0_i32 = arith.constant 0 : i32
    %c0_i32_0 = arith.constant 0 : i32
    %c0_i32_1 = arith.constant 0 : i32
    return %c0_i32, %c0_i32_0 : i32, i32
  }
  func.func @transform_11(%arg0: i32) -> (i32, i32) {
    %c0_i32 = arith.constant 0 : i32
    %c0_i32_0 = arith.constant 0 : i32
    %c0_i32_1 = arith.constant 0 : i32
    return %c0_i32, %c0_i32_0 : i32, i32
  }
  func.func @transform_12(%arg0: i32) -> (i32, i32) {
    %c0_i32 = arith.constant 0 : i32
    %c0_i32_0 = arith.constant 0 : i32
    %c0_i32_1 = arith.constant 0 : i32
    return %c0_i32, %c0_i32_0 : i32, i32
  }
  func.func @transform_13(%arg0: i32) -> (i32, i32) {
    %c0_i32 = arith.constant 0 : i32
    %c0_i32_0 = arith.constant 0 : i32
    %c0_i32_1 = arith.constant 0 : i32
    return %c0_i32, %c0_i32_0 : i32, i32
  }
  func.func @transform_14(%arg0: i32) -> (i32, i32) {
    %c0_i32 = arith.constant 0 : i32
    %c0_i32_0 = arith.constant 0 : i32
    %c0_i32_1 = arith.constant 0 : i32
    return %c0_i32, %c0_i32_0 : i32, i32
  }
  func.func @transform_15(%arg0: i32) -> (i32, i32) {
    %c0_i32 = arith.constant 0 : i32
    %c0_i32_0 = arith.constant 0 : i32
    %c0_i32_1 = arith.constant 0 : i32
    return %c0_i32, %c0_i32_0 : i32, i32
  }
  func.func @transform_16(%arg0: i32) -> (i32, i32, i32) {
    %c0_i32 = arith.constant 0 : i32
    %c0_i32_0 = arith.constant 0 : i32
    %c0_i32_1 = arith.constant 0 : i32
    return %arg0, %c0_i32, %c0_i32_0 : i32, i32, i32
  }
}

</mosaic_0001>

<llo_original>
// kernel: token_refiner_block.1
$region0: #{token_refiner_block.1}
  #allocation0 [shape = 'u32[]', space=smem, size = 0x4, offset = 0x4, fixed_abs, tag = 'smem constant byte address 0x4 - core index']
  #allocation1 [shape = 'u32[72,128]{1,0:T(1,128)}', space=vmem, size = 0x9000, scoped, tag = 'internal scratch']
  #allocation2 [shape = 'f32[64,128]{1,0:T(8,128)}', space=vmem, size = 0x8000, scoped, tag = 'scratch operand']
  %s0 = inlined_call_operand.hbm [shape: f32[2,64,128], index: 0, kind: input, shape index: {}]
  %s1 = inlined_call_operand.vmem [shape: f32[2,1,128], index: 1, kind: input, shape index: {}]
  %s2 = inlined_call_operand.vmem [shape: f32[2,1,128], index: 2, kind: input, shape index: {}]
  %s3 = inlined_call_operand.vmem [shape: f32[2,1,64], index: 3, kind: input, shape index: {}]
  %s4 = inlined_call_operand.vmem [shape: f32[1,128], index: 4, kind: input, shape index: {}]
  %s5 = inlined_call_operand.vmem [shape: f32[1,128], index: 5, kind: input, shape index: {}]
  %s6 = inlined_call_operand.hbm [shape: bf16[128,384], index: 6, kind: input, shape index: {}]
  %s7 = inlined_call_operand.vmem [shape: f32[1,384], index: 7, kind: input, shape index: {}]
  %s8 = inlined_call_operand.hbm [shape: bf16[128,128], index: 8, kind: input, shape index: {}]
  %s9 = inlined_call_operand.vmem [shape: f32[1,128], index: 9, kind: input, shape index: {}]
  %s10 = inlined_call_operand.vmem [shape: f32[1,128], index: 10, kind: input, shape index: {}]
  %s11 = inlined_call_operand.vmem [shape: f32[1,128], index: 11, kind: input, shape index: {}]
  %s12 = inlined_call_operand.vmem [shape: bf16[128,512], index: 12, kind: input, shape index: {}]
  %s13 = inlined_call_operand.vmem [shape: f32[1,512], index: 13, kind: input, shape index: {}]
  %s14 = inlined_call_operand.hbm [shape: bf16[512,128], index: 14, kind: input, shape index: {}]
  %s15 = inlined_call_operand.vmem [shape: f32[1,128], index: 15, kind: input, shape index: {}]
  %s16 = inlined_call_operand.hbm [shape: f32[2,64,128], index: 16, kind: output, shape index: {}]
  %s17 = sld [smem:[#allocation0]]
  $region113: #{token_refiner_block.1} parent=0
    _
  %s19 = ssub.s32 1, %s17
  %s20 = scalar_select 0, %s19, %s17
  $region1: #{token_refiner_block.1} parent=0
    #allocation3 [shape = 'u8[65536]{0}', space=vmem, size = 0x10000, scoped, tag = 'input window, operand 0']
    #allocation4 [shape = 's32[2]{0}', space=sflag, size = 0x8, scoped, tag = 'scoped memory for token_refiner_block.1']
    #allocation5 [shape = 's32[2]{0}', space=sflag, size = 0x8, scoped, tag = 'scoped memory for token_refiner_block.1']
    #allocation6 [shape = 'u8[98304]{0}', space=vmem, size = 0x18000, scoped, tag = 'input window, operand 6, single buffered']
    #allocation7 [shape = 's32[1]{0}', space=sflag, size = 0x4, scoped, tag = 'scoped memory for token_refiner_block.1']
    #allocation8 [shape = 'u8[32768]{0}', space=vmem, size = 0x8000, scoped, tag = 'input window, operand 8, single buffered']
    #allocation9 [shape = 'u8[131072]{0}', space=vmem, size = 0x20000, scoped, tag = 'input window, operand 14, single buffered']
    #allocation10 [shape = 's32[1]{0}', space=sflag, size = 0x4, scoped, tag = 'scoped memory for token_refiner_block.1']
    #allocation11 [shape = 'u8[65536]{0}', space=vmem, size = 0x10000, scoped, tag = 'output window, operand 0']
    %21 = vsyncpa [#allocation4], 0
    %s22 = scalar_lea.sflag [#allocation4], 1
    %23 = vsyncpa %s22, 0
    %24 = vsyncpa [#allocation7], 0
    %25 = vsyncpa [#allocation10], 0
    %26 = vsyncpa [#allocation5], 0
    %s27 = scalar_lea.sflag [#allocation5], 1
    %28 = vsyncpa %s27, 0
    loop: start=0, step=1, limit=4
    $region2: #{token_refiner_block.1} parent=1 // loop_pre_header
      _
    $region3: #{token_refiner_block.1} parent=1 // loop_header
      %s30 = sphi 0, %s34
      %p31 = scmp.ge.s32.totalorder %s30, 4
      %s40 = sphi 0, %s42
      %s43 = sphi 0, %s40
      %s44 = sphi 0, %s43
      %s60 = sphi 0, %s44
      %s66 = sphi 0, %s68
      %s69 = sphi 0, %s66
      %s70 = sphi 0, %s69
      %s86 = sphi 0, %s70
      %s92 = sphi 0, %s94
      %s95 = sphi 0, %s92
      %s96 = sphi 0, %s95
      %s112 = sphi 0, %s96
      %s118 = sphi 0, %s120
      %s121 = sphi 0, %s118
      %s122 = sphi 0, %s121
      %s138 = sphi 0, %s122
      %s142 = sphi 0, %s142
      %s144 = sphi 0, %s142
      %s145 = sphi 0, %s144
      %s159 = sphi 0, %s145
      %s163 = sphi 0, %s163
      %s165 = sphi 0, %s163
      %s166 = sphi 0, %s165
      %s180 = sphi 0, %s166
      %s184 = sphi 0, %s184
      %s186 = sphi 0, %s184
      %s187 = sphi 0, %s186
      %s201 = sphi 0, %s187
      %s205 = sphi 0, %s205
      %s207 = sphi 0, %s205
      %s208 = sphi 0, %s207
      %s222 = sphi 0, %s208
      %s226 = sphi 0, %s226
      %s228 = sphi 0, %s226
      %s229 = sphi 0, %s228
      %s243 = sphi 0, %s229
      %s247 = sphi 0, %s247
      %s249 = sphi 0, %s247
      %s250 = sphi 0, %s249
      %s264 = sphi 0, %s250
      %s268 = sphi 0, %s268
      %s270 = sphi 0, %s268
      %s271 = sphi 0, %s270
      %s285 = sphi 0, %s271
      %s289 = sphi 0, %s289
      %s291 = sphi 0, %s289
      %s292 = sphi 0, %s291
      %s306 = sphi 0, %s292
      %s310 = sphi 0, %s310
      %s312 = sphi 0, %s310
      %s313 = sphi 0, %s312
      %s327 = sphi 0, %s313
      %s331 = sphi 0, %s331
      %s333 = sphi 0, %s331
      %s334 = sphi 0, %s333
      %s348 = sphi 0, %s334
      %s352 = sphi 0, %s352
      %s354 = sphi 0, %s352
      %s355 = sphi 0, %s354
      %s369 = sphi 0, %s355
      %s373 = sphi 0, %s373
      %s375 = sphi 0, %s373
      %s376 = sphi 0, %s375
      %s390 = sphi 0, %s376
      %s396 = sphi 0, %s398
      %s399 = sphi 0, %s396
      %s400 = sphi 0, %s399
      %s416 = sphi 0, %s400
    $region4: #{token_refiner_block.1} parent=1 // loop_header_branch
      %33 = sbr.rel (%p31) target = $region8
    $region5: #{token_refiner_block.1} parent=1 // loop_body
      %s35 = ssub.s32 %s30, 1
      %s36 = ssub.s32 %s30, 2
      %s37 = sadd.s32 %s30, 1
      %s38 = ssub.s32 %s30, %s37
      %p39 = scmp.eq.s32.totalorder %s38, 0
      %s41 = sadd.s32 %s40, 1
      %s42 = scalar_select %p39, %s40, %s41
      %p45 = pneg %p39
      %p46 = scmp.eq.s32.totalorder %s30, 1
      %p47 = por %p45, %p46
      %p48 = scmp.ne.s32.totalorder %s40, %s43
      %p49 = scmp.eq.s32.totalorder %s30, 0
      %p50 = por %p48, %p49
      %p51 = scmp.ne.s32.totalorder %s40, %s43
      %p52 = scmp.eq.s32.totalorder %s35, 1
      %p53 = por %p51, %p52
      %p54 = scmp.ne.s32.totalorder %s43, %s44
      %p55 = scmp.eq.s32.totalorder %s35, 0
      %p56 = por %p54, %p55
      %p57 = scmp.ne.s32.totalorder %s43, %s44
      %p58 = scmp.eq.s32.totalorder %s36, 1
      %p59 = por %p57, %p58
      %p61 = scmp.ne.s32.totalorder %s44, %s60
      %p62 = scmp.eq.s32.totalorder %s36, 0
      %p63 = por %p61, %p62
      %s64 = ssub.s32 %s30, %s37
      %p65 = scmp.eq.s32.totalorder %s64, 0
      %s67 = sadd.s32 %s66, 1
      %s68 = scalar_select %p65, %s66, %s67
      %p71 = pneg %p65
      %p72 = scmp.eq.s32.totalorder %s30, 1
      %p73 = por %p71, %p72
      %p74 = scmp.ne.s32.totalorder %s66, %s69
      %p75 = scmp.eq.s32.totalorder %s30, 0
      %p76 = por %p74, %p75
      %p77 = scmp.ne.s32.totalorder %s66, %s69
      %p78 = scmp.eq.s32.totalorder %s35, 1
      %p79 = por %p77, %p78
      %p80 = scmp.ne.s32.totalorder %s69, %s70
      %p81 = scmp.eq.s32.totalorder %s35, 0
      %p82 = por %p80, %p81
      %p83 = scmp.ne.s32.totalorder %s69, %s70
      %p84 = scmp.eq.s32.totalorder %s36, 1
      %p85 = por %p83, %p84
      %p87 = scmp.ne.s32.totalorder %s70, %s86
      %p88 = scmp.eq.s32.totalorder %s36, 0
      %p89 = por %p87, %p88
      %s90 = ssub.s32 %s30, %s37
      %p91 = scmp.eq.s32.totalorder %s90, 0
      %s93 = sadd.s32 %s92, 1
      %s94 = scalar_select %p91, %s92, %s93
      %p97 = pneg %p91
      %p98 = scmp.eq.s32.totalorder %s30, 1
      %p99 = por %p97, %p98
      %p100 = scmp.ne.s32.totalorder %s92, %s95
      %p101 = scmp.eq.s32.totalorder %s30, 0
      %p102 = por %p100, %p101
      %p103 = scmp.ne.s32.totalorder %s92, %s95
      %p104 = scmp.eq.s32.totalorder %s35, 1
      %p105 = por %p103, %p104
      %p106 = scmp.ne.s32.totalorder %s95, %s96
      %p107 = scmp.eq.s32.totalorder %s35, 0
      %p108 = por %p106, %p107
      %p109 = scmp.ne.s32.totalorder %s95, %s96
      %p110 = scmp.eq.s32.totalorder %s36, 1
      %p111 = por %p109, %p110
      %p113 = scmp.ne.s32.totalorder %s96, %s112
      %p114 = scmp.eq.s32.totalorder %s36, 0
      %p115 = por %p113, %p114
      %s116 = ssub.s32 %s30, %s37
      %p117 = scmp.eq.s32.totalorder %s116, 0
      %s119 = sadd.s32 %s118, 1
      %s120 = scalar_select %p117, %s118, %s119
      %p123 = pneg %p117
      %p124 = scmp.eq.s32.totalorder %s30, 1
      %p125 = por %p123, %p124
      %p126 = scmp.ne.s32.totalorder %s118, %s121
      %p127 = scmp.eq.s32.totalorder %s30, 0
      %p128 = por %p126, %p127
      %p129 = scmp.ne.s32.totalorder %s118, %s121
      %p130 = scmp.eq.s32.totalorder %s35, 1
      %p131 = por %p129, %p130
      %p132 = scmp.ne.s32.totalorder %s121, %s122
      %p133 = scmp.eq.s32.totalorder %s35, 0
      %p134 = por %p132, %p133
      %p135 = scmp.ne.s32.totalorder %s121, %s122
      %p136 = scmp.eq.s32.totalorder %s36, 1
      %p137 = por %p135, %p136
      %p139 = scmp.ne.s32.totalorder %s122, %s138
      %p140 = scmp.eq.s32.totalorder %s36, 0
      %p141 = por %p139, %p140
      %s143 = sadd.s32 %s142, 1
      %p146 = scmp.eq.s32.totalorder %s30, 1
      %p147 = scmp.ne.s32.totalorder %s142, %s144
      %p148 = scmp.eq.s32.totalorder %s30, 0
      %p149 = por %p147, %p148
      %p150 = scmp.ne.s32.totalorder %s142, %s144
      %p151 = scmp.eq.s32.totalorder %s35, 1
      %p152 = por %p150, %p151
      %p153 = scmp.ne.s32.totalorder %s144, %s145
      %p154 = scmp.eq.s32.totalorder %s35, 0
      %p155 = por %p153, %p154
      %p156 = scmp.ne.s32.totalorder %s144, %s145
      %p157 = scmp.eq.s32.totalorder %s36, 1
      %p158 = por %p156, %p157
      %p160 = scmp.ne.s32.totalorder %s145, %s159
      %p161 = scmp.eq.s32.totalorder %s36, 0
      %p162 = por %p160, %p161
      %s164 = sadd.s32 %s163, 1
      %p167 = scmp.eq.s32.totalorder %s30, 1
      %p168 = scmp.ne.s32.totalorder %s163, %s165
      %p169 = scmp.eq.s32.totalorder %s30, 0
      %p170 = por %p168, %p169
      %p171 = scmp.ne.s32.totalorder %s163, %s165
      %p172 = scmp.eq.s32.totalorder %s35, 1
      %p173 = por %p171, %p172
      %p174 = scmp.ne.s32.totalorder %s165, %s166
      %p175 = scmp.eq.s32.totalorder %s35, 0
      %p176 = por %p174, %p175
      %p177 = scmp.ne.s32.totalorder %s165, %s166
      %p178 = scmp.eq.s32.totalorder %s36, 1
      %p179 = por %p177, %p178
      %p181 = scmp.ne.s32.totalorder %s166, %s180
      %p182 = scmp.eq.s32.totalorder %s36, 0
      %p183 = por %p181, %p182
      %s185 = sadd.s32 %s184, 1
      %p188 = scmp.eq.s32.totalorder %s30, 1
      %p189 = scmp.ne.s32.totalorder %s184, %s186
      %p190 = scmp.eq.s32.totalorder %s30, 0
      %p191 = por %p189, %p190
      %p192 = scmp.ne.s32.totalorder %s184, %s186
      %p193 = scmp.eq.s32.totalorder %s35, 1
      %p194 = por %p192, %p193
      %p195 = scmp.ne.s32.totalorder %s186, %s187
      %p196 = scmp.eq.s32.totalorder %s35, 0
      %p197 = por %p195, %p196
      %p198 = scmp.ne.s32.totalorder %s186, %s187
      %p199 = scmp.eq.s32.totalorder %s36, 1
      %p200 = por %p198, %p199
      %p202 = scmp.ne.s32.totalorder %s187, %s201
      %p203 = scmp.eq.s32.totalorder %s36, 0
      %p204 = por %p202, %p203
      %s206 = sadd.s32 %s205, 1
      %p209 = scmp.eq.s32.totalorder %s30, 1
      %p210 = scmp.ne.s32.totalorder %s205, %s207
      %p211 = scmp.eq.s32.totalorder %s30, 0
      %p212 = por %p210, %p211
      %p213 = scmp.ne.s32.totalorder %s205, %s207
      %p214 = scmp.eq.s32.totalorder %s35, 1
      %p215 = por %p213, %p214
      %p216 = scmp.ne.s32.totalorder %s207, %s208
      %p217 = scmp.eq.s32.totalorder %s35, 0
      %p218 = por %p216, %p217
      %p219 = scmp.ne.s32.totalorder %s207, %s208
      %p220 = scmp.eq.s32.totalorder %s36, 1
      %p221 = por %p219, %p220
      %p223 = scmp.ne.s32.totalorder %s208, %s222
      %p224 = scmp.eq.s32.totalorder %s36, 0
      %p225 = por %p223, %p224
      %s227 = sadd.s32 %s226, 1
      %p230 = scmp.eq.s32.totalorder %s30, 1
      %p231 = scmp.ne.s32.totalorder %s226, %s228
      %p232 = scmp.eq.s32.totalorder %s30, 0
      %p233 = por %p231, %p232
      %p234 = scmp.ne.s32.totalorder %s226, %s228
      %p235 = scmp.eq.s32.totalorder %s35, 1
      %p236 = por %p234, %p235
      %p237 = scmp.ne.s32.totalorder %s228, %s229
      %p238 = scmp.eq.s32.totalorder %s35, 0
      %p239 = por %p237, %p238
      %p240 = scmp.ne.s32.totalorder %s228, %s229
      %p241 = scmp.eq.s32.totalorder %s36, 1
      %p242 = por %p240, %p241
      %p244 = scmp.ne.s32.totalorder %s229, %s243
      %p245 = scmp.eq.s32.totalorder %s36, 0
      %p246 = por %p244, %p245
      %s248 = sadd.s32 %s247, 1
      %p251 = scmp.eq.s32.totalorder %s30, 1
      %p252 = scmp.ne.s32.totalorder %s247, %s249
      %p253 = scmp.eq.s32.totalorder %s30, 0
      %p254 = por %p252, %p253
      %p255 = scmp.ne.s32.totalorder %s247, %s249
      %p256 = scmp.eq.s32.totalorder %s35, 1
      %p257 = por %p255, %p256
      %p258 = scmp.ne.s32.totalorder %s249, %s250
      %p259 = scmp.eq.s32.totalorder %s35, 0
      %p260 = por %p258, %p259
      %p261 = scmp.ne.s32.totalorder %s249, %s250
      %p262 = scmp.eq.s32.totalorder %s36, 1
      %p263 = por %p261, %p262
      %p265 = scmp.ne.s32.totalorder %s250, %s264
      %p266 = scmp.eq.s32.totalorder %s36, 0
      %p267 = por %p265, %p266
      %s269 = sadd.s32 %s268, 1
      %p272 = scmp.eq.s32.totalorder %s30, 1
      %p273 = scmp.ne.s32.totalorder %s268, %s270
      %p274 = scmp.eq.s32.totalorder %s30, 0
      %p275 = por %p273, %p274
      %p276 = scmp.ne.s32.totalorder %s268, %s270
      %p277 = scmp.eq.s32.totalorder %s35, 1
      %p278 = por %p276, %p277
      %p279 = scmp.ne.s32.totalorder %s270, %s271
      %p280 = scmp.eq.s32.totalorder %s35, 0
      %p281 = por %p279, %p280
      %p282 = scmp.ne.s32.totalorder %s270, %s271
      %p283 = scmp.eq.s32.totalorder %s36, 1
      %p284 = por %p282, %p283
      %p286 = scmp.ne.s32.totalorder %s271, %s285
      %p287 = scmp.eq.s32.totalorder %s36, 0
      %p288 = por %p286, %p287
      %s290 = sadd.s32 %s289, 1
      %p293 = scmp.eq.s32.totalorder %s30, 1
      %p294 = scmp.ne.s32.totalorder %s289, %s291
      %p295 = scmp.eq.s32.totalorder %s30, 0
      %p296 = por %p294, %p295
      %p297 = scmp.ne.s32.totalorder %s289, %s291
      %p298 = scmp.eq.s32.totalorder %s35, 1
      %p299 = por %p297, %p298
      %p300 = scmp.ne.s32.totalorder %s291, %s292
      %p301 = scmp.eq.s32.totalorder %s35, 0
      %p302 = por %p300, %p301
      %p303 = scmp.ne.s32.totalorder %s291, %s292
      %p304 = scmp.eq.s32.totalorder %s36, 1
      %p305 = por %p303, %p304
      %p307 = scmp.ne.s32.totalorder %s292, %s306
      %p308 = scmp.eq.s32.totalorder %s36, 0
      %p309 = por %p307, %p308
      %s311 = sadd.s32 %s310, 1
      %p314 = scmp.eq.s32.totalorder %s30, 1
      %p315 = scmp.ne.s32.totalorder %s310, %s312
      %p316 = scmp.eq.s32.totalorder %s30, 0
      %p317 = por %p315, %p316
      %p318 = scmp.ne.s32.totalorder %s310, %s312
      %p319 = scmp.eq.s32.totalorder %s35, 1
      %p320 = por %p318, %p319
      %p321 = scmp.ne.s32.totalorder %s312, %s313
      %p322 = scmp.eq.s32.totalorder %s35, 0
      %p323 = por %p321, %p322
      %p324 = scmp.ne.s32.totalorder %s312, %s313
      %p325 = scmp.eq.s32.totalorder %s36, 1
      %p326 = por %p324, %p325
      %p328 = scmp.ne.s32.totalorder %s313, %s327
      %p329 = scmp.eq.s32.totalorder %s36, 0
      %p330 = por %p328, %p329
      %s332 = sadd.s32 %s331, 1
      %p335 = scmp.eq.s32.totalorder %s30, 1
      %p336 = scmp.ne.s32.totalorder %s331, %s333
      %p337 = scmp.eq.s32.totalorder %s30, 0
      %p338 = por %p336, %p337
      %p339 = scmp.ne.s32.totalorder %s331, %s333
      %p340 = scmp.eq.s32.totalorder %s35, 1
      %p341 = por %p339, %p340
      %p342 = scmp.ne.s32.totalorder %s333, %s334
      %p343 = scmp.eq.s32.totalorder %s35, 0
      %p344 = por %p342, %p343
      %p345 = scmp.ne.s32.totalorder %s333, %s334
      %p346 = scmp.eq.s32.totalorder %s36, 1
      %p347 = por %p345, %p346
      %p349 = scmp.ne.s32.totalorder %s334, %s348
      %p350 = scmp.eq.s32.totalorder %s36, 0
      %p351 = por %p349, %p350
      %s353 = sadd.s32 %s352, 1
      %p356 = scmp.eq.s32.totalorder %s30, 1
      %p357 = scmp.ne.s32.totalorder %s352, %s354
      %p358 = scmp.eq.s32.totalorder %s30, 0
      %p359 = por %p357, %p358
      %p360 = scmp.ne.s32.totalorder %s352, %s354
      %p361 = scmp.eq.s32.totalorder %s35, 1
      %p362 = por %p360, %p361
      %p363 = scmp.ne.s32.totalorder %s354, %s355
      %p364 = scmp.eq.s32.totalorder %s35, 0
      %p365 = por %p363, %p364
      %p366 = scmp.ne.s32.totalorder %s354, %s355
      %p367 = scmp.eq.s32.totalorder %s36, 1
      %p368 = por %p366, %p367
      %p370 = scmp.ne.s32.totalorder %s355, %s369
      %p371 = scmp.eq.s32.totalorder %s36, 0
      %p372 = por %p370, %p371
      %s374 = sadd.s32 %s373, 1
      %p377 = scmp.eq.s32.totalorder %s30, 1
      %p378 = scmp.ne.s32.totalorder %s373, %s375
      %p379 = scmp.eq.s32.totalorder %s30, 0
      %p380 = por %p378, %p379
      %p381 = scmp.ne.s32.totalorder %s373, %s375
      %p382 = scmp.eq.s32.totalorder %s35, 1
      %p383 = por %p381, %p382
      %p384 = scmp.ne.s32.totalorder %s375, %s376
      %p385 = scmp.eq.s32.totalorder %s35, 0
      %p386 = por %p384, %p385
      %p387 = scmp.ne.s32.totalorder %s375, %s376
      %p388 = scmp.eq.s32.totalorder %s36, 1
      %p389 = por %p387, %p388
      %p391 = scmp.ne.s32.totalorder %s376, %s390
      %p392 = scmp.eq.s32.totalorder %s36, 0
      %p393 = por %p391, %p392
      %s394 = ssub.s32 %s30, %s37
      %p395 = scmp.eq.s32.totalorder %s394, 0
      %s397 = sadd.s32 %s396, 1
      %s398 = scalar_select %p395, %s396, %s397
      %p401 = pneg %p395
      %p402 = scmp.eq.s32.totalorder %s30, 1
      %p403 = por %p401, %p402
      %p404 = scmp.ne.s32.totalorder %s396, %s399
      %p405 = scmp.eq.s32.totalorder %s30, 0
      %p406 = por %p404, %p405
      %p407 = scmp.ne.s32.totalorder %s396, %s399
      %p408 = scmp.eq.s32.totalorder %s35, 1
      %p409 = por %p407, %p408
      %p410 = scmp.ne.s32.totalorder %s399, %s400
      %p411 = scmp.eq.s32.totalorder %s35, 0
      %p412 = por %p410, %p411
      %p413 = scmp.ne.s32.totalorder %s399, %s400
      %p414 = scmp.eq.s32.totalorder %s36, 1
      %p415 = por %p413, %p414
      %p417 = scmp.ne.s32.totalorder %s400, %s416
      %p418 = scmp.eq.s32.totalorder %s36, 0
      %p419 = por %p417, %p418
      %p420 = scmp.le.s32.totalorder 1, %s30
      %p421 = scmp.lt.s32.totalorder %s30, 3
      %p422 = pnand %p420, %p421
      %p423 = pneg %p422
      // Predicated region
      $region9: #{token_refiner_block.1} parent=5 // pred_check
        _
      $region10: #{token_refiner_block.1} parent=5 // pred_check_branch
        %425 = sbr.rel (%p422) target = $region12
      $region11: #{token_refiner_block.1} parent=5 // pred_region
        %s426 = ssub.s32 %s30, 1
        // Predicated region
        $region13: #{token_refiner_block.1} parent=11 // pred_check
          %p427 = pneg %p155
        $region14: #{token_refiner_block.1} parent=11 // pred_check_branch
          %429 = sbr.rel (%p427) target = $region16
        $region15: #{token_refiner_block.1} parent=11 // pred_region
          _
        $region16: #{token_refiner_block.1} parent=11 // pred_fallthru
          _
        // Predicated region
        $region17: #{token_refiner_block.1} parent=11 // pred_check
          %p430 = pneg %p176
        $region18: #{token_refiner_block.1} parent=11 // pred_check_branch
          %432 = sbr.rel (%p430) target = $region20
        $region19: #{token_refiner_block.1} parent=11 // pred_region
          _
        $region20: #{token_refiner_block.1} parent=11 // pred_fallthru
          _
        // Predicated region
        $region21: #{token_refiner_block.1} parent=11 // pred_check
          %p433 = pneg %p197
        $region22: #{token_refiner_block.1} parent=11 // pred_check_branch
          %435 = sbr.rel (%p433) target = $region24
        $region23: #{token_refiner_block.1} parent=11 // pred_region
          %437 = vsyncadd [#allocation7], 0
          %s438 = sshll.u32 %s6, 4
          %s439 = int_to_ptr.hbm [resolvable:$true] %s438
          %s440 = sshll.u32 [#allocation6], 4
          %s441 = int_to_ptr.vmem [resolvable:$true] %s440
          %446 = dma.hbm_to_vmem [thread:$0]  %s439, 3072, %s441, [#allocation7], 192, 192, 12
        $region24: #{token_refiner_block.1} parent=11 // pred_fallthru
          _
        // Predicated region
        $region25: #{token_refiner_block.1} parent=11 // pred_check
          %p447 = pneg %p218
        $region26: #{token_refiner_block.1} parent=11 // pred_check_branch
          %449 = sbr.rel (%p447) target = $region28
        $region27: #{token_refiner_block.1} parent=11 // pred_region
          _
        $region28: #{token_refiner_block.1} parent=11 // pred_fallthru
          _
        // Predicated region
        $region29: #{token_refiner_block.1} parent=11 // pred_check
          %p450 = pneg %p239
        $region30: #{token_refiner_block.1} parent=11 // pred_check_branch
          %452 = sbr.rel (%p450) target = $region32
        $region31: #{token_refiner_block.1} parent=11 // pred_region
          %454 = vsyncadd [#allocation7], 0
          %s455 = sshll.u32 %s8, 4
          %s456 = int_to_ptr.hbm [resolvable:$true] %s455
          %s457 = sshll.u32 [#allocation8], 4
          %s458 = int_to_ptr.vmem [resolvable:$true] %s457
          %463 = dma.hbm_to_vmem [thread:$0]  %s456, 1024, %s458, [#allocation7], 64, 64, 4
        $region32: #{token_refiner_block.1} parent=11 // pred_fallthru
          _
        // Predicated region
        $region33: #{token_refiner_block.1} parent=11 // pred_check
          %p464 = pneg %p260
        $region34: #{token_refiner_block.1} parent=11 // pred_check_branch
          %466 = sbr.rel (%p464) target = $region36
        $region35: #{token_refiner_block.1} parent=11 // pred_region
          _
        $region36: #{token_refiner_block.1} parent=11 // pred_fallthru
          _
        // Predicated region
        $region37: #{token_refiner_block.1} parent=11 // pred_check
          %p467 = pneg %p281
        $region38: #{token_refiner_block.1} parent=11 // pred_check_branch
          %469 = sbr.rel (%p467) target = $region40
        $region39: #{token_refiner_block.1} parent=11 // pred_region
          _
        $region40: #{token_refiner_block.1} parent=11 // pred_fallthru
          _
        // Predicated region
        $region41: #{token_refiner_block.1} parent=11 // pred_check
          %p470 = pneg %p302
        $region42: #{token_refiner_block.1} parent=11 // pred_check_branch
          %472 = sbr.rel (%p470) target = $region44
        $region43: #{token_refiner_block.1} parent=11 // pred_region
          _
        $region44: #{token_refiner_block.1} parent=11 // pred_fallthru
          _
        // Predicated region
        $region45: #{token_refiner_block.1} parent=11 // pred_check
          %p473 = pneg %p323
        $region46: #{token_refiner_block.1} parent=11 // pred_check_branch
          %475 = sbr.rel (%p473) target = $region48
        $region47: #{token_refiner_block.1} parent=11 // pred_region
          _
        $region48: #{token_refiner_block.1} parent=11 // pred_fallthru
          _
        // Predicated region
        $region49: #{token_refiner_block.1} parent=11 // pred_check
          %p476 = pneg %p344
        $region50: #{token_refiner_block.1} parent=11 // pred_check_branch
          %478 = sbr.rel (%p476) target = $region52
        $region51: #{token_refiner_block.1} parent=11 // pred_region
          _
        $region52: #{token_refiner_block.1} parent=11 // pred_fallthru
          _
        // Predicated region
        $region53: #{token_refiner_block.1} parent=11 // pred_check
          %p479 = pneg %p365
        $region54: #{token_refiner_block.1} parent=11 // pred_check_branch
          %481 = sbr.rel (%p479) target = $region56
        $region55: #{token_refiner_block.1} parent=11 // pred_region
          %483 = vsyncadd [#allocation10], 0
          %s484 = sshll.u32 %s14, 4
          %s485 = int_to_ptr.hbm [resolvable:$true] %s484
          %s486 = sshll.u32 [#allocation9], 4
          %s487 = int_to_ptr.vmem [resolvable:$true] %s486
          %492 = dma.hbm_to_vmem [thread:$0]  %s485, 4096, %s487, [#allocation10], 64, 64, 4
        $region56: #{token_refiner_block.1} parent=11 // pred_fallthru
          _
        // Predicated region
        $region57: #{token_refiner_block.1} parent=11 // pred_check
          %p493 = pneg %p386
        $region58: #{token_refiner_block.1} parent=11 // pred_check_branch
          %495 = sbr.rel (%p493) target = $region60
        $region59: #{token_refiner_block.1} parent=11 // pred_region
          _
        $region60: #{token_refiner_block.1} parent=11 // pred_fallthru
          _
      $region12: #{token_refiner_block.1} parent=5 // pred_fallthru
        _
      %p496 = scmp.lt.s32.totalorder %s30, 2
      // Predicated region
      $region61: #{token_refiner_block.1} parent=5 // pred_check
        %p497 = pneg %p496
      $region62: #{token_refiner_block.1} parent=5 // pred_check_branch
        %499 = sbr.rel (%p497) target = $region64
      $region63: #{token_refiner_block.1} parent=5 // pred_region
        // Predicated region
        $region65: #{token_refiner_block.1} parent=63 // pred_check
          %p500 = pneg %p50
        $region66: #{token_refiner_block.1} parent=63 // pred_check_branch
          %502 = sbr.rel (%p500) target = $region68
        $region67: #{token_refiner_block.1} parent=63 // pred_region
          %s503 = sand.u32 %s40, 1
          %s504 = scalar_lea.sflag [#allocation4], %s503
          %s505 = sand.u32 %s40, 1
          %s506 = smul.addr %s505, 64
          %s507 = scalar_lea.vmem [#allocation3], %s506
          %509 = vsyncadd %s504, 0
          %s510 = smul.addr %s30, 8
          %s511 = smul.addr %s510, 8
          %s512 = scalar_lea.hbm %s0, %s511
          %s513 = sshll.u32 %s512, 4
          %s514 = int_to_ptr.hbm [resolvable:$true] %s513
          %s515 = sshll.u32 %s507, 4
          %s516 = int_to_ptr.vmem [resolvable:$true] %s515
          %521 = dma.hbm_to_vmem [thread:$0]  %s514, 1024, %s516, %s504, 128, 128, 8
        $region68: #{token_refiner_block.1} parent=63 // pred_fallthru
          _
        // Predicated region
        $region69: #{token_refiner_block.1} parent=63 // pred_check
          %p522 = pneg %p76
        $region70: #{token_refiner_block.1} parent=63 // pred_check_branch
          %524 = sbr.rel (%p522) target = $region72
        $region71: #{token_refiner_block.1} parent=63 // pred_region
          %p525 = scmp.lt.s32.totalorder %s30, 1
          %s526 = scalar_select %p525, %s30, 1
          %s527 = scalar_lea.vmem %s1, %s526
        $region72: #{token_refiner_block.1} parent=63 // pred_fallthru
          _
        // Predicated region
        $region73: #{token_refiner_block.1} parent=63 // pred_check
          %p528 = pneg %p102
        $region74: #{token_refiner_block.1} parent=63 // pred_check_branch
          %530 = sbr.rel (%p528) target = $region76
        $region75: #{token_refiner_block.1} parent=63 // pred_region
          %p531 = scmp.lt.s32.totalorder %s30, 1
          %s532 = scalar_select %p531, %s30, 1
          %s533 = scalar_lea.vmem %s2, %s532
        $region76: #{token_refiner_block.1} parent=63 // pred_fallthru
          _
        // Predicated region
        $region77: #{token_refiner_block.1} parent=63 // pred_check
          %p534 = pneg %p128
        $region78: #{token_refiner_block.1} parent=63 // pred_check_branch
          %536 = sbr.rel (%p534) target = $region80
        $region79: #{token_refiner_block.1} parent=63 // pred_region
          %p537 = scmp.lt.s32.totalorder %s30, 1
          %s538 = scalar_select %p537, %s30, 1
          %s539 = scalar_lea.vmem %s3, %s538
        $region80: #{token_refiner_block.1} parent=63 // pred_fallthru
          _
      $region64: #{token_refiner_block.1} parent=5 // pred_fallthru
        _
      %p540 = scmp.le.s32.totalorder 1, %s30
      %p541 = scmp.lt.s32.totalorder %s30, 3
      %p542 = pnand %p540, %p541
      %p543 = pneg %p542
      // Predicated region
      $region81: #{token_refiner_block.1} parent=5 // pred_check
        _
      $region82: #{token_refiner_block.1} parent=5 // pred_check_branch
        %545 = sbr.rel (%p542) target = $region84
      $region83: #{token_refiner_block.1} parent=5 // pred_region
        %s546 = ssub.s32 %s30, 1
        %s547 = sand.u32 %s43, 1
        %s548 = scalar_lea.sflag [#allocation4], %s547
        %s549 = sand.u32 %s43, 1
        %s550 = smul.addr %s549, 64
        %s551 = scalar_lea.vmem [#allocation3], %s550
        // Predicated region
        $region85: #{token_refiner_block.1} parent=83 // pred_check
          %p552 = pneg %p56
        $region86: #{token_refiner_block.1} parent=83 // pred_check_branch
          %554 = sbr.rel (%p552) target = $region88
        $region87: #{token_refiner_block.1} parent=83 // pred_region
          %556 = dma.done %s548, 1024
        $region88: #{token_refiner_block.1} parent=83 // pred_fallthru
          _
        // Predicated region
        $region89: #{token_refiner_block.1} parent=83 // pred_check
          %p557 = pneg %p197
        $region90: #{token_refiner_block.1} parent=83 // pred_check_branch
          %559 = sbr.rel (%p557) target = $region92
        $region91: #{token_refiner_block.1} parent=83 // pred_region
          %561 = dma.done [#allocation7], 3072
        $region92: #{token_refiner_block.1} parent=83 // pred_fallthru
          _
        // Predicated region
        $region93: #{token_refiner_block.1} parent=83 // pred_check
          %p562 = pneg %p239
        $region94: #{token_refiner_block.1} parent=83 // pred_check_branch
          %564 = sbr.rel (%p562) target = $region96
        $region95: #{token_refiner_block.1} parent=83 // pred_region
          %566 = dma.done [#allocation7], 1024
        $region96: #{token_refiner_block.1} parent=83 // pred_fallthru
          _
        // Predicated region
        $region97: #{token_refiner_block.1} parent=83 // pred_check
          %p567 = pneg %p365
        $region98: #{token_refiner_block.1} parent=83 // pred_check_branch
          %569 = sbr.rel (%p567) target = $region100
        $region99: #{token_refiner_block.1} parent=83 // pred_region
          %571 = dma.done [#allocation10], 4096
        $region100: #{token_refiner_block.1} parent=83 // pred_fallthru
          _
        %s572 = sand.u32 %s43, 1
        %s573 = scalar_lea.sflag [#allocation4], %s572
        %s574 = sand.u32 %s43, 1
        %s575 = smul.addr %s574, 64
        %s576 = scalar_lea.vmem [#allocation3], %s575
        %p577 = pneg %p56
        %p578 = pneg %p53
        %p579 = scmp.lt.s32.totalorder %s35, 1
        %s580 = scalar_select %p579, %s35, 1
        %s581 = scalar_lea.vmem %s1, %s580
        %p582 = pneg %p82
        %p583 = pneg %p79
        %p584 = scmp.lt.s32.totalorder %s35, 1
        %s585 = scalar_select %p584, %s35, 1
        %s586 = scalar_lea.vmem %s2, %s585
        %p587 = pneg %p108
        %p588 = pneg %p105
        %p589 = scmp.lt.s32.totalorder %s35, 1
        %s590 = scalar_select %p589, %s35, 1
        %s591 = scalar_lea.vmem %s3, %s590
        %p592 = pneg %p134
        %p593 = pneg %p131
        %p594 = pneg %p155
        %p595 = pneg %p152
        %p596 = pneg %p176
        %p597 = pneg %p173
        %p598 = pneg %p197
        %p599 = pneg %p194
        %p600 = pneg %p218
        %p601 = pneg %p215
        %p602 = pneg %p239
        %p603 = pneg %p236
        %p604 = pneg %p260
        %p605 = pneg %p257
        %p606 = pneg %p281
        %p607 = pneg %p278
        %p608 = pneg %p302
        %p609 = pneg %p299
        %p610 = pneg %p323
        %p611 = pneg %p320
        %p612 = pneg %p344
        %p613 = pneg %p341
        %p614 = pneg %p365
        %p615 = pneg %p362
        %p616 = pneg %p386
        %p617 = pneg %p383
        %p618 = pneg %p412
        %p619 = pneg %p409
        %s620 = sand.u32 %s399, 1
        %s621 = scalar_lea.sflag [#allocation5], %s620
        %s622 = sand.u32 %s399, 1
        %s623 = smul.addr %s622, 64
        %s624 = scalar_lea.vmem [#allocation11], %s623
        %p625 = scmp.lt.s32.totalorder %s35, 1
        %s626 = scalar_select %p625, %s35, 1
        %s627 = scalar_lea.vmem %s1, %s626
        %p628 = scmp.lt.s32.totalorder %s35, 1
        %s629 = scalar_select %p628, %s35, 1
        %s630 = scalar_lea.vmem %s2, %s629
        %p631 = scmp.lt.s32.totalorder %s35, 1
        %s632 = scalar_select %p631, %s35, 1
        %s633 = scalar_lea.vmem %s3, %s632
        %v635 = vld [vmem:[%s551] sm:$0xff]
        %v636 = vld [vmem:[%s551 + $0x8] sm:$0xff]
        %v637 = vld [vmem:[%s551 + $0x10] sm:$0xff]
        %v638 = vld [vmem:[%s551 + $0x18] sm:$0xff]
        %v639 = vld [vmem:[%s551 + $0x20] sm:$0xff]
        %v640 = vld [vmem:[%s551 + $0x28] sm:$0xff]
        %v641 = vld [vmem:[%s551 + $0x30] sm:$0xff]
        %v642 = vld [vmem:[%s551 + $0x38] sm:$0xff]
        %v643 = vld [vmem:[%s633] sm:$0x1]
        %v644 = vld [vmem:[%s627] sm:$0x1]
        %v645 = vld [vmem:[%s630] sm:$0x1]
        %v646 = vld [vmem:[%s4] sm:$0x1]
        %v647 = vld [vmem:[%s5] sm:$0x1]
        %648 = vadd.xlane.f32.xlu0 %v635
        %v649 = vpop.xlane.xlu0 %648
        %650 = vadd.xlane.f32.xlu0 %v636
        %v651 = vpop.xlane.xlu0 %650
        %652 = vadd.xlane.f32.xlu0 %v637
        %v653 = vpop.xlane.xlu0 %652
        %654 = vadd.xlane.f32.xlu0 %v638
        %v655 = vpop.xlane.xlu0 %654
        %656 = vadd.xlane.f32.xlu0 %v639
        %v657 = vpop.xlane.xlu0 %656
        %658 = vadd.xlane.f32.xlu0 %v640
        %v659 = vpop.xlane.xlu0 %658
        %660 = vadd.xlane.f32.xlu0 %v641
        %v661 = vpop.xlane.xlu0 %660
        %662 = vadd.xlane.f32.xlu0 %v642
        %v663 = vpop.xlane.xlu0 %662
        %v664 = vrcp.pop 128.0
        %v665 = vmul.f32 128.0, %v664
        %v666 = vsub.f32 1.0, %v665
        %v667 = vmul.f32 %v664, %v666
        %v668 = vadd.f32 %v664, %v667
        %vm669 = vweird.f32 %v664
        %v670 = vsel %vm669, %v664, %v668
        %v671 = vmul.f32 %v649, %v670
        %v672 = vmul.f32 %v651, %v670
        %v673 = vmul.f32 %v653, %v670
        %v674 = vmul.f32 %v655, %v670
        %v675 = vmul.f32 %v657, %v670
        %v676 = vmul.f32 %v659, %v670
        %v677 = vmul.f32 %v661, %v670
        %v678 = vmul.f32 %v663, %v670
        %v679 = vsub.f32 %v635, %v671
        %v680 = vsub.f32 %v636, %v672
        %v681 = vsub.f32 %v637, %v673
        %v682 = vsub.f32 %v638, %v674
        %v683 = vsub.f32 %v639, %v675
        %v684 = vsub.f32 %v640, %v676
        %v685 = vsub.f32 %v641, %v677
        %v686 = vsub.f32 %v642, %v678
        %v687 = vmul.f32 %v679, %v679
        %v688 = vmul.f32 %v680, %v680
        %v689 = vmul.f32 %v681, %v681
        %v690 = vmul.f32 %v682, %v682
        %v691 = vmul.f32 %v683, %v683
        %v692 = vmul.f32 %v684, %v684
        %v693 = vmul.f32 %v685, %v685
        %v694 = vmul.f32 %v686, %v686
        %695 = vadd.xlane.f32.xlu0 %v687
        %v696 = vpop.xlane.xlu0 %695
        %697 = vadd.xlane.f32.xlu0 %v688
        %v698 = vpop.xlane.xlu0 %697
        %699 = vadd.xlane.f32.xlu0 %v689
        %v700 = vpop.xlane.xlu0 %699
        %701 = vadd.xlane.f32.xlu0 %v690
        %v702 = vpop.xlane.xlu0 %701
        %703 = vadd.xlane.f32.xlu0 %v691
        %v704 = vpop.xlane.xlu0 %703
        %705 = vadd.xlane.f32.xlu0 %v692
        %v706 = vpop.xlane.xlu0 %705
        %707 = vadd.xlane.f32.xlu0 %v693
        %v708 = vpop.xlane.xlu0 %707
        %709 = vadd.xlane.f32.xlu0 %v694
        %v710 = vpop.xlane.xlu0 %709
        %v711 = vmul.f32 %v696, %v670
        %v712 = vmul.f32 %v698, %v670
        %v713 = vmul.f32 %v700, %v670
        %v714 = vmul.f32 %v702, %v670
        %v715 = vmul.f32 %v704, %v670
        %v716 = vmul.f32 %v706, %v670
        %v717 = vmul.f32 %v708, %v670
        %v718 = vmul.f32 %v710, %v670
        %v719 = vadd.f32 %v711, 1e-06
        %v720 = vadd.f32 %v712, 1e-06
        %v721 = vadd.f32 %v713, 1e-06
        %v722 = vadd.f32 %v714, 1e-06
        %v723 = vadd.f32 %v715, 1e-06
        %v724 = vadd.f32 %v716, 1e-06
        %v725 = vadd.f32 %v717, 1e-06
        %v726 = vadd.f32 %v718, 1e-06
        %v727 = vrsqrt.pop %v719
        %v728 = vmul.f32 %v727, %v719
        %v729 = vmul.f32 %v728, %v727
        %v730 = vmul.f32 0.5, %v729
        %v731 = vsub.f32 1.5, %v730
        %v732 = vmul.f32 %v727, %v731
        %vm733 = vweird.f32 %v719
        %vm734 = vweird.f32 %v727
        %vm735 = vmor %vm733, %vm734
        %v736 = vsel %vm735, %v727, %v732
        %v737 = vrsqrt.pop %v720
        %v738 = vmul.f32 %v737, %v720
        %v739 = vmul.f32 %v738, %v737
        %v740 = vmul.f32 0.5, %v739
        %v741 = vsub.f32 1.5, %v740
        %v742 = vmul.f32 %v737, %v741
        %vm743 = vweird.f32 %v720
        %vm744 = vweird.f32 %v737
        %vm745 = vmor %vm743, %vm744
        %v746 = vsel %vm745, %v737, %v742
        %v747 = vrsqrt.pop %v721
        %v748 = vmul.f32 %v747, %v721
        %v749 = vmul.f32 %v748, %v747
        %v750 = vmul.f32 0.5, %v749
        %v751 = vsub.f32 1.5, %v750
        %v752 = vmul.f32 %v747, %v751
        %vm753 = vweird.f32 %v721
        %vm754 = vweird.f32 %v747
        %vm755 = vmor %vm753, %vm754
        %v756 = vsel %vm755, %v747, %v752
        %v757 = vrsqrt.pop %v722
        %v758 = vmul.f32 %v757, %v722
        %v759 = vmul.f32 %v758, %v757
        %v760 = vmul.f32 0.5, %v759
        %v761 = vsub.f32 1.5, %v760
        %v762 = vmul.f32 %v757, %v761
        %vm763 = vweird.f32 %v722
        %vm764 = vweird.f32 %v757
        %vm765 = vmor %vm763, %vm764
        %v766 = vsel %vm765, %v757, %v762
        %v767 = vrsqrt.pop %v723
        %v768 = vmul.f32 %v767, %v723
        %v769 = vmul.f32 %v768, %v767
        %v770 = vmul.f32 0.5, %v769
        %v771 = vsub.f32 1.5, %v770
        %v772 = vmul.f32 %v767, %v771
        %vm773 = vweird.f32 %v723
        %vm774 = vweird.f32 %v767
        %vm775 = vmor %vm773, %vm774
        %v776 = vsel %vm775, %v767, %v772
        %v777 = vrsqrt.pop %v724
        %v778 = vmul.f32 %v777, %v724
        %v779 = vmul.f32 %v778, %v777
        %v780 = vmul.f32 0.5, %v779
        %v781 = vsub.f32 1.5, %v780
        %v782 = vmul.f32 %v777, %v781
        %vm783 = vweird.f32 %v724
        %vm784 = vweird.f32 %v777
        %vm785 = vmor %vm783, %vm784
        %v786 = vsel %vm785, %v777, %v782
        %v787 = vrsqrt.pop %v725
        %v788 = vmul.f32 %v787, %v725
        %v789 = vmul.f32 %v788, %v787
        %v790 = vmul.f32 0.5, %v789
        %v791 = vsub.f32 1.5, %v790
        %v792 = vmul.f32 %v787, %v791
        %vm793 = vweird.f32 %v725
        %vm794 = vweird.f32 %v787
        %vm795 = vmor %vm793, %vm794
        %v796 = vsel %vm795, %v787, %v792
        %v797 = vrsqrt.pop %v726
        %v798 = vmul.f32 %v797, %v726
        %v799 = vmul.f32 %v798, %v797
        %v800 = vmul.f32 0.5, %v799
        %v801 = vsub.f32 1.5, %v800
        %v802 = vmul.f32 %v797, %v801
        %vm803 = vweird.f32 %v726
        %vm804 = vweird.f32 %v797
        %vm805 = vmor %vm803, %vm804
        %v806 = vsel %vm805, %v797, %v802
        %v807 = vmul.f32 %v679, %v736
        %v808 = vmul.f32 %v680, %v746
        %v809 = vmul.f32 %v681, %v756
        %v810 = vmul.f32 %v682, %v766
        %v811 = vmul.f32 %v683, %v776
        %v812 = vmul.f32 %v684, %v786
        %v813 = vmul.f32 %v685, %v796
        %v814 = vmul.f32 %v686, %v806
        %v816 = vperm.slane %v646, 0
        %v818 = vmul.f32 %v807, %v816
        %v819 = vmul.f32 %v808, %v816
        %v820 = vmul.f32 %v809, %v816
        %v821 = vmul.f32 %v810, %v816
        %v822 = vmul.f32 %v811, %v816
        %v823 = vmul.f32 %v812, %v816
        %v824 = vmul.f32 %v813, %v816
        %v825 = vmul.f32 %v814, %v816
        %v827 = vperm.slane %v647, 0
        %v829 = vadd.f32 %v818, %v827
        %v830 = vadd.f32 %v819, %v827
        %v831 = vadd.f32 %v820, %v827
        %v832 = vadd.f32 %v821, %v827
        %v833 = vadd.f32 %v822, %v827
        %v834 = vadd.f32 %v823, %v827
        %v835 = vadd.f32 %v824, %v827
        %v836 = vadd.f32 %v825, %v827
        %v837 = vpack.c.bf16 %v830, %v829
        %v838 = vpack.c.bf16 %v832, %v831
        %v839 = vpack.c.bf16 %v834, %v833
        %v840 = vpack.c.bf16 %v836, %v835
        %v841 = vld [vmem:[#allocation6] sm:$0xff]
        %v842 = vld [vmem:[#allocation6 + $0x8] sm:$0xf]
        %v843 = vld [vmem:[#allocation6 + $0xc] sm:$0xff]
        %v844 = vld [vmem:[#allocation6 + $0x14] sm:$0xf]
        %v845 = vld [vmem:[#allocation6 + $0x18] sm:$0xff]
        %v846 = vld [vmem:[#allocation6 + $0x20] sm:$0xf]
        %v847 = vld [vmem:[#allocation6 + $0x24] sm:$0xff]
        %v848 = vld [vmem:[#allocation6 + $0x2c] sm:$0xf]
        %v849 = vld [vmem:[#allocation6 + $0x30] sm:$0xff]
        %v850 = vld [vmem:[#allocation6 + $0x38] sm:$0xf]
        %v851 = vld [vmem:[#allocation6 + $0x3c] sm:$0xff]
        %v852 = vld [vmem:[#allocation6 + $0x44] sm:$0xf]
        %v853 = vld [vmem:[#allocation6 + $0x48] sm:$0xff]
        %v854 = vld [vmem:[#allocation6 + $0x50] sm:$0xf]
        %v855 = vld [vmem:[#allocation6 + $0x54] sm:$0xff]
        %v856 = vld [vmem:[#allocation6 + $0x5c] sm:$0xf]
        %v857 = vld [vmem:[#allocation6 + $0x60] sm:$0xff]
        %v858 = vld [vmem:[#allocation6 + $0x68] sm:$0xf]
        %v859 = vld [vmem:[#allocation6 + $0x6c] sm:$0xff]
        %v860 = vld [vmem:[#allocation6 + $0x74] sm:$0xf]
        %v861 = vld [vmem:[#allocation6 + $0x78] sm:$0xff]
        %v862 = vld [vmem:[#allocation6 + $0x80] sm:$0xf]
        %v863 = vld [vmem:[#allocation6 + $0x84] sm:$0xff]
        %v864 = vld [vmem:[#allocation6 + $0x8c] sm:$0xf]
        %v865 = vld [vmem:[#allocation6 + $0x90] sm:$0xff]
        %v866 = vld [vmem:[#allocation6 + $0x98] sm:$0xf]
        %v867 = vld [vmem:[#allocation6 + $0x9c] sm:$0xff]
        %v868 = vld [vmem:[#allocation6 + $0xa4] sm:$0xf]
        %v869 = vld [vmem:[#allocation6 + $0xa8] sm:$0xff]
        %v870 = vld [vmem:[#allocation6 + $0xb0] sm:$0xf]
        %v871 = vld [vmem:[#allocation6 + $0xb4] sm:$0xff]
        %v872 = vld [vmem:[#allocation6 + $0xbc] sm:$0xf]
        %v873 = vld [vmem:[%s7] sm:$0x7]
        %v875 = vperm.slane %v873, 0
        %v876 = vperm.slane %v873, 1
        %v877 = vperm.slane %v873, 2
        %v913 = vunpack.c.l.b16 %v841
        %v914 = vunpack.c.h.b16 %v841
        %v915 = vunpack.c.l.b16 %v842
        %v916 = vunpack.c.l.b16 %v843
        %v917 = vunpack.c.h.b16 %v843
        %v918 = vunpack.c.l.b16 %v844
        %v919 = vunpack.c.l.b16 %v845
        %v920 = vunpack.c.h.b16 %v845
        %v921 = vunpack.c.l.b16 %v846
        %v922 = vunpack.c.l.b16 %v847
        %v923 = vunpack.c.h.b16 %v847
        %v924 = vunpack.c.l.b16 %v848
        %v925 = vunpack.c.l.b16 %v849
        %v926 = vunpack.c.h.b16 %v849
        %v927 = vunpack.c.l.b16 %v850
        %v928 = vunpack.c.l.b16 %v851
        %v929 = vunpack.c.h.b16 %v851
        %v930 = vunpack.c.l.b16 %v852
        %v931 = vunpack.c.l.b16 %v853
        %v932 = vunpack.c.h.b16 %v853
        %v933 = vunpack.c.l.b16 %v854
        %v934 = vunpack.c.l.b16 %v855
        %v935 = vunpack.c.h.b16 %v855
        %v936 = vunpack.c.l.b16 %v856
        %v937 = vunpack.c.l.b16 %v857
        %v938 = vunpack.c.h.b16 %v857
        %v939 = vunpack.c.l.b16 %v858
        %v940 = vunpack.c.l.b16 %v859
        %v941 = vunpack.c.h.b16 %v859
        %v942 = vunpack.c.l.b16 %v860
        %v943 = vunpack.c.l.b16 %v861
        %v944 = vunpack.c.h.b16 %v861
        %v945 = vunpack.c.l.b16 %v862
        %v946 = vunpack.c.l.b16 %v863
        %v947 = vunpack.c.h.b16 %v863
        %v948 = vunpack.c.l.b16 %v864
        %v949 = vunpack.c.l.b16 %v865
        %v950 = vunpack.c.h.b16 %v865
        %v951 = vunpack.c.l.b16 %v866
        %v952 = vunpack.c.l.b16 %v867
        %v953 = vunpack.c.h.b16 %v867
        %v954 = vunpack.c.l.b16 %v868
        %v955 = vunpack.c.l.b16 %v869
        %v956 = vunpack.c.h.b16 %v869
        %v957 = vunpack.c.l.b16 %v870
        %v958 = vunpack.c.l.b16 %v871
        %v959 = vunpack.c.h.b16 %v871
        %v960 = vunpack.c.l.b16 %v872
        %v961 = vpack.c.b16 %v916, %v913
        %v962 = vpack.c.b16 %v917, %v914
        %v963 = vpack.c.b16 %v918, %v915
        %v964 = vpack.c.b16 %v922, %v919
        %v965 = vpack.c.b16 %v923, %v920
        %v966 = vpack.c.b16 %v924, %v921
        %v967 = vpack.c.b16 %v928, %v925
        %v968 = vpack.c.b16 %v929, %v926
        %v969 = vpack.c.b16 %v930, %v927
        %v970 = vpack.c.b16 %v934, %v931
        %v971 = vpack.c.b16 %v935, %v932
        %v972 = vpack.c.b16 %v936, %v933
        %v973 = vpack.c.b16 %v940, %v937
        %v974 = vpack.c.b16 %v941, %v938
        %v975 = vpack.c.b16 %v942, %v939
        %v976 = vpack.c.b16 %v946, %v943
        %v977 = vpack.c.b16 %v947, %v944
        %v978 = vpack.c.b16 %v948, %v945
        %v979 = vpack.c.b16 %v952, %v949
        %v980 = vpack.c.b16 %v953, %v950
        %v981 = vpack.c.b16 %v954, %v951
        %v982 = vpack.c.b16 %v958, %v955
        %v983 = vpack.c.b16 %v959, %v956
        %v984 = vpack.c.b16 %v960, %v957
        %1009 = vmatpush.bf16.msra.mxu0 %v982
        %1010 = vmatpush.bf16.msra.mxu0 %v979
        %1011 = vmatpush.bf16.msra.mxu0 %v976
        %1012 = vmatpush.bf16.msra.mxu0 %v973
        %1013 = vmatpush.bf16.msra.mxu0 %v970
        %1014 = vmatpush.bf16.msra.mxu0 %v967
        %1015 = vmatpush.bf16.msra.mxu0 %v964
        %1016 = vmatpush.bf16.msra.mxu0 %v961
        %1017 = vmatmul.bf16.gmra.mxu0 %v837
        %v1018 = vpop.f32.mrf.mxu0
        %v1019 = vadd.f32 %v875, %v1018
        %v1020 = vpop.f32.mrf.mxu0
        %v1021 = vadd.f32 %v875, %v1020
        %1022 = vmatmul.bf16.gmra.mxu0 %v838
        %v1023 = vpop.f32.mrf.mxu0
        %v1024 = vadd.f32 %v875, %v1023
        %v1025 = vpop.f32.mrf.mxu0
        %v1026 = vadd.f32 %v875, %v1025
        %1027 = vmatmul.bf16.gmra.mxu0 %v839
        %v1028 = vpop.f32.mrf.mxu0
        %v1029 = vadd.f32 %v875, %v1028
        %v1030 = vpop.f32.mrf.mxu0
        %v1031 = vadd.f32 %v875, %v1030
        %1032 = vmatmul.bf16.gmra.mxu0 %v840
        %v1033 = vpop.f32.mrf.mxu0
        %v1034 = vadd.f32 %v875, %v1033
        %v1035 = vpop.f32.mrf.mxu0
        %v1036 = vadd.f32 %v875, %v1035
        %1037 = vdwg.mxu0
        %1038 = vmatpush.bf16.msra.mxu0 %v983
        %1039 = vmatpush.bf16.msra.mxu0 %v980
        %1040 = vmatpush.bf16.msra.mxu0 %v977
        %1041 = vmatpush.bf16.msra.mxu0 %v974
        %1042 = vmatpush.bf16.msra.mxu0 %v971
        %1043 = vmatpush.bf16.msra.mxu0 %v968
        %1044 = vmatpush.bf16.msra.mxu0 %v965
        %1045 = vmatpush.bf16.msra.mxu0 %v962
        %1046 = vmatmul.bf16.gmra.mxu0 %v837
        %v1047 = vpop.f32.mrf.mxu0
        %v1048 = vadd.f32 %v876, %v1047
        %v1049 = vpop.f32.mrf.mxu0
        %v1050 = vadd.f32 %v876, %v1049
        %1051 = vmatmul.bf16.gmra.mxu0 %v838
        %v1052 = vpop.f32.mrf.mxu0
        %v1053 = vadd.f32 %v876, %v1052
        %v1054 = vpop.f32.mrf.mxu0
        %v1055 = vadd.f32 %v876, %v1054
        %1056 = vmatmul.bf16.gmra.mxu0 %v839
        %v1057 = vpop.f32.mrf.mxu0
        %v1058 = vadd.f32 %v876, %v1057
        %v1059 = vpop.f32.mrf.mxu0
        %v1060 = vadd.f32 %v876, %v1059
        %1061 = vmatmul.bf16.gmra.mxu0 %v840
        %v1062 = vpop.f32.mrf.mxu0
        %v1063 = vadd.f32 %v876, %v1062
        %v1064 = vpop.f32.mrf.mxu0
        %v1065 = vadd.f32 %v876, %v1064
        %1066 = vdwg.mxu0
        %1067 = vmatpush.bf16.msra.mxu0 %v984
        %1068 = vmatpush.bf16.msra.mxu0 %v981
        %1069 = vmatpush.bf16.msra.mxu0 %v978
        %1070 = vmatpush.bf16.msra.mxu0 %v975
        %1071 = vmatpush.bf16.msra.mxu0 %v972
        %1072 = vmatpush.bf16.msra.mxu0 %v969
        %1073 = vmatpush.bf16.msra.mxu0 %v966
        %1074 = vmatpush.bf16.msra.mxu0 %v963
        %1075 = vmatmul.bf16.gmra.mxu0 %v837
        %v1076 = vpop.f32.mrf.mxu0
        %v1077 = vadd.f32 %v877, %v1076
        %v1078 = vpop.f32.mrf.mxu0
        %v1079 = vadd.f32 %v877, %v1078
        %1080 = vmatmul.bf16.gmra.mxu0 %v838
        %v1081 = vpop.f32.mrf.mxu0
        %v1082 = vadd.f32 %v877, %v1081
        %v1083 = vpop.f32.mrf.mxu0
        %v1084 = vadd.f32 %v877, %v1083
        %1085 = vmatmul.bf16.gmra.mxu0 %v839
        %v1086 = vpop.f32.mrf.mxu0
        %v1087 = vadd.f32 %v877, %v1086
        %v1088 = vpop.f32.mrf.mxu0
        %v1089 = vadd.f32 %v877, %v1088
        %1090 = vmatmul.bf16.gmra.mxu0 %v840
        %v1091 = vpop.f32.mrf.mxu0
        %v1092 = vadd.f32 %v877, %v1091
        %v1093 = vpop.f32.mrf.mxu0
        %v1094 = vadd.f32 %v877, %v1093
        %1095 = vdwg.mxu0
        %v1096 = vpack.c.bf16 %v1048, %v1019
        %v1097 = vpack.c.bf16 %v1077, %v1077
        %v1098 = vpack.c.bf16 %v1050, %v1021
        %v1099 = vpack.c.bf16 %v1079, %v1079
        %v1100 = vpack.c.bf16 %v1053, %v1024
        %v1101 = vpack.c.bf16 %v1082, %v1082
        %v1102 = vpack.c.bf16 %v1055, %v1026
        %v1103 = vpack.c.bf16 %v1084, %v1084
        %v1104 = vpack.c.bf16 %v1058, %v1029
        %v1105 = vpack.c.bf16 %v1087, %v1087
        %v1106 = vpack.c.bf16 %v1060, %v1031
        %v1107 = vpack.c.bf16 %v1089, %v1089
        %v1108 = vpack.c.bf16 %v1063, %v1034
        %v1109 = vpack.c.bf16 %v1092, %v1092
        %v1110 = vpack.c.bf16 %v1065, %v1036
        %v1111 = vpack.c.bf16 %v1094, %v1094
        %v1113 = vperm.slane %v643, 0
        %v1123 = vunpack.c.l.b16 %v1096
        %v1124 = vunpack.c.l.b16 %v1098
        %v1125 = vunpack.c.l.b16 %v1100
        %v1126 = vunpack.c.l.b16 %v1102
        %v1127 = vunpack.c.l.b16 %v1104
        %v1128 = vunpack.c.l.b16 %v1106
        %v1129 = vunpack.c.l.b16 %v1108
        %v1130 = vunpack.c.l.b16 %v1110
        %v1131 = vpack.c.b16 %v1124, %v1123
        %v1132 = vpack.c.b16 %v1126, %v1125
        %v1133 = vpack.c.b16 %v1128, %v1127
        %v1134 = vpack.c.b16 %v1130, %v1129
        %v1135 = vunpack.c.h.b16 %v1096
        %v1136 = vunpack.c.h.b16 %v1098
        %v1137 = vunpack.c.h.b16 %v1100
        %v1138 = vunpack.c.h.b16 %v1102
        %v1139 = vunpack.c.h.b16 %v1104
        %v1140 = vunpack.c.h.b16 %v1106
        %v1141 = vunpack.c.h.b16 %v1108
        %v1142 = vunpack.c.h.b16 %v1110
        %v1143 = vpack.c.b16 %v1136, %v1135
        %v1144 = vpack.c.b16 %v1138, %v1137
        %v1145 = vpack.c.b16 %v1140, %v1139
        %v1146 = vpack.c.b16 %v1142, %v1141
        %vm1147 = vcmask 261120
        %v1149 = vsel %vm1147, %v1131, 0
        %v1152 = vsel %vm1147, %v1132, 0
        %v1155 = vsel %vm1147, %v1133, 0
        %v1158 = vsel %vm1147, %v1134, 0
        %v1161 = vsel %vm1147, %v1143, 0
        %v1164 = vsel %vm1147, %v1144, 0
        %v1167 = vsel %vm1147, %v1145, 0
        %v1170 = vsel %vm1147, %v1146, 0
        %1172 = vmatpush.bf16.xpose.msra.mxu0 0
        %1173 = vmatpush.bf16.xpose.msra.mxu0 0
        %1174 = vmatpush.bf16.xpose.msra.mxu0 0
        %1175 = vmatpush.bf16.xpose.msra.mxu0 0
        %1176 = vmatpush.bf16.xpose.msra.mxu0 %v1170
        %1177 = vmatpush.bf16.xpose.msra.mxu0 %v1167
        %1178 = vmatpush.bf16.xpose.msra.mxu0 %v1164
        %1179 = vmatpush.bf16.xpose.msra.mxu0 %v1161
        %1180 = vmatmul.bf16.gmra.mxu0 %v1149
        %v1181 = vpop.f32.mrf.mxu0
        %v1182 = vadd.f32 %v1113, %v1181
        %v1183 = vpop.f32.mrf.mxu0
        %v1184 = vadd.f32 %v1113, %v1183
        %1185 = vmatmul.bf16.gmra.mxu0 %v1152
        %v1186 = vpop.f32.mrf.mxu0
        %v1187 = vadd.f32 %v1113, %v1186
        %v1188 = vpop.f32.mrf.mxu0
        %v1189 = vadd.f32 %v1113, %v1188
        %1190 = vmatmul.bf16.gmra.mxu0 %v1155
        %v1191 = vpop.f32.mrf.mxu0
        %v1192 = vadd.f32 %v1113, %v1191
        %v1193 = vpop.f32.mrf.mxu0
        %v1194 = vadd.f32 %v1113, %v1193
        %1195 = vmatmul.bf16.gmra.mxu0 %v1158
        %v1196 = vpop.f32.mrf.mxu0
        %v1197 = vadd.f32 %v1113, %v1196
        %v1198 = vpop.f32.mrf.mxu0
        %v1199 = vadd.f32 %v1113, %v1198
        %1200 = vdwg.mxu0
        %vm1201 = vcmask 523264
        %v1202 = vsel %vm1201, %v1182, -inf
        %1203 = vmax.xlane.f32.xlu0 %v1202
        %v1204 = vpop.xlane.xlu0 %1203
        %v1205 = vsel %vm1201, %v1184, -inf
        %1206 = vmax.xlane.f32.xlu0 %v1205
        %v1207 = vpop.xlane.xlu0 %1206
        %v1208 = vsel %vm1201, %v1187, -inf
        %1209 = vmax.xlane.f32.xlu0 %v1208
        %v1210 = vpop.xlane.xlu0 %1209
        %v1211 = vsel %vm1201, %v1189, -inf
        %1212 = vmax.xlane.f32.xlu0 %v1211
        %v1213 = vpop.xlane.xlu0 %1212
        %v1214 = vsel %vm1201, %v1192, -inf
        %1215 = vmax.xlane.f32.xlu0 %v1214
        %v1216 = vpop.xlane.xlu0 %1215
        %v1217 = vsel %vm1201, %v1194, -inf
        %1218 = vmax.xlane.f32.xlu0 %v1217
        %v1219 = vpop.xlane.xlu0 %1218
        %v1220 = vsel %vm1201, %v1197, -inf
        %1221 = vmax.xlane.f32.xlu0 %v1220
        %v1222 = vpop.xlane.xlu0 %1221
        %v1223 = vsel %vm1201, %v1199, -inf
        %1224 = vmax.xlane.f32.xlu0 %v1223
        %v1225 = vpop.xlane.xlu0 %1224
        %v1226 = vsub.f32 %v1182, %v1204
        %v1227 = vsub.f32 %v1184, %v1207
        %v1228 = vsub.f32 %v1187, %v1210
        %v1229 = vsub.f32 %v1189, %v1213
        %v1230 = vsub.f32 %v1192, %v1216
        %v1231 = vsub.f32 %v1194, %v1219
        %v1232 = vsub.f32 %v1197, %v1222
        %v1233 = vsub.f32 %v1199, %v1225
        %v1234 = vmul.f32 %v1226, 1.442695
        %v1235 = vpow.pop %v1234
        %v1236 = vmul.f32 %v1227, 1.442695
        %v1237 = vpow.pop %v1236
        %v1238 = vmul.f32 %v1228, 1.442695
        %v1239 = vpow.pop %v1238
        %v1240 = vmul.f32 %v1229, 1.442695
        %v1241 = vpow.pop %v1240
        %v1242 = vmul.f32 %v1230, 1.442695
        %v1243 = vpow.pop %v1242
        %v1244 = vmul.f32 %v1231, 1.442695
        %v1245 = vpow.pop %v1244
        %v1246 = vmul.f32 %v1232, 1.442695
        %v1247 = vpow.pop %v1246
        %v1248 = vmul.f32 %v1233, 1.442695
        %v1249 = vpow.pop %v1248
        %v1250 = vsel %vm1201, %v1235, 0.0
        %1251 = vadd.xlane.f32.xlu0 %v1250
        %v1252 = vpop.xlane.xlu0 %1251
        %v1253 = vsel %vm1201, %v1237, 0.0
        %1254 = vadd.xlane.f32.xlu0 %v1253
        %v1255 = vpop.xlane.xlu0 %1254
        %v1256 = vsel %vm1201, %v1239, 0.0
        %1257 = vadd.xlane.f32.xlu0 %v1256
        %v1258 = vpop.xlane.xlu0 %1257
        %v1259 = vsel %vm1201, %v1241, 0.0
        %1260 = vadd.xlane.f32.xlu0 %v1259
        %v1261 = vpop.xlane.xlu0 %1260
        %v1262 = vsel %vm1201, %v1243, 0.0
        %1263 = vadd.xlane.f32.xlu0 %v1262
        %v1264 = vpop.xlane.xlu0 %1263
        %v1265 = vsel %vm1201, %v1245, 0.0
        %1266 = vadd.xlane.f32.xlu0 %v1265
        %v1267 = vpop.xlane.xlu0 %1266
        %v1268 = vsel %vm1201, %v1247, 0.0
        %1269 = vadd.xlane.f32.xlu0 %v1268
        %v1270 = vpop.xlane.xlu0 %1269
        %v1271 = vsel %vm1201, %v1249, 0.0
        %1272 = vadd.xlane.f32.xlu0 %v1271
        %v1273 = vpop.xlane.xlu0 %1272
        %v1274 = vrcp.pop %v1252
        %v1275 = vrcp.pop %v1255
        %v1276 = vrcp.pop %v1258
        %v1277 = vrcp.pop %v1261
        %v1278 = vrcp.pop %v1264
        %v1279 = vrcp.pop %v1267
        %v1280 = vrcp.pop %v1270
        %v1281 = vrcp.pop %v1273
        %v1282 = vmul.f32 %v1235, %v1274
        %v1283 = vmul.f32 %v1237, %v1275
        %v1284 = vmul.f32 %v1239, %v1276
        %v1285 = vmul.f32 %v1241, %v1277
        %v1286 = vmul.f32 %v1243, %v1278
        %v1287 = vmul.f32 %v1245, %v1279
        %v1288 = vmul.f32 %v1247, %v1280
        %v1289 = vmul.f32 %v1249, %v1281
        %v1290 = vpack.c.bf16 %v1283, %v1282
        %v1291 = vpack.c.bf16 %v1285, %v1284
        %v1292 = vpack.c.bf16 %v1287, %v1286
        %v1293 = vpack.c.bf16 %v1289, %v1288
        %v1302 = vunpack.c.l.b16 %v1097
        %v1303 = vunpack.c.l.b16 %v1099
        %v1304 = vunpack.c.l.b16 %v1101
        %v1305 = vunpack.c.l.b16 %v1103
        %v1306 = vunpack.c.l.b16 %v1105
        %v1307 = vunpack.c.l.b16 %v1107
        %v1308 = vunpack.c.l.b16 %v1109
        %v1309 = vunpack.c.l.b16 %v1111
        %v1310 = vpack.c.b16 %v1303, %v1302
        %v1311 = vpack.c.b16 %v1305, %v1304
        %v1312 = vpack.c.b16 %v1307, %v1306
        %v1313 = vpack.c.b16 %v1309, %v1308
        %v1319 = vsel %vm1201, %v1290, 0
        %v1322 = vsel %vm1201, %v1291, 0
        %v1325 = vsel %vm1201, %v1292, 0
        %v1328 = vsel %vm1201, %v1293, 0
        %1330 = vmatpush.bf16.msra.mxu0 0
        %1331 = vmatpush.bf16.msra.mxu0 0
        %1332 = vmatpush.bf16.msra.mxu0 0
        %1333 = vmatpush.bf16.msra.mxu0 0
        %1334 = vmatpush.bf16.msra.mxu0 %v1313
        %1335 = vmatpush.bf16.msra.mxu0 %v1312
        %1336 = vmatpush.bf16.msra.mxu0 %v1311
        %1337 = vmatpush.bf16.msra.mxu0 %v1310
        %1338 = vmatmul.bf16.gmra.mxu0 %v1319
        %v1339 = vpop.f32.mrf.mxu0
        %v1340 = vadd.f32 0.0, %v1339
        %v1341 = vpop.f32.mrf.mxu0
        %v1342 = vadd.f32 0.0, %v1341
        %1343 = vmatmul.bf16.gmra.mxu0 %v1322
        %v1344 = vpop.f32.mrf.mxu0
        %v1345 = vadd.f32 0.0, %v1344
        %v1346 = vpop.f32.mrf.mxu0
        %v1347 = vadd.f32 0.0, %v1346
        %1348 = vmatmul.bf16.gmra.mxu0 %v1325
        %v1349 = vpop.f32.mrf.mxu0
        %v1350 = vadd.f32 0.0, %v1349
        %v1351 = vpop.f32.mrf.mxu0
        %v1352 = vadd.f32 0.0, %v1351
        %1353 = vmatmul.bf16.gmra.mxu0 %v1328
        %v1354 = vpop.f32.mrf.mxu0
        %v1355 = vadd.f32 0.0, %v1354
        %v1356 = vpop.f32.mrf.mxu0
        %v1357 = vadd.f32 0.0, %v1356
        %1358 = vdwg.mxu0
        %1359 = vst.msk [vmem:[#allocation2] sm:$0xff] %vm1147, %v1340
        %1360 = vst.msk [vmem:[#allocation2 + $0x8] sm:$0xff] %vm1147, %v1342
        %1361 = vst.msk [vmem:[#allocation2 + $0x10] sm:$0xff] %vm1147, %v1345
        %1362 = vst.msk [vmem:[#allocation2 + $0x18] sm:$0xff] %vm1147, %v1347
        %1363 = vst.msk [vmem:[#allocation2 + $0x20] sm:$0xff] %vm1147, %v1350
        %1364 = vst.msk [vmem:[#allocation2 + $0x28] sm:$0xff] %vm1147, %v1352
        %1365 = vst.msk [vmem:[#allocation2 + $0x30] sm:$0xff] %vm1147, %v1355
        %1366 = vst.msk [vmem:[#allocation2 + $0x38] sm:$0xff] %vm1147, %v1357
        %1367 = vrot.lane.b32.xlu0 %v1131, 96
        %v1368 = vpop.permute.xlu0 %1367
        %1369 = vrot.lane.b32.xlu0 %v1132, 96
        %v1370 = vpop.permute.xlu0 %1369
        %1371 = vrot.lane.b32.xlu0 %v1133, 96
        %v1372 = vpop.permute.xlu0 %1371
        %1373 = vrot.lane.b32.xlu0 %v1134, 96
        %v1374 = vpop.permute.xlu0 %1373
        %1375 = vrot.lane.b32.xlu0 %v1143, 96
        %v1376 = vpop.permute.xlu0 %1375
        %1377 = vrot.lane.b32.xlu0 %v1144, 96
        %v1378 = vpop.permute.xlu0 %1377
        %1379 = vrot.lane.b32.xlu0 %v1145, 96
        %v1380 = vpop.permute.xlu0 %1379
        %1381 = vrot.lane.b32.xlu0 %v1146, 96
        %v1382 = vpop.permute.xlu0 %1381
        %v1384 = vsel %vm1147, %v1368, 0
        %v1387 = vsel %vm1147, %v1370, 0
        %v1390 = vsel %vm1147, %v1372, 0
        %v1393 = vsel %vm1147, %v1374, 0
        %v1396 = vsel %vm1147, %v1376, 0
        %v1399 = vsel %vm1147, %v1378, 0
        %v1402 = vsel %vm1147, %v1380, 0
        %v1405 = vsel %vm1147, %v1382, 0
        %1407 = vmatpush.bf16.xpose.msra.mxu0 0
        %1408 = vmatpush.bf16.xpose.msra.mxu0 0
        %1409 = vmatpush.bf16.xpose.msra.mxu0 0
        %1410 = vmatpush.bf16.xpose.msra.mxu0 0
        %1411 = vmatpush.bf16.xpose.msra.mxu0 %v1405
        %1412 = vmatpush.bf16.xpose.msra.mxu0 %v1402
        %1413 = vmatpush.bf16.xpose.msra.mxu0 %v1399
        %1414 = vmatpush.bf16.xpose.msra.mxu0 %v1396
        %1415 = vmatmul.bf16.gmra.mxu0 %v1384
        %v1416 = vpop.f32.mrf.mxu0
        %v1417 = vadd.f32 %v1113, %v1416
        %v1418 = vpop.f32.mrf.mxu0
        %v1419 = vadd.f32 %v1113, %v1418
        %1420 = vmatmul.bf16.gmra.mxu0 %v1387
        %v1421 = vpop.f32.mrf.mxu0
        %v1422 = vadd.f32 %v1113, %v1421
        %v1423 = vpop.f32.mrf.mxu0
        %v1424 = vadd.f32 %v1113, %v1423
        %1425 = vmatmul.bf16.gmra.mxu0 %v1390
        %v1426 = vpop.f32.mrf.mxu0
        %v1427 = vadd.f32 %v1113, %v1426
        %v1428 = vpop.f32.mrf.mxu0
        %v1429 = vadd.f32 %v1113, %v1428
        %1430 = vmatmul.bf16.gmra.mxu0 %v1393
        %v1431 = vpop.f32.mrf.mxu0
        %v1432 = vadd.f32 %v1113, %v1431
        %v1433 = vpop.f32.mrf.mxu0
        %v1434 = vadd.f32 %v1113, %v1433
        %1435 = vdwg.mxu0
        %v1436 = vsel %vm1201, %v1417, -inf
        %1437 = vmax.xlane.f32.xlu0 %v1436
        %v1438 = vpop.xlane.xlu0 %1437
        %v1439 = vsel %vm1201, %v1419, -inf
        %1440 = vmax.xlane.f32.xlu0 %v1439
        %v1441 = vpop.xlane.xlu0 %1440
        %v1442 = vsel %vm1201, %v1422, -inf
        %1443 = vmax.xlane.f32.xlu0 %v1442
        %v1444 = vpop.xlane.xlu0 %1443
        %v1445 = vsel %vm1201, %v1424, -inf
        %1446 = vmax.xlane.f32.xlu0 %v1445
        %v1447 = vpop.xlane.xlu0 %1446
        %v1448 = vsel %vm1201, %v1427, -inf
        %1449 = vmax.xlane.f32.xlu0 %v1448
        %v1450 = vpop.xlane.xlu0 %1449
        %v1451 = vsel %vm1201, %v1429, -inf
        %1452 = vmax.xlane.f32.xlu0 %v1451
        %v1453 = vpop.xlane.xlu0 %1452
        %v1454 = vsel %vm1201, %v1432, -inf
        %1455 = vmax.xlane.f32.xlu0 %v1454
        %v1456 = vpop.xlane.xlu0 %1455
        %v1457 = vsel %vm1201, %v1434, -inf
        %1458 = vmax.xlane.f32.xlu0 %v1457
        %v1459 = vpop.xlane.xlu0 %1458
        %v1460 = vsub.f32 %v1417, %v1438
        %v1461 = vsub.f32 %v1419, %v1441
        %v1462 = vsub.f32 %v1422, %v1444
        %v1463 = vsub.f32 %v1424, %v1447
        %v1464 = vsub.f32 %v1427, %v1450
        %v1465 = vsub.f32 %v1429, %v1453
        %v1466 = vsub.f32 %v1432, %v1456
        %v1467 = vsub.f32 %v1434, %v1459
        %v1468 = vmul.f32 %v1460, 1.442695
        %v1469 = vpow.pop %v1468
        %v1470 = vmul.f32 %v1461, 1.442695
        %v1471 = vpow.pop %v1470
        %v1472 = vmul.f32 %v1462, 1.442695
        %v1473 = vpow.pop %v1472
        %v1474 = vmul.f32 %v1463, 1.442695
        %v1475 = vpow.pop %v1474
        %v1476 = vmul.f32 %v1464, 1.442695
        %v1477 = vpow.pop %v1476
        %v1478 = vmul.f32 %v1465, 1.442695
        %v1479 = vpow.pop %v1478
        %v1480 = vmul.f32 %v1466, 1.442695
        %v1481 = vpow.pop %v1480
        %v1482 = vmul.f32 %v1467, 1.442695
        %v1483 = vpow.pop %v1482
        %v1484 = vsel %vm1201, %v1469, 0.0
        %1485 = vadd.xlane.f32.xlu0 %v1484
        %v1486 = vpop.xlane.xlu0 %1485
        %v1487 = vsel %vm1201, %v1471, 0.0
        %1488 = vadd.xlane.f32.xlu0 %v1487
        %v1489 = vpop.xlane.xlu0 %1488
        %v1490 = vsel %vm1201, %v1473, 0.0
        %1491 = vadd.xlane.f32.xlu0 %v1490
        %v1492 = vpop.xlane.xlu0 %1491
        %v1493 = vsel %vm1201, %v1475, 0.0
        %1494 = vadd.xlane.f32.xlu0 %v1493
        %v1495 = vpop.xlane.xlu0 %1494
        %v1496 = vsel %vm1201, %v1477, 0.0
        %1497 = vadd.xlane.f32.xlu0 %v1496
        %v1498 = vpop.xlane.xlu0 %1497
        %v1499 = vsel %vm1201, %v1479, 0.0
        %1500 = vadd.xlane.f32.xlu0 %v1499
        %v1501 = vpop.xlane.xlu0 %1500
        %v1502 = vsel %vm1201, %v1481, 0.0
        %1503 = vadd.xlane.f32.xlu0 %v1502
        %v1504 = vpop.xlane.xlu0 %1503
        %v1505 = vsel %vm1201, %v1483, 0.0
        %1506 = vadd.xlane.f32.xlu0 %v1505
        %v1507 = vpop.xlane.xlu0 %1506
        %v1508 = vrcp.pop %v1486
        %v1509 = vrcp.pop %v1489
        %v1510 = vrcp.pop %v1492
        %v1511 = vrcp.pop %v1495
        %v1512 = vrcp.pop %v1498
        %v1513 = vrcp.pop %v1501
        %v1514 = vrcp.pop %v1504
        %v1515 = vrcp.pop %v1507
        %v1516 = vmul.f32 %v1469, %v1508
        %v1517 = vmul.f32 %v1471, %v1509
        %v1518 = vmul.f32 %v1473, %v1510
        %v1519 = vmul.f32 %v1475, %v1511
        %v1520 = vmul.f32 %v1477, %v1512
        %v1521 = vmul.f32 %v1479, %v1513
        %v1522 = vmul.f32 %v1481, %v1514
        %v1523 = vmul.f32 %v1483, %v1515
        %v1524 = vpack.c.bf16 %v1517, %v1516
        %v1525 = vpack.c.bf16 %v1519, %v1518
        %v1526 = vpack.c.bf16 %v1521, %v1520
        %v1527 = vpack.c.bf16 %v1523, %v1522
        %1528 = vrot.lane.b32.xlu0 %v1310, 96
        %v1529 = vpop.permute.xlu0 %1528
        %1530 = vrot.lane.b32.xlu0 %v1311, 96
        %v1531 = vpop.permute.xlu0 %1530
        %1532 = vrot.lane.b32.xlu0 %v1312, 96
        %v1533 = vpop.permute.xlu0 %1532
        %1534 = vrot.lane.b32.xlu0 %v1313, 96
        %v1535 = vpop.permute.xlu0 %1534
        %v1541 = vsel %vm1201, %v1524, 0
        %v1544 = vsel %vm1201, %v1525, 0
        %v1547 = vsel %vm1201, %v1526, 0
        %v1550 = vsel %vm1201, %v1527, 0
        %1552 = vmatpush.bf16.msra.mxu0 0
        %1553 = vmatpush.bf16.msra.mxu0 0
        %1554 = vmatpush.bf16.msra.mxu0 0
        %1555 = vmatpush.bf16.msra.mxu0 0
        %1556 = vmatpush.bf16.msra.mxu0 %v1535
        %1557 = vmatpush.bf16.msra.mxu0 %v1533
        %1558 = vmatpush.bf16.msra.mxu0 %v1531
        %1559 = vmatpush.bf16.msra.mxu0 %v1529
        %1560 = vmatmul.bf16.gmra.mxu0 %v1541
        %v1561 = vpop.f32.mrf.mxu0
        %v1562 = vadd.f32 0.0, %v1561
        %v1563 = vpop.f32.mrf.mxu0
        %v1564 = vadd.f32 0.0, %v1563
        %1565 = vmatmul.bf16.gmra.mxu0 %v1544
        %v1566 = vpop.f32.mrf.mxu0
        %v1567 = vadd.f32 0.0, %v1566
        %v1568 = vpop.f32.mrf.mxu0
        %v1569 = vadd.f32 0.0, %v1568
        %1570 = vmatmul.bf16.gmra.mxu0 %v1547
        %v1571 = vpop.f32.mrf.mxu0
        %v1572 = vadd.f32 0.0, %v1571
        %v1573 = vpop.f32.mrf.mxu0
        %v1574 = vadd.f32 0.0, %v1573
        %1575 = vmatmul.bf16.gmra.mxu0 %v1550
        %v1576 = vpop.f32.mrf.mxu0
        %v1577 = vadd.f32 0.0, %v1576
        %v1578 = vpop.f32.mrf.mxu0
        %v1579 = vadd.f32 0.0, %v1578
        %1580 = vdwg.mxu0
        %1589 = vrot.lane.b32.xlu0 %v1562, 32
        %v1590 = vpop.permute.xlu0 %1589
        %1591 = vrot.lane.b32.xlu0 %v1564, 32
        %v1592 = vpop.permute.xlu0 %1591
        %1593 = vrot.lane.b32.xlu0 %v1567, 32
        %v1594 = vpop.permute.xlu0 %1593
        %1595 = vrot.lane.b32.xlu0 %v1569, 32
        %v1596 = vpop.permute.xlu0 %1595
        %1597 = vrot.lane.b32.xlu0 %v1572, 32
        %v1598 = vpop.permute.xlu0 %1597
        %1599 = vrot.lane.b32.xlu0 %v1574, 32
        %v1600 = vpop.permute.xlu0 %1599
        %1601 = vrot.lane.b32.xlu0 %v1577, 32
        %v1602 = vpop.permute.xlu0 %1601
        %1603 = vrot.lane.b32.xlu0 %v1579, 32
        %v1604 = vpop.permute.xlu0 %1603
        %vm1613 = vcmask 523520
        %1614 = vst.msk [vmem:[#allocation2] sm:$0xff] %vm1613, %v1590
        %1615 = vst.msk [vmem:[#allocation2 + $0x8] sm:$0xff] %vm1613, %v1592
        %1616 = vst.msk [vmem:[#allocation2 + $0x10] sm:$0xff] %vm1613, %v1594
        %1617 = vst.msk [vmem:[#allocation2 + $0x18] sm:$0xff] %vm1613, %v1596
        %1618 = vst.msk [vmem:[#allocation2 + $0x20] sm:$0xff] %vm1613, %v1598
        %1619 = vst.msk [vmem:[#allocation2 + $0x28] sm:$0xff] %vm1613, %v1600
        %1620 = vst.msk [vmem:[#allocation2 + $0x30] sm:$0xff] %vm1613, %v1602
        %1621 = vst.msk [vmem:[#allocation2 + $0x38] sm:$0xff] %vm1613, %v1604
        %1622 = vrot.lane.b32.xlu0 %v1131, 64
        %v1623 = vpop.permute.xlu0 %1622
        %1624 = vrot.lane.b32.xlu0 %v1132, 64
        %v1625 = vpop.permute.xlu0 %1624
        %1626 = vrot.lane.b32.xlu0 %v1133, 64
        %v1627 = vpop.permute.xlu0 %1626
        %1628 = vrot.lane.b32.xlu0 %v1134, 64
        %v1629 = vpop.permute.xlu0 %1628
        %1630 = vrot.lane.b32.xlu0 %v1143, 64
        %v1631 = vpop.permute.xlu0 %1630
        %1632 = vrot.lane.b32.xlu0 %v1144, 64
        %v1633 = vpop.permute.xlu0 %1632
        %1634 = vrot.lane.b32.xlu0 %v1145, 64
        %v1635 = vpop.permute.xlu0 %1634
        %1636 = vrot.lane.b32.xlu0 %v1146, 64
        %v1637 = vpop.permute.xlu0 %1636
        %v1639 = vsel %vm1147, %v1623, 0
        %v1642 = vsel %vm1147, %v1625, 0
        %v1645 = vsel %vm1147, %v1627, 0
        %v1648 = vsel %vm1147, %v1629, 0
        %v1651 = vsel %vm1147, %v1631, 0
        %v1654 = vsel %vm1147, %v1633, 0
        %v1657 = vsel %vm1147, %v1635, 0
        %v1660 = vsel %vm1147, %v1637, 0
        %1662 = vmatpush.bf16.xpose.msra.mxu0 0
        %1663 = vmatpush.bf16.xpose.msra.mxu0 0
        %1664 = vmatpush.bf16.xpose.msra.mxu0 0
        %1665 = vmatpush.bf16.xpose.msra.mxu0 0
        %1666 = vmatpush.bf16.xpose.msra.mxu0 %v1660
        %1667 = vmatpush.bf16.xpose.msra.mxu0 %v1657
        %1668 = vmatpush.bf16.xpose.msra.mxu0 %v1654
        %1669 = vmatpush.bf16.xpose.msra.mxu0 %v1651
        %1670 = vmatmul.bf16.gmra.mxu0 %v1639
        %v1671 = vpop.f32.mrf.mxu0
        %v1672 = vadd.f32 %v1113, %v1671
        %v1673 = vpop.f32.mrf.mxu0
        %v1674 = vadd.f32 %v1113, %v1673
        %1675 = vmatmul.bf16.gmra.mxu0 %v1642
        %v1676 = vpop.f32.mrf.mxu0
        %v1677 = vadd.f32 %v1113, %v1676
        %v1678 = vpop.f32.mrf.mxu0
        %v1679 = vadd.f32 %v1113, %v1678
        %1680 = vmatmul.bf16.gmra.mxu0 %v1645
        %v1681 = vpop.f32.mrf.mxu0
        %v1682 = vadd.f32 %v1113, %v1681
        %v1683 = vpop.f32.mrf.mxu0
        %v1684 = vadd.f32 %v1113, %v1683
        %1685 = vmatmul.bf16.gmra.mxu0 %v1648
        %v1686 = vpop.f32.mrf.mxu0
        %v1687 = vadd.f32 %v1113, %v1686
        %v1688 = vpop.f32.mrf.mxu0
        %v1689 = vadd.f32 %v1113, %v1688
        %1690 = vdwg.mxu0
        %v1691 = vsel %vm1201, %v1672, -inf
        %1692 = vmax.xlane.f32.xlu0 %v1691
        %v1693 = vpop.xlane.xlu0 %1692
        %v1694 = vsel %vm1201, %v1674, -inf
        %1695 = vmax.xlane.f32.xlu0 %v1694
        %v1696 = vpop.xlane.xlu0 %1695
        %v1697 = vsel %vm1201, %v1677, -inf
        %1698 = vmax.xlane.f32.xlu0 %v1697
        %v1699 = vpop.xlane.xlu0 %1698
        %v1700 = vsel %vm1201, %v1679, -inf
        %1701 = vmax.xlane.f32.xlu0 %v1700
        %v1702 = vpop.xlane.xlu0 %1701
        %v1703 = vsel %vm1201, %v1682, -inf
        %1704 = vmax.xlane.f32.xlu0 %v1703
        %v1705 = vpop.xlane.xlu0 %1704
        %v1706 = vsel %vm1201, %v1684, -inf
        %1707 = vmax.xlane.f32.xlu0 %v1706
        %v1708 = vpop.xlane.xlu0 %1707
        %v1709 = vsel %vm1201, %v1687, -inf
        %1710 = vmax.xlane.f32.xlu0 %v1709
        %v1711 = vpop.xlane.xlu0 %1710
        %v1712 = vsel %vm1201, %v1689, -inf
        %1713 = vmax.xlane.f32.xlu0 %v1712
        %v1714 = vpop.xlane.xlu0 %1713
        %v1715 = vsub.f32 %v1672, %v1693
        %v1716 = vsub.f32 %v1674, %v1696
        %v1717 = vsub.f32 %v1677, %v1699
        %v1718 = vsub.f32 %v1679, %v1702
        %v1719 = vsub.f32 %v1682, %v1705
        %v1720 = vsub.f32 %v1684, %v1708
        %v1721 = vsub.f32 %v1687, %v1711
        %v1722 = vsub.f32 %v1689, %v1714
        %v1723 = vmul.f32 %v1715, 1.442695
        %v1724 = vpow.pop %v1723
        %v1725 = vmul.f32 %v1716, 1.442695
        %v1726 = vpow.pop %v1725
        %v1727 = vmul.f32 %v1717, 1.442695
        %v1728 = vpow.pop %v1727
        %v1729 = vmul.f32 %v1718, 1.442695
        %v1730 = vpow.pop %v1729
        %v1731 = vmul.f32 %v1719, 1.442695
        %v1732 = vpow.pop %v1731
        %v1733 = vmul.f32 %v1720, 1.442695
        %v1734 = vpow.pop %v1733
        %v1735 = vmul.f32 %v1721, 1.442695
        %v1736 = vpow.pop %v1735
        %v1737 = vmul.f32 %v1722, 1.442695
        %v1738 = vpow.pop %v1737
        %v1739 = vsel %vm1201, %v1724, 0.0
        %1740 = vadd.xlane.f32.xlu0 %v1739
        %v1741 = vpop.xlane.xlu0 %1740
        %v1742 = vsel %vm1201, %v1726, 0.0
        %1743 = vadd.xlane.f32.xlu0 %v1742
        %v1744 = vpop.xlane.xlu0 %1743
        %v1745 = vsel %vm1201, %v1728, 0.0
        %1746 = vadd.xlane.f32.xlu0 %v1745
        %v1747 = vpop.xlane.xlu0 %1746
        %v1748 = vsel %vm1201, %v1730, 0.0
        %1749 = vadd.xlane.f32.xlu0 %v1748
        %v1750 = vpop.xlane.xlu0 %1749
        %v1751 = vsel %vm1201, %v1732, 0.0
        %1752 = vadd.xlane.f32.xlu0 %v1751
        %v1753 = vpop.xlane.xlu0 %1752
        %v1754 = vsel %vm1201, %v1734, 0.0
        %1755 = vadd.xlane.f32.xlu0 %v1754
        %v1756 = vpop.xlane.xlu0 %1755
        %v1757 = vsel %vm1201, %v1736, 0.0
        %1758 = vadd.xlane.f32.xlu0 %v1757
        %v1759 = vpop.xlane.xlu0 %1758
        %v1760 = vsel %vm1201, %v1738, 0.0
        %1761 = vadd.xlane.f32.xlu0 %v1760
        %v1762 = vpop.xlane.xlu0 %1761
        %v1763 = vrcp.pop %v1741
        %v1764 = vrcp.pop %v1744
        %v1765 = vrcp.pop %v1747
        %v1766 = vrcp.pop %v1750
        %v1767 = vrcp.pop %v1753
        %v1768 = vrcp.pop %v1756
        %v1769 = vrcp.pop %v1759
        %v1770 = vrcp.pop %v1762
        %v1771 = vmul.f32 %v1724, %v1763
        %v1772 = vmul.f32 %v1726, %v1764
        %v1773 = vmul.f32 %v1728, %v1765
        %v1774 = vmul.f32 %v1730, %v1766
        %v1775 = vmul.f32 %v1732, %v1767
        %v1776 = vmul.f32 %v1734, %v1768
        %v1777 = vmul.f32 %v1736, %v1769
        %v1778 = vmul.f32 %v1738, %v1770
        %v1779 = vpack.c.bf16 %v1772, %v1771
        %v1780 = vpack.c.bf16 %v1774, %v1773
        %v1781 = vpack.c.bf16 %v1776, %v1775
        %v1782 = vpack.c.bf16 %v1778, %v1777
        %1783 = vrot.lane.b32.xlu0 %v1310, 64
        %v1784 = vpop.permute.xlu0 %1783
        %1785 = vrot.lane.b32.xlu0 %v1311, 64
        %v1786 = vpop.permute.xlu0 %1785
        %1787 = vrot.lane.b32.xlu0 %v1312, 64
        %v1788 = vpop.permute.xlu0 %1787
        %1789 = vrot.lane.b32.xlu0 %v1313, 64
        %v1790 = vpop.permute.xlu0 %1789
        %v1796 = vsel %vm1201, %v1779, 0
        %v1799 = vsel %vm1201, %v1780, 0
        %v1802 = vsel %vm1201, %v1781, 0
        %v1805 = vsel %vm1201, %v1782, 0
        %1807 = vmatpush.bf16.msra.mxu0 0
        %1808 = vmatpush.bf16.msra.mxu0 0
        %1809 = vmatpush.bf16.msra.mxu0 0
        %1810 = vmatpush.bf16.msra.mxu0 0
        %1811 = vmatpush.bf16.msra.mxu0 %v1790
        %1812 = vmatpush.bf16.msra.mxu0 %v1788
        %1813 = vmatpush.bf16.msra.mxu0 %v1786
        %1814 = vmatpush.bf16.msra.mxu0 %v1784
        %1815 = vmatmul.bf16.gmra.mxu0 %v1796
        %v1816 = vpop.f32.mrf.mxu0
        %v1817 = vadd.f32 0.0, %v1816
        %v1818 = vpop.f32.mrf.mxu0
        %v1819 = vadd.f32 0.0, %v1818
        %1820 = vmatmul.bf16.gmra.mxu0 %v1799
        %v1821 = vpop.f32.mrf.mxu0
        %v1822 = vadd.f32 0.0, %v1821
        %v1823 = vpop.f32.mrf.mxu0
        %v1824 = vadd.f32 0.0, %v1823
        %1825 = vmatmul.bf16.gmra.mxu0 %v1802
        %v1826 = vpop.f32.mrf.mxu0
        %v1827 = vadd.f32 0.0, %v1826
        %v1828 = vpop.f32.mrf.mxu0
        %v1829 = vadd.f32 0.0, %v1828
        %1830 = vmatmul.bf16.gmra.mxu0 %v1805
        %v1831 = vpop.f32.mrf.mxu0
        %v1832 = vadd.f32 0.0, %v1831
        %v1833 = vpop.f32.mrf.mxu0
        %v1834 = vadd.f32 0.0, %v1833
        %1835 = vdwg.mxu0
        %1844 = vrot.lane.b32.xlu0 %v1817, 64
        %v1845 = vpop.permute.xlu0 %1844
        %1846 = vrot.lane.b32.xlu0 %v1819, 64
        %v1847 = vpop.permute.xlu0 %1846
        %1848 = vrot.lane.b32.xlu0 %v1822, 64
        %v1849 = vpop.permute.xlu0 %1848
        %1850 = vrot.lane.b32.xlu0 %v1824, 64
        %v1851 = vpop.permute.xlu0 %1850
        %1852 = vrot.lane.b32.xlu0 %v1827, 64
        %v1853 = vpop.permute.xlu0 %1852
        %1854 = vrot.lane.b32.xlu0 %v1829, 64
        %v1855 = vpop.permute.xlu0 %1854
        %1856 = vrot.lane.b32.xlu0 %v1832, 64
        %v1857 = vpop.permute.xlu0 %1856
        %1858 = vrot.lane.b32.xlu0 %v1834, 64
        %v1859 = vpop.permute.xlu0 %1858
        %vm1868 = vcmask 785920
        %1869 = vst.msk [vmem:[#allocation2] sm:$0xff] %vm1868, %v1845
        %1870 = vst.msk [vmem:[#allocation2 + $0x8] sm:$0xff] %vm1868, %v1847
        %1871 = vst.msk [vmem:[#allocation2 + $0x10] sm:$0xff] %vm1868, %v1849
        %1872 = vst.msk [vmem:[#allocation2 + $0x18] sm:$0xff] %vm1868, %v1851
        %1873 = vst.msk [vmem:[#allocation2 + $0x20] sm:$0xff] %vm1868, %v1853
        %1874 = vst.msk [vmem:[#allocation2 + $0x28] sm:$0xff] %vm1868, %v1855
        %1875 = vst.msk [vmem:[#allocation2 + $0x30] sm:$0xff] %vm1868, %v1857
        %1876 = vst.msk [vmem:[#allocation2 + $0x38] sm:$0xff] %vm1868, %v1859
        %1877 = vrot.lane.b32.xlu0 %v1131, 32
        %v1878 = vpop.permute.xlu0 %1877
        %1879 = vrot.lane.b32.xlu0 %v1132, 32
        %v1880 = vpop.permute.xlu0 %1879
        %1881 = vrot.lane.b32.xlu0 %v1133, 32
        %v1882 = vpop.permute.xlu0 %1881
        %1883 = vrot.lane.b32.xlu0 %v1134, 32
        %v1884 = vpop.permute.xlu0 %1883
        %1885 = vrot.lane.b32.xlu0 %v1143, 32
        %v1886 = vpop.permute.xlu0 %1885
        %1887 = vrot.lane.b32.xlu0 %v1144, 32
        %v1888 = vpop.permute.xlu0 %1887
        %1889 = vrot.lane.b32.xlu0 %v1145, 32
        %v1890 = vpop.permute.xlu0 %1889
        %1891 = vrot.lane.b32.xlu0 %v1146, 32
        %v1892 = vpop.permute.xlu0 %1891
        %v1894 = vsel %vm1147, %v1878, 0
        %v1897 = vsel %vm1147, %v1880, 0
        %v1900 = vsel %vm1147, %v1882, 0
        %v1903 = vsel %vm1147, %v1884, 0
        %v1906 = vsel %vm1147, %v1886, 0
        %v1909 = vsel %vm1147, %v1888, 0
        %v1912 = vsel %vm1147, %v1890, 0
        %v1915 = vsel %vm1147, %v1892, 0
        %1917 = vmatpush.bf16.xpose.msra.mxu0 0
        %1918 = vmatpush.bf16.xpose.msra.mxu0 0
        %1919 = vmatpush.bf16.xpose.msra.mxu0 0
        %1920 = vmatpush.bf16.xpose.msra.mxu0 0
        %1921 = vmatpush.bf16.xpose.msra.mxu0 %v1915
        %1922 = vmatpush.bf16.xpose.msra.mxu0 %v1912
        %1923 = vmatpush.bf16.xpose.msra.mxu0 %v1909
        %1924 = vmatpush.bf16.xpose.msra.mxu0 %v1906
        %1925 = vmatmul.bf16.gmra.mxu0 %v1894
        %v1926 = vpop.f32.mrf.mxu0
        %v1927 = vadd.f32 %v1113, %v1926
        %v1928 = vpop.f32.mrf.mxu0
        %v1929 = vadd.f32 %v1113, %v1928
        %1930 = vmatmul.bf16.gmra.mxu0 %v1897
        %v1931 = vpop.f32.mrf.mxu0
        %v1932 = vadd.f32 %v1113, %v1931
        %v1933 = vpop.f32.mrf.mxu0
        %v1934 = vadd.f32 %v1113, %v1933
        %1935 = vmatmul.bf16.gmra.mxu0 %v1900
        %v1936 = vpop.f32.mrf.mxu0
        %v1937 = vadd.f32 %v1113, %v1936
        %v1938 = vpop.f32.mrf.mxu0
        %v1939 = vadd.f32 %v1113, %v1938
        %1940 = vmatmul.bf16.gmra.mxu0 %v1903
        %v1941 = vpop.f32.mrf.mxu0
        %v1942 = vadd.f32 %v1113, %v1941
        %v1943 = vpop.f32.mrf.mxu0
        %v1944 = vadd.f32 %v1113, %v1943
        %1945 = vdwg.mxu0
        %v1946 = vsel %vm1201, %v1927, -inf
        %1947 = vmax.xlane.f32.xlu0 %v1946
        %v1948 = vpop.xlane.xlu0 %1947
        %v1949 = vsel %vm1201, %v1929, -inf
        %1950 = vmax.xlane.f32.xlu0 %v1949
        %v1951 = vpop.xlane.xlu0 %1950
        %v1952 = vsel %vm1201, %v1932, -inf
        %1953 = vmax.xlane.f32.xlu0 %v1952
        %v1954 = vpop.xlane.xlu0 %1953
        %v1955 = vsel %vm1201, %v1934, -inf
        %1956 = vmax.xlane.f32.xlu0 %v1955
        %v1957 = vpop.xlane.xlu0 %1956
        %v1958 = vsel %vm1201, %v1937, -inf
        %1959 = vmax.xlane.f32.xlu0 %v1958
        %v1960 = vpop.xlane.xlu0 %1959
        %v1961 = vsel %vm1201, %v1939, -inf
        %1962 = vmax.xlane.f32.xlu0 %v1961
        %v1963 = vpop.xlane.xlu0 %1962
        %v1964 = vsel %vm1201, %v1942, -inf
        %1965 = vmax.xlane.f32.xlu0 %v1964
        %v1966 = vpop.xlane.xlu0 %1965
        %v1967 = vsel %vm1201, %v1944, -inf
        %1968 = vmax.xlane.f32.xlu0 %v1967
        %v1969 = vpop.xlane.xlu0 %1968
        %v1970 = vsub.f32 %v1927, %v1948
        %v1971 = vsub.f32 %v1929, %v1951
        %v1972 = vsub.f32 %v1932, %v1954
        %v1973 = vsub.f32 %v1934, %v1957
        %v1974 = vsub.f32 %v1937, %v1960
        %v1975 = vsub.f32 %v1939, %v1963
        %v1976 = vsub.f32 %v1942, %v1966
        %v1977 = vsub.f32 %v1944, %v1969
        %v1978 = vmul.f32 %v1970, 1.442695
        %v1979 = vpow.pop %v1978
        %v1980 = vmul.f32 %v1971, 1.442695
        %v1981 = vpow.pop %v1980
        %v1982 = vmul.f32 %v1972, 1.442695
        %v1983 = vpow.pop %v1982
        %v1984 = vmul.f32 %v1973, 1.442695
        %v1985 = vpow.pop %v1984
        %v1986 = vmul.f32 %v1974, 1.442695
        %v1987 = vpow.pop %v1986
        %v1988 = vmul.f32 %v1975, 1.442695
        %v1989 = vpow.pop %v1988
        %v1990 = vmul.f32 %v1976, 1.442695
        %v1991 = vpow.pop %v1990
        %v1992 = vmul.f32 %v1977, 1.442695
        %v1993 = vpow.pop %v1992
        %v1994 = vsel %vm1201, %v1979, 0.0
        %1995 = vadd.xlane.f32.xlu0 %v1994
        %v1996 = vpop.xlane.xlu0 %1995
        %v1997 = vsel %vm1201, %v1981, 0.0
        %1998 = vadd.xlane.f32.xlu0 %v1997
        %v1999 = vpop.xlane.xlu0 %1998
        %v2000 = vsel %vm1201, %v1983, 0.0
        %2001 = vadd.xlane.f32.xlu0 %v2000
        %v2002 = vpop.xlane.xlu0 %2001
        %v2003 = vsel %vm1201, %v1985, 0.0
        %2004 = vadd.xlane.f32.xlu0 %v2003
        %v2005 = vpop.xlane.xlu0 %2004
        %v2006 = vsel %vm1201, %v1987, 0.0
        %2007 = vadd.xlane.f32.xlu0 %v2006
        %v2008 = vpop.xlane.xlu0 %2007
        %v2009 = vsel %vm1201, %v1989, 0.0
        %2010 = vadd.xlane.f32.xlu0 %v2009
        %v2011 = vpop.xlane.xlu0 %2010
        %v2012 = vsel %vm1201, %v1991, 0.0
        %2013 = vadd.xlane.f32.xlu0 %v2012
        %v2014 = vpop.xlane.xlu0 %2013
        %v2015 = vsel %vm1201, %v1993, 0.0
        %2016 = vadd.xlane.f32.xlu0 %v2015
        %v2017 = vpop.xlane.xlu0 %2016
        %v2018 = vrcp.pop %v1996
        %v2019 = vrcp.pop %v1999
        %v2020 = vrcp.pop %v2002
        %v2021 = vrcp.pop %v2005
        %v2022 = vrcp.pop %v2008
        %v2023 = vrcp.pop %v2011
        %v2024 = vrcp.pop %v2014
        %v2025 = vrcp.pop %v2017
        %v2026 = vmul.f32 %v1979, %v2018
        %v2027 = vmul.f32 %v1981, %v2019
        %v2028 = vmul.f32 %v1983, %v2020
        %v2029 = vmul.f32 %v1985, %v2021
        %v2030 = vmul.f32 %v1987, %v2022
        %v2031 = vmul.f32 %v1989, %v2023
        %v2032 = vmul.f32 %v1991, %v2024
        %v2033 = vmul.f32 %v1993, %v2025
        %v2034 = vpack.c.bf16 %v2027, %v2026
        %v2035 = vpack.c.bf16 %v2029, %v2028
        %v2036 = vpack.c.bf16 %v2031, %v2030
        %v2037 = vpack.c.bf16 %v2033, %v2032
        %2038 = vrot.lane.b32.xlu0 %v1310, 32
        %v2039 = vpop.permute.xlu0 %2038
        %2040 = vrot.lane.b32.xlu0 %v1311, 32
        %v2041 = vpop.permute.xlu0 %2040
        %2042 = vrot.lane.b32.xlu0 %v1312, 32
        %v2043 = vpop.permute.xlu0 %2042
        %2044 = vrot.lane.b32.xlu0 %v1313, 32
        %v2045 = vpop.permute.xlu0 %2044
        %v2051 = vsel %vm1201, %v2034, 0
        %v2054 = vsel %vm1201, %v2035, 0
        %v2057 = vsel %vm1201, %v2036, 0
        %v2060 = vsel %vm1201, %v2037, 0
        %2062 = vmatpush.bf16.msra.mxu0 0
        %2063 = vmatpush.bf16.msra.mxu0 0
        %2064 = vmatpush.bf16.msra.mxu0 0
        %2065 = vmatpush.bf16.msra.mxu0 0
        %2066 = vmatpush.bf16.msra.mxu0 %v2045
        %2067 = vmatpush.bf16.msra.mxu0 %v2043
        %2068 = vmatpush.bf16.msra.mxu0 %v2041
        %2069 = vmatpush.bf16.msra.mxu0 %v2039
        %2070 = vmatmul.bf16.gmra.mxu0 %v2051
        %v2071 = vpop.f32.mrf.mxu0
        %v2072 = vadd.f32 0.0, %v2071
        %v2073 = vpop.f32.mrf.mxu0
        %v2074 = vadd.f32 0.0, %v2073
        %2075 = vmatmul.bf16.gmra.mxu0 %v2054
        %v2076 = vpop.f32.mrf.mxu0
        %v2077 = vadd.f32 0.0, %v2076
        %v2078 = vpop.f32.mrf.mxu0
        %v2079 = vadd.f32 0.0, %v2078
        %2080 = vmatmul.bf16.gmra.mxu0 %v2057
        %v2081 = vpop.f32.mrf.mxu0
        %v2082 = vadd.f32 0.0, %v2081
        %v2083 = vpop.f32.mrf.mxu0
        %v2084 = vadd.f32 0.0, %v2083
        %2085 = vmatmul.bf16.gmra.mxu0 %v2060
        %v2086 = vpop.f32.mrf.mxu0
        %v2087 = vadd.f32 0.0, %v2086
        %v2088 = vpop.f32.mrf.mxu0
        %v2089 = vadd.f32 0.0, %v2088
        %2090 = vdwg.mxu0
        %2099 = vrot.lane.b32.xlu0 %v2072, 96
        %v2100 = vpop.permute.xlu0 %2099
        %2101 = vrot.lane.b32.xlu0 %v2074, 96
        %v2102 = vpop.permute.xlu0 %2101
        %2103 = vrot.lane.b32.xlu0 %v2077, 96
        %v2104 = vpop.permute.xlu0 %2103
        %2105 = vrot.lane.b32.xlu0 %v2079, 96
        %v2106 = vpop.permute.xlu0 %2105
        %2107 = vrot.lane.b32.xlu0 %v2082, 96
        %v2108 = vpop.permute.xlu0 %2107
        %2109 = vrot.lane.b32.xlu0 %v2084, 96
        %v2110 = vpop.permute.xlu0 %2109
        %2111 = vrot.lane.b32.xlu0 %v2087, 96
        %v2112 = vpop.permute.xlu0 %2111
        %2113 = vrot.lane.b32.xlu0 %v2089, 96
        %v2114 = vpop.permute.xlu0 %2113
        %vm2123 = vcmask 1048320
        %2124 = vst.msk [vmem:[#allocation2] sm:$0xff] %vm2123, %v2100
        %2125 = vst.msk [vmem:[#allocation2 + $0x8] sm:$0xff] %vm2123, %v2102
        %2126 = vst.msk [vmem:[#allocation2 + $0x10] sm:$0xff] %vm2123, %v2104
        %2127 = vst.msk [vmem:[#allocation2 + $0x18] sm:$0xff] %vm2123, %v2106
        %2128 = vst.msk [vmem:[#allocation2 + $0x20] sm:$0xff] %vm2123, %v2108
        %2129 = vst.msk [vmem:[#allocation2 + $0x28] sm:$0xff] %vm2123, %v2110
        %2130 = vst.msk [vmem:[#allocation2 + $0x30] sm:$0xff] %vm2123, %v2112
        %2131 = vst.msk [vmem:[#allocation2 + $0x38] sm:$0xff] %vm2123, %v2114
        %v2132 = vld [vmem:[#allocation2] sm:$0xff]
        %v2133 = vld [vmem:[#allocation2 + $0x8] sm:$0xff]
        %v2134 = vld [vmem:[#allocation2 + $0x10] sm:$0xff]
        %v2135 = vld [vmem:[#allocation2 + $0x18] sm:$0xff]
        %v2136 = vld [vmem:[#allocation2 + $0x20] sm:$0xff]
        %v2137 = vld [vmem:[#allocation2 + $0x28] sm:$0xff]
        %v2138 = vld [vmem:[#allocation2 + $0x30] sm:$0xff]
        %v2139 = vld [vmem:[#allocation2 + $0x38] sm:$0xff]
        %v2140 = vpack.c.bf16 %v2133, %v2132
        %v2141 = vpack.c.bf16 %v2135, %v2134
        %v2142 = vpack.c.bf16 %v2137, %v2136
        %v2143 = vpack.c.bf16 %v2139, %v2138
        %v2144 = vld [vmem:[#allocation8] sm:$0xf]
        %v2145 = vld [vmem:[#allocation8 + $0x4] sm:$0xf]
        %v2146 = vld [vmem:[#allocation8 + $0x8] sm:$0xf]
        %v2147 = vld [vmem:[#allocation8 + $0xc] sm:$0xf]
        %v2148 = vld [vmem:[#allocation8 + $0x10] sm:$0xf]
        %v2149 = vld [vmem:[#allocation8 + $0x14] sm:$0xf]
        %v2150 = vld [vmem:[#allocation8 + $0x18] sm:$0xf]
        %v2151 = vld [vmem:[#allocation8 + $0x1c] sm:$0xf]
        %v2152 = vld [vmem:[#allocation8 + $0x20] sm:$0xf]
        %v2153 = vld [vmem:[#allocation8 + $0x24] sm:$0xf]
        %v2154 = vld [vmem:[#allocation8 + $0x28] sm:$0xf]
        %v2155 = vld [vmem:[#allocation8 + $0x2c] sm:$0xf]
        %v2156 = vld [vmem:[#allocation8 + $0x30] sm:$0xf]
        %v2157 = vld [vmem:[#allocation8 + $0x34] sm:$0xf]
        %v2158 = vld [vmem:[#allocation8 + $0x38] sm:$0xf]
        %v2159 = vld [vmem:[#allocation8 + $0x3c] sm:$0xf]
        %v2160 = vld [vmem:[%s9] sm:$0x1]
        %v2162 = vperm.slane %v2160, 0
        %v2180 = vunpack.c.l.b16 %v2144
        %v2181 = vunpack.c.l.b16 %v2145
        %v2182 = vunpack.c.l.b16 %v2146
        %v2183 = vunpack.c.l.b16 %v2147
        %v2184 = vunpack.c.l.b16 %v2148
        %v2185 = vunpack.c.l.b16 %v2149
        %v2186 = vunpack.c.l.b16 %v2150
        %v2187 = vunpack.c.l.b16 %v2151
        %v2188 = vunpack.c.l.b16 %v2152
        %v2189 = vunpack.c.l.b16 %v2153
        %v2190 = vunpack.c.l.b16 %v2154
        %v2191 = vunpack.c.l.b16 %v2155
        %v2192 = vunpack.c.l.b16 %v2156
        %v2193 = vunpack.c.l.b16 %v2157
        %v2194 = vunpack.c.l.b16 %v2158
        %v2195 = vunpack.c.l.b16 %v2159
        %v2196 = vpack.c.b16 %v2181, %v2180
        %v2197 = vpack.c.b16 %v2183, %v2182
        %v2198 = vpack.c.b16 %v2185, %v2184
        %v2199 = vpack.c.b16 %v2187, %v2186
        %v2200 = vpack.c.b16 %v2189, %v2188
        %v2201 = vpack.c.b16 %v2191, %v2190
        %v2202 = vpack.c.b16 %v2193, %v2192
        %v2203 = vpack.c.b16 %v2195, %v2194
        %2212 = vmatpush.bf16.msra.mxu0 %v2203
        %2213 = vmatpush.bf16.msra.mxu0 %v2202
        %2214 = vmatpush.bf16.msra.mxu0 %v2201
        %2215 = vmatpush.bf16.msra.mxu0 %v2200
        %2216 = vmatpush.bf16.msra.mxu0 %v2199
        %2217 = vmatpush.bf16.msra.mxu0 %v2198
        %2218 = vmatpush.bf16.msra.mxu0 %v2197
        %2219 = vmatpush.bf16.msra.mxu0 %v2196
        %2220 = vmatmul.bf16.gmra.mxu0 %v2140
        %v2221 = vpop.f32.mrf.mxu0
        %v2222 = vadd.f32 %v2162, %v2221
        %v2223 = vpop.f32.mrf.mxu0
        %v2224 = vadd.f32 %v2162, %v2223
        %2225 = vmatmul.bf16.gmra.mxu0 %v2141
        %v2226 = vpop.f32.mrf.mxu0
        %v2227 = vadd.f32 %v2162, %v2226
        %v2228 = vpop.f32.mrf.mxu0
        %v2229 = vadd.f32 %v2162, %v2228
        %2230 = vmatmul.bf16.gmra.mxu0 %v2142
        %v2231 = vpop.f32.mrf.mxu0
        %v2232 = vadd.f32 %v2162, %v2231
        %v2233 = vpop.f32.mrf.mxu0
        %v2234 = vadd.f32 %v2162, %v2233
        %2235 = vmatmul.bf16.gmra.mxu0 %v2143
        %v2236 = vpop.f32.mrf.mxu0
        %v2237 = vadd.f32 %v2162, %v2236
        %v2238 = vpop.f32.mrf.mxu0
        %v2239 = vadd.f32 %v2162, %v2238
        %2240 = vdwg.mxu0
        %v2242 = vperm.slane %v644, 0
        %v2244 = vmul.f32 %v2222, %v2242
        %v2245 = vmul.f32 %v2224, %v2242
        %v2246 = vmul.f32 %v2227, %v2242
        %v2247 = vmul.f32 %v2229, %v2242
        %v2248 = vmul.f32 %v2232, %v2242
        %v2249 = vmul.f32 %v2234, %v2242
        %v2250 = vmul.f32 %v2237, %v2242
        %v2251 = vmul.f32 %v2239, %v2242
        %v2252 = vadd.f32 %v635, %v2244
        %v2253 = vadd.f32 %v636, %v2245
        %v2254 = vadd.f32 %v637, %v2246
        %v2255 = vadd.f32 %v638, %v2247
        %v2256 = vadd.f32 %v639, %v2248
        %v2257 = vadd.f32 %v640, %v2249
        %v2258 = vadd.f32 %v641, %v2250
        %v2259 = vadd.f32 %v642, %v2251
        %v2260 = vld [vmem:[%s10] sm:$0x1]
        %v2261 = vld [vmem:[%s11] sm:$0x1]
        %2262 = vadd.xlane.f32.xlu0 %v2252
        %v2263 = vpop.xlane.xlu0 %2262
        %2264 = vadd.xlane.f32.xlu0 %v2253
        %v2265 = vpop.xlane.xlu0 %2264
        %2266 = vadd.xlane.f32.xlu0 %v2254
        %v2267 = vpop.xlane.xlu0 %2266
        %2268 = vadd.xlane.f32.xlu0 %v2255
        %v2269 = vpop.xlane.xlu0 %2268
        %2270 = vadd.xlane.f32.xlu0 %v2256
        %v2271 = vpop.xlane.xlu0 %2270
        %2272 = vadd.xlane.f32.xlu0 %v2257
        %v2273 = vpop.xlane.xlu0 %2272
        %2274 = vadd.xlane.f32.xlu0 %v2258
        %v2275 = vpop.xlane.xlu0 %2274
        %2276 = vadd.xlane.f32.xlu0 %v2259
        %v2277 = vpop.xlane.xlu0 %2276
        %v2278 = vmul.f32 %v2263, %v670
        %v2279 = vmul.f32 %v2265, %v670
        %v2280 = vmul.f32 %v2267, %v670
        %v2281 = vmul.f32 %v2269, %v670
        %v2282 = vmul.f32 %v2271, %v670
        %v2283 = vmul.f32 %v2273, %v670
        %v2284 = vmul.f32 %v2275, %v670
        %v2285 = vmul.f32 %v2277, %v670
        %v2286 = vsub.f32 %v2252, %v2278
        %v2287 = vsub.f32 %v2253, %v2279
        %v2288 = vsub.f32 %v2254, %v2280
        %v2289 = vsub.f32 %v2255, %v2281
        %v2290 = vsub.f32 %v2256, %v2282
        %v2291 = vsub.f32 %v2257, %v2283
        %v2292 = vsub.f32 %v2258, %v2284
        %v2293 = vsub.f32 %v2259, %v2285
        %v2294 = vmul.f32 %v2286, %v2286
        %v2295 = vmul.f32 %v2287, %v2287
        %v2296 = vmul.f32 %v2288, %v2288
        %v2297 = vmul.f32 %v2289, %v2289
        %v2298 = vmul.f32 %v2290, %v2290
        %v2299 = vmul.f32 %v2291, %v2291
        %v2300 = vmul.f32 %v2292, %v2292
        %v2301 = vmul.f32 %v2293, %v2293
        %2302 = vadd.xlane.f32.xlu0 %v2294
        %v2303 = vpop.xlane.xlu0 %2302
        %2304 = vadd.xlane.f32.xlu0 %v2295
        %v2305 = vpop.xlane.xlu0 %2304
        %2306 = vadd.xlane.f32.xlu0 %v2296
        %v2307 = vpop.xlane.xlu0 %2306
        %2308 = vadd.xlane.f32.xlu0 %v2297
        %v2309 = vpop.xlane.xlu0 %2308
        %2310 = vadd.xlane.f32.xlu0 %v2298
        %v2311 = vpop.xlane.xlu0 %2310
        %2312 = vadd.xlane.f32.xlu0 %v2299
        %v2313 = vpop.xlane.xlu0 %2312
        %2314 = vadd.xlane.f32.xlu0 %v2300
        %v2315 = vpop.xlane.xlu0 %2314
        %2316 = vadd.xlane.f32.xlu0 %v2301
        %v2317 = vpop.xlane.xlu0 %2316
        %v2318 = vmul.f32 %v2303, %v670
        %v2319 = vmul.f32 %v2305, %v670
        %v2320 = vmul.f32 %v2307, %v670
        %v2321 = vmul.f32 %v2309, %v670
        %v2322 = vmul.f32 %v2311, %v670
        %v2323 = vmul.f32 %v2313, %v670
        %v2324 = vmul.f32 %v2315, %v670
        %v2325 = vmul.f32 %v2317, %v670
        %v2326 = vadd.f32 %v2318, 1e-06
        %v2327 = vadd.f32 %v2319, 1e-06
        %v2328 = vadd.f32 %v2320, 1e-06
        %v2329 = vadd.f32 %v2321, 1e-06
        %v2330 = vadd.f32 %v2322, 1e-06
        %v2331 = vadd.f32 %v2323, 1e-06
        %v2332 = vadd.f32 %v2324, 1e-06
        %v2333 = vadd.f32 %v2325, 1e-06
        %v2334 = vrsqrt.pop %v2326
        %v2335 = vmul.f32 %v2334, %v2326
        %v2336 = vmul.f32 %v2335, %v2334
        %v2337 = vmul.f32 0.5, %v2336
        %v2338 = vsub.f32 1.5, %v2337
        %v2339 = vmul.f32 %v2334, %v2338
        %vm2340 = vweird.f32 %v2326
        %vm2341 = vweird.f32 %v2334
        %vm2342 = vmor %vm2340, %vm2341
        %v2343 = vsel %vm2342, %v2334, %v2339
        %v2344 = vrsqrt.pop %v2327
        %v2345 = vmul.f32 %v2344, %v2327
        %v2346 = vmul.f32 %v2345, %v2344
        %v2347 = vmul.f32 0.5, %v2346
        %v2348 = vsub.f32 1.5, %v2347
        %v2349 = vmul.f32 %v2344, %v2348
        %vm2350 = vweird.f32 %v2327
        %vm2351 = vweird.f32 %v2344
        %vm2352 = vmor %vm2350, %vm2351
        %v2353 = vsel %vm2352, %v2344, %v2349
        %v2354 = vrsqrt.pop %v2328
        %v2355 = vmul.f32 %v2354, %v2328
        %v2356 = vmul.f32 %v2355, %v2354
        %v2357 = vmul.f32 0.5, %v2356
        %v2358 = vsub.f32 1.5, %v2357
        %v2359 = vmul.f32 %v2354, %v2358
        %vm2360 = vweird.f32 %v2328
        %vm2361 = vweird.f32 %v2354
        %vm2362 = vmor %vm2360, %vm2361
        %v2363 = vsel %vm2362, %v2354, %v2359
        %v2364 = vrsqrt.pop %v2329
        %v2365 = vmul.f32 %v2364, %v2329
        %v2366 = vmul.f32 %v2365, %v2364
        %v2367 = vmul.f32 0.5, %v2366
        %v2368 = vsub.f32 1.5, %v2367
        %v2369 = vmul.f32 %v2364, %v2368
        %vm2370 = vweird.f32 %v2329
        %vm2371 = vweird.f32 %v2364
        %vm2372 = vmor %vm2370, %vm2371
        %v2373 = vsel %vm2372, %v2364, %v2369
        %v2374 = vrsqrt.pop %v2330
        %v2375 = vmul.f32 %v2374, %v2330
        %v2376 = vmul.f32 %v2375, %v2374
        %v2377 = vmul.f32 0.5, %v2376
        %v2378 = vsub.f32 1.5, %v2377
        %v2379 = vmul.f32 %v2374, %v2378
        %vm2380 = vweird.f32 %v2330
        %vm2381 = vweird.f32 %v2374
        %vm2382 = vmor %vm2380, %vm2381
        %v2383 = vsel %vm2382, %v2374, %v2379
        %v2384 = vrsqrt.pop %v2331
        %v2385 = vmul.f32 %v2384, %v2331
        %v2386 = vmul.f32 %v2385, %v2384
        %v2387 = vmul.f32 0.5, %v2386
        %v2388 = vsub.f32 1.5, %v2387
        %v2389 = vmul.f32 %v2384, %v2388
        %vm2390 = vweird.f32 %v2331
        %vm2391 = vweird.f32 %v2384
        %vm2392 = vmor %vm2390, %vm2391
        %v2393 = vsel %vm2392, %v2384, %v2389
        %v2394 = vrsqrt.pop %v2332
        %v2395 = vmul.f32 %v2394, %v2332
        %v2396 = vmul.f32 %v2395, %v2394
        %v2397 = vmul.f32 0.5, %v2396
        %v2398 = vsub.f32 1.5, %v2397
        %v2399 = vmul.f32 %v2394, %v2398
        %vm2400 = vweird.f32 %v2332
        %vm2401 = vweird.f32 %v2394
        %vm2402 = vmor %vm2400, %vm2401
        %v2403 = vsel %vm2402, %v2394, %v2399
        %v2404 = vrsqrt.pop %v2333
        %v2405 = vmul.f32 %v2404, %v2333
        %v2406 = vmul.f32 %v2405, %v2404
        %v2407 = vmul.f32 0.5, %v2406
        %v2408 = vsub.f32 1.5, %v2407
        %v2409 = vmul.f32 %v2404, %v2408
        %vm2410 = vweird.f32 %v2333
        %vm2411 = vweird.f32 %v2404
        %vm2412 = vmor %vm2410, %vm2411
        %v2413 = vsel %vm2412, %v2404, %v2409
        %v2414 = vmul.f32 %v2286, %v2343
        %v2415 = vmul.f32 %v2287, %v2353
        %v2416 = vmul.f32 %v2288, %v2363
        %v2417 = vmul.f32 %v2289, %v2373
        %v2418 = vmul.f32 %v2290, %v2383
        %v2419 = vmul.f32 %v2291, %v2393
        %v2420 = vmul.f32 %v2292, %v2403
        %v2421 = vmul.f32 %v2293, %v2413
        %v2423 = vperm.slane %v2260, 0
        %v2425 = vmul.f32 %v2414, %v2423
        %v2426 = vmul.f32 %v2415, %v2423
        %v2427 = vmul.f32 %v2416, %v2423
        %v2428 = vmul.f32 %v2417, %v2423
        %v2429 = vmul.f32 %v2418, %v2423
        %v2430 = vmul.f32 %v2419, %v2423
        %v2431 = vmul.f32 %v2420, %v2423
        %v2432 = vmul.f32 %v2421, %v2423
        %v2434 = vperm.slane %v2261, 0
        %v2436 = vadd.f32 %v2425, %v2434
        %v2437 = vadd.f32 %v2426, %v2434
        %v2438 = vadd.f32 %v2427, %v2434
        %v2439 = vadd.f32 %v2428, %v2434
        %v2440 = vadd.f32 %v2429, %v2434
        %v2441 = vadd.f32 %v2430, %v2434
        %v2442 = vadd.f32 %v2431, %v2434
        %v2443 = vadd.f32 %v2432, %v2434
        %v2444 = vpack.c.bf16 %v2437, %v2436
        %v2445 = vpack.c.bf16 %v2439, %v2438
        %v2446 = vpack.c.bf16 %v2441, %v2440
        %v2447 = vpack.c.bf16 %v2443, %v2442
        %v2448 = vld [vmem:[%s12] sm:$0xff]
        %v2449 = vld [vmem:[%s12 + $0x8] sm:$0xff]
        %v2450 = vld [vmem:[%s12 + $0x10] sm:$0xff]
        %v2451 = vld [vmem:[%s12 + $0x18] sm:$0xff]
        %v2452 = vld [vmem:[%s12 + $0x20] sm:$0xff]
        %v2453 = vld [vmem:[%s12 + $0x28] sm:$0xff]
        %v2454 = vld [vmem:[%s12 + $0x30] sm:$0xff]
        %v2455 = vld [vmem:[%s12 + $0x38] sm:$0xff]
        %v2456 = vld [vmem:[%s12 + $0x40] sm:$0xff]
        %v2457 = vld [vmem:[%s12 + $0x48] sm:$0xff]
        %v2458 = vld [vmem:[%s12 + $0x50] sm:$0xff]
        %v2459 = vld [vmem:[%s12 + $0x58] sm:$0xff]
        %v2460 = vld [vmem:[%s12 + $0x60] sm:$0xff]
        %v2461 = vld [vmem:[%s12 + $0x68] sm:$0xff]
        %v2462 = vld [vmem:[%s12 + $0x70] sm:$0xff]
        %v2463 = vld [vmem:[%s12 + $0x78] sm:$0xff]
        %v2464 = vld [vmem:[%s12 + $0x80] sm:$0xff]
        %v2465 = vld [vmem:[%s12 + $0x88] sm:$0xff]
        %v2466 = vld [vmem:[%s12 + $0x90] sm:$0xff]
        %v2467 = vld [vmem:[%s12 + $0x98] sm:$0xff]
        %v2468 = vld [vmem:[%s12 + $0xa0] sm:$0xff]
        %v2469 = vld [vmem:[%s12 + $0xa8] sm:$0xff]
        %v2470 = vld [vmem:[%s12 + $0xb0] sm:$0xff]
        %v2471 = vld [vmem:[%s12 + $0xb8] sm:$0xff]
        %v2472 = vld [vmem:[%s12 + $0xc0] sm:$0xff]
        %v2473 = vld [vmem:[%s12 + $0xc8] sm:$0xff]
        %v2474 = vld [vmem:[%s12 + $0xd0] sm:$0xff]
        %v2475 = vld [vmem:[%s12 + $0xd8] sm:$0xff]
        %v2476 = vld [vmem:[%s12 + $0xe0] sm:$0xff]
        %v2477 = vld [vmem:[%s12 + $0xe8] sm:$0xff]
        %v2478 = vld [vmem:[%s12 + $0xf0] sm:$0xff]
        %v2479 = vld [vmem:[%s12 + $0xf8] sm:$0xff]
        %v2480 = vld [vmem:[%s13] sm:$0xf]
        %v2482 = vperm.slane %v2480, 0
        %v2483 = vperm.slane %v2480, 1
        %v2484 = vperm.slane %v2480, 2
        %v2485 = vperm.slane %v2480, 3
        %v2522 = vunpack.c.l.b16 %v2448
        %v2523 = vunpack.c.h.b16 %v2448
        %v2524 = vunpack.c.l.b16 %v2449
        %v2525 = vunpack.c.h.b16 %v2449
        %v2526 = vunpack.c.l.b16 %v2450
        %v2527 = vunpack.c.h.b16 %v2450
        %v2528 = vunpack.c.l.b16 %v2451
        %v2529 = vunpack.c.h.b16 %v2451
        %v2530 = vunpack.c.l.b16 %v2452
        %v2531 = vunpack.c.h.b16 %v2452
        %v2532 = vunpack.c.l.b16 %v2453
        %v2533 = vunpack.c.h.b16 %v2453
        %v2534 = vunpack.c.l.b16 %v2454
        %v2535 = vunpack.c.h.b16 %v2454
        %v2536 = vunpack.c.l.b16 %v2455
        %v2537 = vunpack.c.h.b16 %v2455
        %v2538 = vunpack.c.l.b16 %v2456
        %v2539 = vunpack.c.h.b16 %v2456
        %v2540 = vunpack.c.l.b16 %v2457
        %v2541 = vunpack.c.h.b16 %v2457
        %v2542 = vunpack.c.l.b16 %v2458
        %v2543 = vunpack.c.h.b16 %v2458
        %v2544 = vunpack.c.l.b16 %v2459
        %v2545 = vunpack.c.h.b16 %v2459
        %v2546 = vunpack.c.l.b16 %v2460
        %v2547 = vunpack.c.h.b16 %v2460
        %v2548 = vunpack.c.l.b16 %v2461
        %v2549 = vunpack.c.h.b16 %v2461
        %v2550 = vunpack.c.l.b16 %v2462
        %v2551 = vunpack.c.h.b16 %v2462
        %v2552 = vunpack.c.l.b16 %v2463
        %v2553 = vunpack.c.h.b16 %v2463
        %v2554 = vunpack.c.l.b16 %v2464
        %v2555 = vunpack.c.h.b16 %v2464
        %v2556 = vunpack.c.l.b16 %v2465
        %v2557 = vunpack.c.h.b16 %v2465
        %v2558 = vunpack.c.l.b16 %v2466
        %v2559 = vunpack.c.h.b16 %v2466
        %v2560 = vunpack.c.l.b16 %v2467
        %v2561 = vunpack.c.h.b16 %v2467
        %v2562 = vunpack.c.l.b16 %v2468
        %v2563 = vunpack.c.h.b16 %v2468
        %v2564 = vunpack.c.l.b16 %v2469
        %v2565 = vunpack.c.h.b16 %v2469
        %v2566 = vunpack.c.l.b16 %v2470
        %v2567 = vunpack.c.h.b16 %v2470
        %v2568 = vunpack.c.l.b16 %v2471
        %v2569 = vunpack.c.h.b16 %v2471
        %v2570 = vunpack.c.l.b16 %v2472
        %v2571 = vunpack.c.h.b16 %v2472
        %v2572 = vunpack.c.l.b16 %v2473
        %v2573 = vunpack.c.h.b16 %v2473
        %v2574 = vunpack.c.l.b16 %v2474
        %v2575 = vunpack.c.h.b16 %v2474
        %v2576 = vunpack.c.l.b16 %v2475
        %v2577 = vunpack.c.h.b16 %v2475
        %v2578 = vunpack.c.l.b16 %v2476
        %v2579 = vunpack.c.h.b16 %v2476
        %v2580 = vunpack.c.l.b16 %v2477
        %v2581 = vunpack.c.h.b16 %v2477
        %v2582 = vunpack.c.l.b16 %v2478
        %v2583 = vunpack.c.h.b16 %v2478
        %v2584 = vunpack.c.l.b16 %v2479
        %v2585 = vunpack.c.h.b16 %v2479
        %v2586 = vpack.c.b16 %v2526, %v2522
        %v2587 = vpack.c.b16 %v2527, %v2523
        %v2588 = vpack.c.b16 %v2528, %v2524
        %v2589 = vpack.c.b16 %v2529, %v2525
        %v2590 = vpack.c.b16 %v2534, %v2530
        %v2591 = vpack.c.b16 %v2535, %v2531
        %v2592 = vpack.c.b16 %v2536, %v2532
        %v2593 = vpack.c.b16 %v2537, %v2533
        %v2594 = vpack.c.b16 %v2542, %v2538
        %v2595 = vpack.c.b16 %v2543, %v2539
        %v2596 = vpack.c.b16 %v2544, %v2540
        %v2597 = vpack.c.b16 %v2545, %v2541
        %v2598 = vpack.c.b16 %v2550, %v2546
        %v2599 = vpack.c.b16 %v2551, %v2547
        %v2600 = vpack.c.b16 %v2552, %v2548
        %v2601 = vpack.c.b16 %v2553, %v2549
        %v2602 = vpack.c.b16 %v2558, %v2554
        %v2603 = vpack.c.b16 %v2559, %v2555
        %v2604 = vpack.c.b16 %v2560, %v2556
        %v2605 = vpack.c.b16 %v2561, %v2557
        %v2606 = vpack.c.b16 %v2566, %v2562
        %v2607 = vpack.c.b16 %v2567, %v2563
        %v2608 = vpack.c.b16 %v2568, %v2564
        %v2609 = vpack.c.b16 %v2569, %v2565
        %v2610 = vpack.c.b16 %v2574, %v2570
        %v2611 = vpack.c.b16 %v2575, %v2571
        %v2612 = vpack.c.b16 %v2576, %v2572
        %v2613 = vpack.c.b16 %v2577, %v2573
        %v2614 = vpack.c.b16 %v2582, %v2578
        %v2615 = vpack.c.b16 %v2583, %v2579
        %v2616 = vpack.c.b16 %v2584, %v2580
        %v2617 = vpack.c.b16 %v2585, %v2581
        %2650 = vmatpush.bf16.msra.mxu0 %v2614
        %2651 = vmatpush.bf16.msra.mxu0 %v2610
        %2652 = vmatpush.bf16.msra.mxu0 %v2606
        %2653 = vmatpush.bf16.msra.mxu0 %v2602
        %2654 = vmatpush.bf16.msra.mxu0 %v2598
        %2655 = vmatpush.bf16.msra.mxu0 %v2594
        %2656 = vmatpush.bf16.msra.mxu0 %v2590
        %2657 = vmatpush.bf16.msra.mxu0 %v2586
        %2658 = vmatmul.bf16.gmra.mxu0 %v2444
        %v2659 = vpop.f32.mrf.mxu0
        %v2660 = vadd.f32 %v2482, %v2659
        %v2661 = vpop.f32.mrf.mxu0
        %v2662 = vadd.f32 %v2482, %v2661
        %2663 = vmatmul.bf16.gmra.mxu0 %v2445
        %v2664 = vpop.f32.mrf.mxu0
        %v2665 = vadd.f32 %v2482, %v2664
        %v2666 = vpop.f32.mrf.mxu0
        %v2667 = vadd.f32 %v2482, %v2666
        %2668 = vmatmul.bf16.gmra.mxu0 %v2446
        %v2669 = vpop.f32.mrf.mxu0
        %v2670 = vadd.f32 %v2482, %v2669
        %v2671 = vpop.f32.mrf.mxu0
        %v2672 = vadd.f32 %v2482, %v2671
        %2673 = vmatmul.bf16.gmra.mxu0 %v2447
        %v2674 = vpop.f32.mrf.mxu0
        %v2675 = vadd.f32 %v2482, %v2674
        %v2676 = vpop.f32.mrf.mxu0
        %v2677 = vadd.f32 %v2482, %v2676
        %2678 = vdwg.mxu0
        %2679 = vmatpush.bf16.msra.mxu0 %v2615
        %2680 = vmatpush.bf16.msra.mxu0 %v2611
        %2681 = vmatpush.bf16.msra.mxu0 %v2607
        %2682 = vmatpush.bf16.msra.mxu0 %v2603
        %2683 = vmatpush.bf16.msra.mxu0 %v2599
        %2684 = vmatpush.bf16.msra.mxu0 %v2595
        %2685 = vmatpush.bf16.msra.mxu0 %v2591
        %2686 = vmatpush.bf16.msra.mxu0 %v2587
        %2687 = vmatmul.bf16.gmra.mxu0 %v2444
        %v2688 = vpop.f32.mrf.mxu0
        %v2689 = vadd.f32 %v2483, %v2688
        %v2690 = vpop.f32.mrf.mxu0
        %v2691 = vadd.f32 %v2483, %v2690
        %2692 = vmatmul.bf16.gmra.mxu0 %v2445
        %v2693 = vpop.f32.mrf.mxu0
        %v2694 = vadd.f32 %v2483, %v2693
        %v2695 = vpop.f32.mrf.mxu0
        %v2696 = vadd.f32 %v2483, %v2695
        %2697 = vmatmul.bf16.gmra.mxu0 %v2446
        %v2698 = vpop.f32.mrf.mxu0
        %v2699 = vadd.f32 %v2483, %v2698
        %v2700 = vpop.f32.mrf.mxu0
        %v2701 = vadd.f32 %v2483, %v2700
        %2702 = vmatmul.bf16.gmra.mxu0 %v2447
        %v2703 = vpop.f32.mrf.mxu0
        %v2704 = vadd.f32 %v2483, %v2703
        %v2705 = vpop.f32.mrf.mxu0
        %v2706 = vadd.f32 %v2483, %v2705
        %2707 = vdwg.mxu0
        %2708 = vmatpush.bf16.msra.mxu0 %v2616
        %2709 = vmatpush.bf16.msra.mxu0 %v2612
        %2710 = vmatpush.bf16.msra.mxu0 %v2608
        %2711 = vmatpush.bf16.msra.mxu0 %v2604
        %2712 = vmatpush.bf16.msra.mxu0 %v2600
        %2713 = vmatpush.bf16.msra.mxu0 %v2596
        %2714 = vmatpush.bf16.msra.mxu0 %v2592
        %2715 = vmatpush.bf16.msra.mxu0 %v2588
        %2716 = vmatmul.bf16.gmra.mxu0 %v2444
        %v2717 = vpop.f32.mrf.mxu0
        %v2718 = vadd.f32 %v2484, %v2717
        %v2719 = vpop.f32.mrf.mxu0
        %v2720 = vadd.f32 %v2484, %v2719
        %2721 = vmatmul.bf16.gmra.mxu0 %v2445
        %v2722 = vpop.f32.mrf.mxu0
        %v2723 = vadd.f32 %v2484, %v2722
        %v2724 = vpop.f32.mrf.mxu0
        %v2725 = vadd.f32 %v2484, %v2724
        %2726 = vmatmul.bf16.gmra.mxu0 %v2446
        %v2727 = vpop.f32.mrf.mxu0
        %v2728 = vadd.f32 %v2484, %v2727
        %v2729 = vpop.f32.mrf.mxu0
        %v2730 = vadd.f32 %v2484, %v2729
        %2731 = vmatmul.bf16.gmra.mxu0 %v2447
        %v2732 = vpop.f32.mrf.mxu0
        %v2733 = vadd.f32 %v2484, %v2732
        %v2734 = vpop.f32.mrf.mxu0
        %v2735 = vadd.f32 %v2484, %v2734
        %2736 = vdwg.mxu0
        %2737 = vmatpush.bf16.msra.mxu0 %v2617
        %2738 = vmatpush.bf16.msra.mxu0 %v2613
        %2739 = vmatpush.bf16.msra.mxu0 %v2609
        %2740 = vmatpush.bf16.msra.mxu0 %v2605
        %2741 = vmatpush.bf16.msra.mxu0 %v2601
        %2742 = vmatpush.bf16.msra.mxu0 %v2597
        %2743 = vmatpush.bf16.msra.mxu0 %v2593
        %2744 = vmatpush.bf16.msra.mxu0 %v2589
        %2745 = vmatmul.bf16.gmra.mxu0 %v2444
        %v2746 = vpop.f32.mrf.mxu0
        %v2747 = vadd.f32 %v2485, %v2746
        %v2748 = vpop.f32.mrf.mxu0
        %v2749 = vadd.f32 %v2485, %v2748
        %2750 = vmatmul.bf16.gmra.mxu0 %v2445
        %v2751 = vpop.f32.mrf.mxu0
        %v2752 = vadd.f32 %v2485, %v2751
        %v2753 = vpop.f32.mrf.mxu0
        %v2754 = vadd.f32 %v2485, %v2753
        %2755 = vmatmul.bf16.gmra.mxu0 %v2446
        %v2756 = vpop.f32.mrf.mxu0
        %v2757 = vadd.f32 %v2485, %v2756
        %v2758 = vpop.f32.mrf.mxu0
        %v2759 = vadd.f32 %v2485, %v2758
        %2760 = vmatmul.bf16.gmra.mxu0 %v2447
        %v2761 = vpop.f32.mrf.mxu0
        %v2762 = vadd.f32 %v2485, %v2761
        %v2763 = vpop.f32.mrf.mxu0
        %v2764 = vadd.f32 %v2485, %v2763
        %2765 = vdwg.mxu0
        %v2766 = vxor.u32 %v2660, 2147483648
        %v2767 = vxor.u32 %v2689, 2147483648
        %v2768 = vxor.u32 %v2718, 2147483648
        %v2769 = vxor.u32 %v2747, 2147483648
        %v2770 = vxor.u32 %v2662, 2147483648
        %v2771 = vxor.u32 %v2691, 2147483648
        %v2772 = vxor.u32 %v2720, 2147483648
        %v2773 = vxor.u32 %v2749, 2147483648
        %v2774 = vxor.u32 %v2665, 2147483648
        %v2775 = vxor.u32 %v2694, 2147483648
        %v2776 = vxor.u32 %v2723, 2147483648
        %v2777 = vxor.u32 %v2752, 2147483648
        %v2778 = vxor.u32 %v2667, 2147483648
        %v2779 = vxor.u32 %v2696, 2147483648
        %v2780 = vxor.u32 %v2725, 2147483648
        %v2781 = vxor.u32 %v2754, 2147483648
        %v2782 = vxor.u32 %v2670, 2147483648
        %v2783 = vxor.u32 %v2699, 2147483648
        %v2784 = vxor.u32 %v2728, 2147483648
        %v2785 = vxor.u32 %v2757, 2147483648
        %v2786 = vxor.u32 %v2672, 2147483648
        %v2787 = vxor.u32 %v2701, 2147483648
        %v2788 = vxor.u32 %v2730, 2147483648
        %v2789 = vxor.u32 %v2759, 2147483648
        %v2790 = vxor.u32 %v2675, 2147483648
        %v2791 = vxor.u32 %v2704, 2147483648
        %v2792 = vxor.u32 %v2733, 2147483648
        %v2793 = vxor.u32 %v2762, 2147483648
        %v2794 = vxor.u32 %v2677, 2147483648
        %v2795 = vxor.u32 %v2706, 2147483648
        %v2796 = vxor.u32 %v2735, 2147483648
        %v2797 = vxor.u32 %v2764, 2147483648
        %v2798 = vmul.f32 %v2766, 1.442695
        %v2799 = vpow.pop %v2798
        %v2800 = vmul.f32 %v2767, 1.442695
        %v2801 = vpow.pop %v2800
        %v2802 = vmul.f32 %v2768, 1.442695
        %v2803 = vpow.pop %v2802
        %v2804 = vmul.f32 %v2769, 1.442695
        %v2805 = vpow.pop %v2804
        %v2806 = vmul.f32 %v2770, 1.442695
        %v2807 = vpow.pop %v2806
        %v2808 = vmul.f32 %v2771, 1.442695
        %v2809 = vpow.pop %v2808
        %v2810 = vmul.f32 %v2772, 1.442695
        %v2811 = vpow.pop %v2810
        %v2812 = vmul.f32 %v2773, 1.442695
        %v2813 = vpow.pop %v2812
        %v2814 = vmul.f32 %v2774, 1.442695
        %v2815 = vpow.pop %v2814
        %v2816 = vmul.f32 %v2775, 1.442695
        %v2817 = vpow.pop %v2816
        %v2818 = vmul.f32 %v2776, 1.442695
        %v2819 = vpow.pop %v2818
        %v2820 = vmul.f32 %v2777, 1.442695
        %v2821 = vpow.pop %v2820
        %v2822 = vmul.f32 %v2778, 1.442695
        %v2823 = vpow.pop %v2822
        %v2824 = vmul.f32 %v2779, 1.442695
        %v2825 = vpow.pop %v2824
        %v2826 = vmul.f32 %v2780, 1.442695
        %v2827 = vpow.pop %v2826
        %v2828 = vmul.f32 %v2781, 1.442695
        %v2829 = vpow.pop %v2828
        %v2830 = vmul.f32 %v2782, 1.442695
        %v2831 = vpow.pop %v2830
        %v2832 = vmul.f32 %v2783, 1.442695
        %v2833 = vpow.pop %v2832
        %v2834 = vmul.f32 %v2784, 1.442695
        %v2835 = vpow.pop %v2834
        %v2836 = vmul.f32 %v2785, 1.442695
        %v2837 = vpow.pop %v2836
        %v2838 = vmul.f32 %v2786, 1.442695
        %v2839 = vpow.pop %v2838
        %v2840 = vmul.f32 %v2787, 1.442695
        %v2841 = vpow.pop %v2840
        %v2842 = vmul.f32 %v2788, 1.442695
        %v2843 = vpow.pop %v2842
        %v2844 = vmul.f32 %v2789, 1.442695
        %v2845 = vpow.pop %v2844
        %v2846 = vmul.f32 %v2790, 1.442695
        %v2847 = vpow.pop %v2846
        %v2848 = vmul.f32 %v2791, 1.442695
        %v2849 = vpow.pop %v2848
        %v2850 = vmul.f32 %v2792, 1.442695
        %v2851 = vpow.pop %v2850
        %v2852 = vmul.f32 %v2793, 1.442695
        %v2853 = vpow.pop %v2852
        %v2854 = vmul.f32 %v2794, 1.442695
        %v2855 = vpow.pop %v2854
        %v2856 = vmul.f32 %v2795, 1.442695
        %v2857 = vpow.pop %v2856
        %v2858 = vmul.f32 %v2796, 1.442695
        %v2859 = vpow.pop %v2858
        %v2860 = vmul.f32 %v2797, 1.442695
        %v2861 = vpow.pop %v2860
        %v2862 = vadd.f32 %v2799, 1.0
        %v2863 = vadd.f32 %v2801, 1.0
        %v2864 = vadd.f32 %v2803, 1.0
        %v2865 = vadd.f32 %v2805, 1.0
        %v2866 = vadd.f32 %v2807, 1.0
        %v2867 = vadd.f32 %v2809, 1.0
        %v2868 = vadd.f32 %v2811, 1.0
        %v2869 = vadd.f32 %v2813, 1.0
        %v2870 = vadd.f32 %v2815, 1.0
        %v2871 = vadd.f32 %v2817, 1.0
        %v2872 = vadd.f32 %v2819, 1.0
        %v2873 = vadd.f32 %v2821, 1.0
        %v2874 = vadd.f32 %v2823, 1.0
        %v2875 = vadd.f32 %v2825, 1.0
        %v2876 = vadd.f32 %v2827, 1.0
        %v2877 = vadd.f32 %v2829, 1.0
        %v2878 = vadd.f32 %v2831, 1.0
        %v2879 = vadd.f32 %v2833, 1.0
        %v2880 = vadd.f32 %v2835, 1.0
        %v2881 = vadd.f32 %v2837, 1.0
        %v2882 = vadd.f32 %v2839, 1.0
        %v2883 = vadd.f32 %v2841, 1.0
        %v2884 = vadd.f32 %v2843, 1.0
        %v2885 = vadd.f32 %v2845, 1.0
        %v2886 = vadd.f32 %v2847, 1.0
        %v2887 = vadd.f32 %v2849, 1.0
        %v2888 = vadd.f32 %v2851, 1.0
        %v2889 = vadd.f32 %v2853, 1.0
        %v2890 = vadd.f32 %v2855, 1.0
        %v2891 = vadd.f32 %v2857, 1.0
        %v2892 = vadd.f32 %v2859, 1.0
        %v2893 = vadd.f32 %v2861, 1.0
        %v2894 = vrcp.pop %v2862
        %v2895 = vmul.f32 %v2862, %v2894
        %v2896 = vsub.f32 1.0, %v2895
        %v2897 = vmul.f32 %v2894, %v2896
        %v2898 = vadd.f32 %v2894, %v2897
        %vm2899 = vweird.f32 %v2862
        %vm2900 = vweird.f32 %v2894
        %vm2901 = vmor %vm2899, %vm2900
        %v2902 = vsel %vm2901, %v2894, %v2898
        %v2903 = vand.u32 2147483647, %v2862
        %vm2904 = vcmp.eq.f32.partialorder %v2903, 8.507059e+37
        %v2905 = vand.u32 %v2862, 2147483648
        %v2906 = vor.u32 1.1754944e-38, %v2905
        %v2907 = vsel %vm2904, %v2906, %v2902
        %v2908 = vmul.f32 1.0, %v2907
        %v2909 = vrcp.pop %v2863
        %v2910 = vmul.f32 %v2863, %v2909
        %v2911 = vsub.f32 1.0, %v2910
        %v2912 = vmul.f32 %v2909, %v2911
        %v2913 = vadd.f32 %v2909, %v2912
        %vm2914 = vweird.f32 %v2863
        %vm2915 = vweird.f32 %v2909
        %vm2916 = vmor %vm2914, %vm2915
        %v2917 = vsel %vm2916, %v2909, %v2913
        %v2918 = vand.u32 2147483647, %v2863
        %vm2919 = vcmp.eq.f32.partialorder %v2918, 8.507059e+37
        %v2920 = vand.u32 %v2863, 2147483648
        %v2921 = vor.u32 1.1754944e-38, %v2920
        %v2922 = vsel %vm2919, %v2921, %v2917
        %v2923 = vmul.f32 1.0, %v2922
        %v2924 = vrcp.pop %v2864
        %v2925 = vmul.f32 %v2864, %v2924
        %v2926 = vsub.f32 1.0, %v2925
        %v2927 = vmul.f32 %v2924, %v2926
        %v2928 = vadd.f32 %v2924, %v2927
        %vm2929 = vweird.f32 %v2864
        %vm2930 = vweird.f32 %v2924
        %vm2931 = vmor %vm2929, %vm2930
        %v2932 = vsel %vm2931, %v2924, %v2928
        %v2933 = vand.u32 2147483647, %v2864
        %vm2934 = vcmp.eq.f32.partialorder %v2933, 8.507059e+37
        %v2935 = vand.u32 %v2864, 2147483648
        %v2936 = vor.u32 1.1754944e-38, %v2935
        %v2937 = vsel %vm2934, %v2936, %v2932
        %v2938 = vmul.f32 1.0, %v2937
        %v2939 = vrcp.pop %v2865
        %v2940 = vmul.f32 %v2865, %v2939
        %v2941 = vsub.f32 1.0, %v2940
        %v2942 = vmul.f32 %v2939, %v2941
        %v2943 = vadd.f32 %v2939, %v2942
        %vm2944 = vweird.f32 %v2865
        %vm2945 = vweird.f32 %v2939
        %vm2946 = vmor %vm2944, %vm2945
        %v2947 = vsel %vm2946, %v2939, %v2943
        %v2948 = vand.u32 2147483647, %v2865
        %vm2949 = vcmp.eq.f32.partialorder %v2948, 8.507059e+37
        %v2950 = vand.u32 %v2865, 2147483648
        %v2951 = vor.u32 1.1754944e-38, %v2950
        %v2952 = vsel %vm2949, %v2951, %v2947
        %v2953 = vmul.f32 1.0, %v2952
        %v2954 = vrcp.pop %v2866
        %v2955 = vmul.f32 %v2866, %v2954
        %v2956 = vsub.f32 1.0, %v2955
        %v2957 = vmul.f32 %v2954, %v2956
        %v2958 = vadd.f32 %v2954, %v2957
        %vm2959 = vweird.f32 %v2866
        %vm2960 = vweird.f32 %v2954
        %vm2961 = vmor %vm2959, %vm2960
        %v2962 = vsel %vm2961, %v2954, %v2958
        %v2963 = vand.u32 2147483647, %v2866
        %vm2964 = vcmp.eq.f32.partialorder %v2963, 8.507059e+37
        %v2965 = vand.u32 %v2866, 2147483648
        %v2966 = vor.u32 1.1754944e-38, %v2965
        %v2967 = vsel %vm2964, %v2966, %v2962
        %v2968 = vmul.f32 1.0, %v2967
        %v2969 = vrcp.pop %v2867
        %v2970 = vmul.f32 %v2867, %v2969
        %v2971 = vsub.f32 1.0, %v2970
        %v2972 = vmul.f32 %v2969, %v2971
        %v2973 = vadd.f32 %v2969, %v2972
        %vm2974 = vweird.f32 %v2867
        %vm2975 = vweird.f32 %v2969
        %vm2976 = vmor %vm2974, %vm2975
        %v2977 = vsel %vm2976, %v2969, %v2973
        %v2978 = vand.u32 2147483647, %v2867
        %vm2979 = vcmp.eq.f32.partialorder %v2978, 8.507059e+37
        %v2980 = vand.u32 %v2867, 2147483648
        %v2981 = vor.u32 1.1754944e-38, %v2980
        %v2982 = vsel %vm2979, %v2981, %v2977
        %v2983 = vmul.f32 1.0, %v2982
        %v2984 = vrcp.pop %v2868
        %v2985 = vmul.f32 %v2868, %v2984
        %v2986 = vsub.f32 1.0, %v2985
        %v2987 = vmul.f32 %v2984, %v2986
        %v2988 = vadd.f32 %v2984, %v2987
        %vm2989 = vweird.f32 %v2868
        %vm2990 = vweird.f32 %v2984
        %vm2991 = vmor %vm2989, %vm2990
        %v2992 = vsel %vm2991, %v2984, %v2988
        %v2993 = vand.u32 2147483647, %v2868
        %vm2994 = vcmp.eq.f32.partialorder %v2993, 8.507059e+37
        %v2995 = vand.u32 %v2868, 2147483648
        %v2996 = vor.u32 1.1754944e-38, %v2995
        %v2997 = vsel %vm2994, %v2996, %v2992
        %v2998 = vmul.f32 1.0, %v2997
        %v2999 = vrcp.pop %v2869
        %v3000 = vmul.f32 %v2869, %v2999
        %v3001 = vsub.f32 1.0, %v3000
        %v3002 = vmul.f32 %v2999, %v3001
        %v3003 = vadd.f32 %v2999, %v3002
        %vm3004 = vweird.f32 %v2869
        %vm3005 = vweird.f32 %v2999
        %vm3006 = vmor %vm3004, %vm3005
        %v3007 = vsel %vm3006, %v2999, %v3003
        %v3008 = vand.u32 2147483647, %v2869
        %vm3009 = vcmp.eq.f32.partialorder %v3008, 8.507059e+37
        %v3010 = vand.u32 %v2869, 2147483648
        %v3011 = vor.u32 1.1754944e-38, %v3010
        %v3012 = vsel %vm3009, %v3011, %v3007
        %v3013 = vmul.f32 1.0, %v3012
        %v3014 = vrcp.pop %v2870
        %v3015 = vmul.f32 %v2870, %v3014
        %v3016 = vsub.f32 1.0, %v3015
        %v3017 = vmul.f32 %v3014, %v3016
        %v3018 = vadd.f32 %v3014, %v3017
        %vm3019 = vweird.f32 %v2870
        %vm3020 = vweird.f32 %v3014
        %vm3021 = vmor %vm3019, %vm3020
        %v3022 = vsel %vm3021, %v3014, %v3018
        %v3023 = vand.u32 2147483647, %v2870
        %vm3024 = vcmp.eq.f32.partialorder %v3023, 8.507059e+37
        %v3025 = vand.u32 %v2870, 2147483648
        %v3026 = vor.u32 1.1754944e-38, %v3025
        %v3027 = vsel %vm3024, %v3026, %v3022
        %v3028 = vmul.f32 1.0, %v3027
        %v3029 = vrcp.pop %v2871
        %v3030 = vmul.f32 %v2871, %v3029
        %v3031 = vsub.f32 1.0, %v3030
        %v3032 = vmul.f32 %v3029, %v3031
        %v3033 = vadd.f32 %v3029, %v3032
        %vm3034 = vweird.f32 %v2871
        %vm3035 = vweird.f32 %v3029
        %vm3036 = vmor %vm3034, %vm3035
        %v3037 = vsel %vm3036, %v3029, %v3033
        %v3038 = vand.u32 2147483647, %v2871
        %vm3039 = vcmp.eq.f32.partialorder %v3038, 8.507059e+37
        %v3040 = vand.u32 %v2871, 2147483648
        %v3041 = vor.u32 1.1754944e-38, %v3040
        %v3042 = vsel %vm3039, %v3041, %v3037
        %v3043 = vmul.f32 1.0, %v3042
        %v3044 = vrcp.pop %v2872
        %v3045 = vmul.f32 %v2872, %v3044
        %v3046 = vsub.f32 1.0, %v3045
        %v3047 = vmul.f32 %v3044, %v3046
        %v3048 = vadd.f32 %v3044, %v3047
        %vm3049 = vweird.f32 %v2872
        %vm3050 = vweird.f32 %v3044
        %vm3051 = vmor %vm3049, %vm3050
        %v3052 = vsel %vm3051, %v3044, %v3048
        %v3053 = vand.u32 2147483647, %v2872
        %vm3054 = vcmp.eq.f32.partialorder %v3053, 8.507059e+37
        %v3055 = vand.u32 %v2872, 2147483648
        %v3056 = vor.u32 1.1754944e-38, %v3055
        %v3057 = vsel %vm3054, %v3056, %v3052
        %v3058 = vmul.f32 1.0, %v3057
        %v3059 = vrcp.pop %v2873
        %v3060 = vmul.f32 %v2873, %v3059
        %v3061 = vsub.f32 1.0, %v3060
        %v3062 = vmul.f32 %v3059, %v3061
        %v3063 = vadd.f32 %v3059, %v3062
        %vm3064 = vweird.f32 %v2873
        %vm3065 = vweird.f32 %v3059
        %vm3066 = vmor %vm3064, %vm3065
        %v3067 = vsel %vm3066, %v3059, %v3063
        %v3068 = vand.u32 2147483647, %v2873
        %vm3069 = vcmp.eq.f32.partialorder %v3068, 8.507059e+37
        %v3070 = vand.u32 %v2873, 2147483648
        %v3071 = vor.u32 1.1754944e-38, %v3070
        %v3072 = vsel %vm3069, %v3071, %v3067
        %v3073 = vmul.f32 1.0, %v3072
        %v3074 = vrcp.pop %v2874
        %v3075 = vmul.f32 %v2874, %v3074
        %v3076 = vsub.f32 1.0, %v3075
        %v3077 = vmul.f32 %v3074, %v3076
        %v3078 = vadd.f32 %v3074, %v3077
        %vm3079 = vweird.f32 %v2874
        %vm3080 = vweird.f32 %v3074
        %vm3081 = vmor %vm3079, %vm3080
        %v3082 = vsel %vm3081, %v3074, %v3078
        %v3083 = vand.u32 2147483647, %v2874
        %vm3084 = vcmp.eq.f32.partialorder %v3083, 8.507059e+37
        %v3085 = vand.u32 %v2874, 2147483648
        %v3086 = vor.u32 1.1754944e-38, %v3085
        %v3087 = vsel %vm3084, %v3086, %v3082
        %v3088 = vmul.f32 1.0, %v3087
        %v3089 = vrcp.pop %v2875
        %v3090 = vmul.f32 %v2875, %v3089
        %v3091 = vsub.f32 1.0, %v3090
        %v3092 = vmul.f32 %v3089, %v3091
        %v3093 = vadd.f32 %v3089, %v3092
        %vm3094 = vweird.f32 %v2875
        %vm3095 = vweird.f32 %v3089
        %vm3096 = vmor %vm3094, %vm3095
        %v3097 = vsel %vm3096, %v3089, %v3093
        %v3098 = vand.u32 2147483647, %v2875
        %vm3099 = vcmp.eq.f32.partialorder %v3098, 8.507059e+37
        %v3100 = vand.u32 %v2875, 2147483648
        %v3101 = vor.u32 1.1754944e-38, %v3100
        %v3102 = vsel %vm3099, %v3101, %v3097
        %v3103 = vmul.f32 1.0, %v3102
        %v3104 = vrcp.pop %v2876
        %v3105 = vmul.f32 %v2876, %v3104
        %v3106 = vsub.f32 1.0, %v3105
        %v3107 = vmul.f32 %v3104, %v3106
        %v3108 = vadd.f32 %v3104, %v3107
        %vm3109 = vweird.f32 %v2876
        %vm3110 = vweird.f32 %v3104
        %vm3111 = vmor %vm3109, %vm3110
        %v3112 = vsel %vm3111, %v3104, %v3108
        %v3113 = vand.u32 2147483647, %v2876
        %vm3114 = vcmp.eq.f32.partialorder %v3113, 8.507059e+37
        %v3115 = vand.u32 %v2876, 2147483648
        %v3116 = vor.u32 1.1754944e-38, %v3115
        %v3117 = vsel %vm3114, %v3116, %v3112
        %v3118 = vmul.f32 1.0, %v3117
        %v3119 = vrcp.pop %v2877
        %v3120 = vmul.f32 %v2877, %v3119
        %v3121 = vsub.f32 1.0, %v3120
        %v3122 = vmul.f32 %v3119, %v3121
        %v3123 = vadd.f32 %v3119, %v3122
        %vm3124 = vweird.f32 %v2877
        %vm3125 = vweird.f32 %v3119
        %vm3126 = vmor %vm3124, %vm3125
        %v3127 = vsel %vm3126, %v3119, %v3123
        %v3128 = vand.u32 2147483647, %v2877
        %vm3129 = vcmp.eq.f32.partialorder %v3128, 8.507059e+37
        %v3130 = vand.u32 %v2877, 2147483648
        %v3131 = vor.u32 1.1754944e-38, %v3130
        %v3132 = vsel %vm3129, %v3131, %v3127
        %v3133 = vmul.f32 1.0, %v3132
        %v3134 = vrcp.pop %v2878
        %v3135 = vmul.f32 %v2878, %v3134
        %v3136 = vsub.f32 1.0, %v3135
        %v3137 = vmul.f32 %v3134, %v3136
        %v3138 = vadd.f32 %v3134, %v3137
        %vm3139 = vweird.f32 %v2878
        %vm3140 = vweird.f32 %v3134
        %vm3141 = vmor %vm3139, %vm3140
        %v3142 = vsel %vm3141, %v3134, %v3138
        %v3143 = vand.u32 2147483647, %v2878
        %vm3144 = vcmp.eq.f32.partialorder %v3143, 8.507059e+37
        %v3145 = vand.u32 %v2878, 2147483648
        %v3146 = vor.u32 1.1754944e-38, %v3145
        %v3147 = vsel %vm3144, %v3146, %v3142
        %v3148 = vmul.f32 1.0, %v3147
        %v3149 = vrcp.pop %v2879
        %v3150 = vmul.f32 %v2879, %v3149
        %v3151 = vsub.f32 1.0, %v3150
        %v3152 = vmul.f32 %v3149, %v3151
        %v3153 = vadd.f32 %v3149, %v3152
        %vm3154 = vweird.f32 %v2879
        %vm3155 = vweird.f32 %v3149
        %vm3156 = vmor %vm3154, %vm3155
        %v3157 = vsel %vm3156, %v3149, %v3153
        %v3158 = vand.u32 2147483647, %v2879
        %vm3159 = vcmp.eq.f32.partialorder %v3158, 8.507059e+37
        %v3160 = vand.u32 %v2879, 2147483648
        %v3161 = vor.u32 1.1754944e-38, %v3160
        %v3162 = vsel %vm3159, %v3161, %v3157
        %v3163 = vmul.f32 1.0, %v3162
        %v3164 = vrcp.pop %v2880
        %v3165 = vmul.f32 %v2880, %v3164
        %v3166 = vsub.f32 1.0, %v3165
        %v3167 = vmul.f32 %v3164, %v3166
        %v3168 = vadd.f32 %v3164, %v3167
        %vm3169 = vweird.f32 %v2880
        %vm3170 = vweird.f32 %v3164
        %vm3171 = vmor %vm3169, %vm3170
        %v3172 = vsel %vm3171, %v3164, %v3168
        %v3173 = vand.u32 2147483647, %v2880
        %vm3174 = vcmp.eq.f32.partialorder %v3173, 8.507059e+37
        %v3175 = vand.u32 %v2880, 2147483648
        %v3176 = vor.u32 1.1754944e-38, %v3175
        %v3177 = vsel %vm3174, %v3176, %v3172
        %v3178 = vmul.f32 1.0, %v3177
        %v3179 = vrcp.pop %v2881
        %v3180 = vmul.f32 %v2881, %v3179
        %v3181 = vsub.f32 1.0, %v3180
        %v3182 = vmul.f32 %v3179, %v3181
        %v3183 = vadd.f32 %v3179, %v3182
        %vm3184 = vweird.f32 %v2881
        %vm3185 = vweird.f32 %v3179
        %vm3186 = vmor %vm3184, %vm3185
        %v3187 = vsel %vm3186, %v3179, %v3183
        %v3188 = vand.u32 2147483647, %v2881
        %vm3189 = vcmp.eq.f32.partialorder %v3188, 8.507059e+37
        %v3190 = vand.u32 %v2881, 2147483648
        %v3191 = vor.u32 1.1754944e-38, %v3190
        %v3192 = vsel %vm3189, %v3191, %v3187
        %v3193 = vmul.f32 1.0, %v3192
        %v3194 = vrcp.pop %v2882
        %v3195 = vmul.f32 %v2882, %v3194
        %v3196 = vsub.f32 1.0, %v3195
        %v3197 = vmul.f32 %v3194, %v3196
        %v3198 = vadd.f32 %v3194, %v3197
        %vm3199 = vweird.f32 %v2882
        %vm3200 = vweird.f32 %v3194
        %vm3201 = vmor %vm3199, %vm3200
        %v3202 = vsel %vm3201, %v3194, %v3198
        %v3203 = vand.u32 2147483647, %v2882
        %vm3204 = vcmp.eq.f32.partialorder %v3203, 8.507059e+37
        %v3205 = vand.u32 %v2882, 2147483648
        %v3206 = vor.u32 1.1754944e-38, %v3205
        %v3207 = vsel %vm3204, %v3206, %v3202
        %v3208 = vmul.f32 1.0, %v3207
        %v3209 = vrcp.pop %v2883
        %v3210 = vmul.f32 %v2883, %v3209
        %v3211 = vsub.f32 1.0, %v3210
        %v3212 = vmul.f32 %v3209, %v3211
        %v3213 = vadd.f32 %v3209, %v3212
        %vm3214 = vweird.f32 %v2883
        %vm3215 = vweird.f32 %v3209
        %vm3216 = vmor %vm3214, %vm3215
        %v3217 = vsel %vm3216, %v3209, %v3213
        %v3218 = vand.u32 2147483647, %v2883
        %vm3219 = vcmp.eq.f32.partialorder %v3218, 8.507059e+37
        %v3220 = vand.u32 %v2883, 2147483648
        %v3221 = vor.u32 1.1754944e-38, %v3220
        %v3222 = vsel %vm3219, %v3221, %v3217
        %v3223 = vmul.f32 1.0, %v3222
        %v3224 = vrcp.pop %v2884
        %v3225 = vmul.f32 %v2884, %v3224
        %v3226 = vsub.f32 1.0, %v3225
        %v3227 = vmul.f32 %v3224, %v3226
        %v3228 = vadd.f32 %v3224, %v3227
        %vm3229 = vweird.f32 %v2884
        %vm3230 = vweird.f32 %v3224
        %vm3231 = vmor %vm3229, %vm3230
        %v3232 = vsel %vm3231, %v3224, %v3228
        %v3233 = vand.u32 2147483647, %v2884
        %vm3234 = vcmp.eq.f32.partialorder %v3233, 8.507059e+37
        %v3235 = vand.u32 %v2884, 2147483648
        %v3236 = vor.u32 1.1754944e-38, %v3235
        %v3237 = vsel %vm3234, %v3236, %v3232
        %v3238 = vmul.f32 1.0, %v3237
        %v3239 = vrcp.pop %v2885
        %v3240 = vmul.f32 %v2885, %v3239
        %v3241 = vsub.f32 1.0, %v3240
        %v3242 = vmul.f32 %v3239, %v3241
        %v3243 = vadd.f32 %v3239, %v3242
        %vm3244 = vweird.f32 %v2885
        %vm3245 = vweird.f32 %v3239
        %vm3246 = vmor %vm3244, %vm3245
        %v3247 = vsel %vm3246, %v3239, %v3243
        %v3248 = vand.u32 2147483647, %v2885
        %vm3249 = vcmp.eq.f32.partialorder %v3248, 8.507059e+37
        %v3250 = vand.u32 %v2885, 2147483648
        %v3251 = vor.u32 1.1754944e-38, %v3250
        %v3252 = vsel %vm3249, %v3251, %v3247
        %v3253 = vmul.f32 1.0, %v3252
        %v3254 = vrcp.pop %v2886
        %v3255 = vmul.f32 %v2886, %v3254
        %v3256 = vsub.f32 1.0, %v3255
        %v3257 = vmul.f32 %v3254, %v3256
        %v3258 = vadd.f32 %v3254, %v3257
        %vm3259 = vweird.f32 %v2886
        %vm3260 = vweird.f32 %v3254
        %vm3261 = vmor %vm3259, %vm3260
        %v3262 = vsel %vm3261, %v3254, %v3258
        %v3263 = vand.u32 2147483647, %v2886
        %vm3264 = vcmp.eq.f32.partialorder %v3263, 8.507059e+37
        %v3265 = vand.u32 %v2886, 2147483648
        %v3266 = vor.u32 1.1754944e-38, %v3265
        %v3267 = vsel %vm3264, %v3266, %v3262
        %v3268 = vmul.f32 1.0, %v3267
        %v3269 = vrcp.pop %v2887
        %v3270 = vmul.f32 %v2887, %v3269
        %v3271 = vsub.f32 1.0, %v3270
        %v3272 = vmul.f32 %v3269, %v3271
        %v3273 = vadd.f32 %v3269, %v3272
        %vm3274 = vweird.f32 %v2887
        %vm3275 = vweird.f32 %v3269
        %vm3276 = vmor %vm3274, %vm3275
        %v3277 = vsel %vm3276, %v3269, %v3273
        %v3278 = vand.u32 2147483647, %v2887
        %vm3279 = vcmp.eq.f32.partialorder %v3278, 8.507059e+37
        %v3280 = vand.u32 %v2887, 2147483648
        %v3281 = vor.u32 1.1754944e-38, %v3280
        %v3282 = vsel %vm3279, %v3281, %v3277
        %v3283 = vmul.f32 1.0, %v3282
        %v3284 = vrcp.pop %v2888
        %v3285 = vmul.f32 %v2888, %v3284
        %v3286 = vsub.f32 1.0, %v3285
        %v3287 = vmul.f32 %v3284, %v3286
        %v3288 = vadd.f32 %v3284, %v3287
        %vm3289 = vweird.f32 %v2888
        %vm3290 = vweird.f32 %v3284
        %vm3291 = vmor %vm3289, %vm3290
        %v3292 = vsel %vm3291, %v3284, %v3288
        %v3293 = vand.u32 2147483647, %v2888
        %vm3294 = vcmp.eq.f32.partialorder %v3293, 8.507059e+37
        %v3295 = vand.u32 %v2888, 2147483648
        %v3296 = vor.u32 1.1754944e-38, %v3295
        %v3297 = vsel %vm3294, %v3296, %v3292
        %v3298 = vmul.f32 1.0, %v3297
        %v3299 = vrcp.pop %v2889
        %v3300 = vmul.f32 %v2889, %v3299
        %v3301 = vsub.f32 1.0, %v3300
        %v3302 = vmul.f32 %v3299, %v3301
        %v3303 = vadd.f32 %v3299, %v3302
        %vm3304 = vweird.f32 %v2889
        %vm3305 = vweird.f32 %v3299
        %vm3306 = vmor %vm3304, %vm3305
        %v3307 = vsel %vm3306, %v3299, %v3303
        %v3308 = vand.u32 2147483647, %v2889
        %vm3309 = vcmp.eq.f32.partialorder %v3308, 8.507059e+37
        %v3310 = vand.u32 %v2889, 2147483648
        %v3311 = vor.u32 1.1754944e-38, %v3310
        %v3312 = vsel %vm3309, %v3311, %v3307
        %v3313 = vmul.f32 1.0, %v3312
        %v3314 = vrcp.pop %v2890
        %v3315 = vmul.f32 %v2890, %v3314
        %v3316 = vsub.f32 1.0, %v3315
        %v3317 = vmul.f32 %v3314, %v3316
        %v3318 = vadd.f32 %v3314, %v3317
        %vm3319 = vweird.f32 %v2890
        %vm3320 = vweird.f32 %v3314
        %vm3321 = vmor %vm3319, %vm3320
        %v3322 = vsel %vm3321, %v3314, %v3318
        %v3323 = vand.u32 2147483647, %v2890
        %vm3324 = vcmp.eq.f32.partialorder %v3323, 8.507059e+37
        %v3325 = vand.u32 %v2890, 2147483648
        %v3326 = vor.u32 1.1754944e-38, %v3325
        %v3327 = vsel %vm3324, %v3326, %v3322
        %v3328 = vmul.f32 1.0, %v3327
        %v3329 = vrcp.pop %v2891
        %v3330 = vmul.f32 %v2891, %v3329
        %v3331 = vsub.f32 1.0, %v3330
        %v3332 = vmul.f32 %v3329, %v3331
        %v3333 = vadd.f32 %v3329, %v3332
        %vm3334 = vweird.f32 %v2891
        %vm3335 = vweird.f32 %v3329
        %vm3336 = vmor %vm3334, %vm3335
        %v3337 = vsel %vm3336, %v3329, %v3333
        %v3338 = vand.u32 2147483647, %v2891
        %vm3339 = vcmp.eq.f32.partialorder %v3338, 8.507059e+37
        %v3340 = vand.u32 %v2891, 2147483648
        %v3341 = vor.u32 1.1754944e-38, %v3340
        %v3342 = vsel %vm3339, %v3341, %v3337
        %v3343 = vmul.f32 1.0, %v3342
        %v3344 = vrcp.pop %v2892
        %v3345 = vmul.f32 %v2892, %v3344
        %v3346 = vsub.f32 1.0, %v3345
        %v3347 = vmul.f32 %v3344, %v3346
        %v3348 = vadd.f32 %v3344, %v3347
        %vm3349 = vweird.f32 %v2892
        %vm3350 = vweird.f32 %v3344
        %vm3351 = vmor %vm3349, %vm3350
        %v3352 = vsel %vm3351, %v3344, %v3348
        %v3353 = vand.u32 2147483647, %v2892
        %vm3354 = vcmp.eq.f32.partialorder %v3353, 8.507059e+37
        %v3355 = vand.u32 %v2892, 2147483648
        %v3356 = vor.u32 1.1754944e-38, %v3355
        %v3357 = vsel %vm3354, %v3356, %v3352
        %v3358 = vmul.f32 1.0, %v3357
        %v3359 = vrcp.pop %v2893
        %v3360 = vmul.f32 %v2893, %v3359
        %v3361 = vsub.f32 1.0, %v3360
        %v3362 = vmul.f32 %v3359, %v3361
        %v3363 = vadd.f32 %v3359, %v3362
        %vm3364 = vweird.f32 %v2893
        %vm3365 = vweird.f32 %v3359
        %vm3366 = vmor %vm3364, %vm3365
        %v3367 = vsel %vm3366, %v3359, %v3363
        %v3368 = vand.u32 2147483647, %v2893
        %vm3369 = vcmp.eq.f32.partialorder %v3368, 8.507059e+37
        %v3370 = vand.u32 %v2893, 2147483648
        %v3371 = vor.u32 1.1754944e-38, %v3370
        %v3372 = vsel %vm3369, %v3371, %v3367
        %v3373 = vmul.f32 1.0, %v3372
        %v3374 = vmul.f32 %v2660, %v2908
        %v3375 = vmul.f32 %v2689, %v2923
        %v3376 = vmul.f32 %v2718, %v2938
        %v3377 = vmul.f32 %v2747, %v2953
        %v3378 = vmul.f32 %v2662, %v2968
        %v3379 = vmul.f32 %v2691, %v2983
        %v3380 = vmul.f32 %v2720, %v2998
        %v3381 = vmul.f32 %v2749, %v3013
        %v3382 = vmul.f32 %v2665, %v3028
        %v3383 = vmul.f32 %v2694, %v3043
        %v3384 = vmul.f32 %v2723, %v3058
        %v3385 = vmul.f32 %v2752, %v3073
        %v3386 = vmul.f32 %v2667, %v3088
        %v3387 = vmul.f32 %v2696, %v3103
        %v3388 = vmul.f32 %v2725, %v3118
        %v3389 = vmul.f32 %v2754, %v3133
        %v3390 = vmul.f32 %v2670, %v3148
        %v3391 = vmul.f32 %v2699, %v3163
        %v3392 = vmul.f32 %v2728, %v3178
        %v3393 = vmul.f32 %v2757, %v3193
        %v3394 = vmul.f32 %v2672, %v3208
        %v3395 = vmul.f32 %v2701, %v3223
        %v3396 = vmul.f32 %v2730, %v3238
        %v3397 = vmul.f32 %v2759, %v3253
        %v3398 = vmul.f32 %v2675, %v3268
        %v3399 = vmul.f32 %v2704, %v3283
        %v3400 = vmul.f32 %v2733, %v3298
        %v3401 = vmul.f32 %v2762, %v3313
        %v3402 = vmul.f32 %v2677, %v3328
        %v3403 = vmul.f32 %v2706, %v3343
        %v3404 = vmul.f32 %v2735, %v3358
        %v3405 = vmul.f32 %v2764, %v3373
        %v3406 = vpack.c.bf16 %v3378, %v3374
        %v3407 = vpack.c.bf16 %v3379, %v3375
        %v3408 = vpack.c.bf16 %v3380, %v3376
        %v3409 = vpack.c.bf16 %v3381, %v3377
        %v3410 = vpack.c.bf16 %v3386, %v3382
        %v3411 = vpack.c.bf16 %v3387, %v3383
        %v3412 = vpack.c.bf16 %v3388, %v3384
        %v3413 = vpack.c.bf16 %v3389, %v3385
        %v3414 = vpack.c.bf16 %v3394, %v3390
        %v3415 = vpack.c.bf16 %v3395, %v3391
        %v3416 = vpack.c.bf16 %v3396, %v3392
        %v3417 = vpack.c.bf16 %v3397, %v3393
        %v3418 = vpack.c.bf16 %v3402, %v3398
        %v3419 = vpack.c.bf16 %v3403, %v3399
        %v3420 = vpack.c.bf16 %v3404, %v3400
        %v3421 = vpack.c.bf16 %v3405, %v3401
        %v3422 = vld [vmem:[#allocation9] sm:$0xf]
        %v3423 = vld [vmem:[#allocation9 + $0x4] sm:$0xf]
        %v3424 = vld [vmem:[#allocation9 + $0x8] sm:$0xf]
        %v3425 = vld [vmem:[#allocation9 + $0xc] sm:$0xf]
        %v3426 = vld [vmem:[#allocation9 + $0x10] sm:$0xf]
        %v3427 = vld [vmem:[#allocation9 + $0x14] sm:$0xf]
        %v3428 = vld [vmem:[#allocation9 + $0x18] sm:$0xf]
        %v3429 = vld [vmem:[#allocation9 + $0x1c] sm:$0xf]
        %v3430 = vld [vmem:[#allocation9 + $0x20] sm:$0xf]
        %v3431 = vld [vmem:[#allocation9 + $0x24] sm:$0xf]
        %v3432 = vld [vmem:[#allocation9 + $0x28] sm:$0xf]
        %v3433 = vld [vmem:[#allocation9 + $0x2c] sm:$0xf]
        %v3434 = vld [vmem:[#allocation9 + $0x30] sm:$0xf]
        %v3435 = vld [vmem:[#allocation9 + $0x34] sm:$0xf]
        %v3436 = vld [vmem:[#allocation9 + $0x38] sm:$0xf]
        %v3437 = vld [vmem:[#allocation9 + $0x3c] sm:$0xf]
        %v3438 = vld [vmem:[#allocation9 + $0x40] sm:$0xf]
        %v3439 = vld [vmem:[#allocation9 + $0x44] sm:$0xf]
        %v3440 = vld [vmem:[#allocation9 + $0x48] sm:$0xf]
        %v3441 = vld [vmem:[#allocation9 + $0x4c] sm:$0xf]
        %v3442 = vld [vmem:[#allocation9 + $0x50] sm:$0xf]
        %v3443 = vld [vmem:[#allocation9 + $0x54] sm:$0xf]
        %v3444 = vld [vmem:[#allocation9 + $0x58] sm:$0xf]
        %v3445 = vld [vmem:[#allocation9 + $0x5c] sm:$0xf]
        %v3446 = vld [vmem:[#allocation9 + $0x60] sm:$0xf]
        %v3447 = vld [vmem:[#allocation9 + $0x64] sm:$0xf]
        %v3448 = vld [vmem:[#allocation9 + $0x68] sm:$0xf]
        %v3449 = vld [vmem:[#allocation9 + $0x6c] sm:$0xf]
        %v3450 = vld [vmem:[#allocation9 + $0x70] sm:$0xf]
        %v3451 = vld [vmem:[#allocation9 + $0x74] sm:$0xf]
        %v3452 = vld [vmem:[#allocation9 + $0x78] sm:$0xf]
        %v3453 = vld [vmem:[#allocation9 + $0x7c] sm:$0xf]
        %v3454 = vld [vmem:[#allocation9 + $0x80] sm:$0xf]
        %v3455 = vld [vmem:[#allocation9 + $0x84] sm:$0xf]
        %v3456 = vld [vmem:[#allocation9 + $0x88] sm:$0xf]
        %v3457 = vld [vmem:[#allocation9 + $0x8c] sm:$0xf]
        %v3458 = vld [vmem:[#allocation9 + $0x90] sm:$0xf]
        %v3459 = vld [vmem:[#allocation9 + $0x94] sm:$0xf]
        %v3460 = vld [vmem:[#allocation9 + $0x98] sm:$0xf]
        %v3461 = vld [vmem:[#allocation9 + $0x9c] sm:$0xf]
        %v3462 = vld [vmem:[#allocation9 + $0xa0] sm:$0xf]
        %v3463 = vld [vmem:[#allocation9 + $0xa4] sm:$0xf]
        %v3464 = vld [vmem:[#allocation9 + $0xa8] sm:$0xf]
        %v3465 = vld [vmem:[#allocation9 + $0xac] sm:$0xf]
        %v3466 = vld [vmem:[#allocation9 + $0xb0] sm:$0xf]
        %v3467 = vld [vmem:[#allocation9 + $0xb4] sm:$0xf]
        %v3468 = vld [vmem:[#allocation9 + $0xb8] sm:$0xf]
        %v3469 = vld [vmem:[#allocation9 + $0xbc] sm:$0xf]
        %v3470 = vld [vmem:[#allocation9 + $0xc0] sm:$0xf]
        %v3471 = vld [vmem:[#allocation9 + $0xc4] sm:$0xf]
        %v3472 = vld [vmem:[#allocation9 + $0xc8] sm:$0xf]
        %v3473 = vld [vmem:[#allocation9 + $0xcc] sm:$0xf]
        %v3474 = vld [vmem:[#allocation9 + $0xd0] sm:$0xf]
        %v3475 = vld [vmem:[#allocation9 + $0xd4] sm:$0xf]
        %v3476 = vld [vmem:[#allocation9 + $0xd8] sm:$0xf]
        %v3477 = vld [vmem:[#allocation9 + $0xdc] sm:$0xf]
        %v3478 = vld [vmem:[#allocation9 + $0xe0] sm:$0xf]
        %v3479 = vld [vmem:[#allocation9 + $0xe4] sm:$0xf]
        %v3480 = vld [vmem:[#allocation9 + $0xe8] sm:$0xf]
        %v3481 = vld [vmem:[#allocation9 + $0xec] sm:$0xf]
        %v3482 = vld [vmem:[#allocation9 + $0xf0] sm:$0xf]
        %v3483 = vld [vmem:[#allocation9 + $0xf4] sm:$0xf]
        %v3484 = vld [vmem:[#allocation9 + $0xf8] sm:$0xf]
        %v3485 = vld [vmem:[#allocation9 + $0xfc] sm:$0xf]
        %v3486 = vld [vmem:[%s15] sm:$0x1]
        %v3488 = vperm.slane %v3486, 0
        %v3554 = vunpack.c.l.b16 %v3422
        %v3555 = vunpack.c.l.b16 %v3423
        %v3556 = vunpack.c.l.b16 %v3424
        %v3557 = vunpack.c.l.b16 %v3425
        %v3558 = vunpack.c.l.b16 %v3426
        %v3559 = vunpack.c.l.b16 %v3427
        %v3560 = vunpack.c.l.b16 %v3428
        %v3561 = vunpack.c.l.b16 %v3429
        %v3562 = vunpack.c.l.b16 %v3430
        %v3563 = vunpack.c.l.b16 %v3431
        %v3564 = vunpack.c.l.b16 %v3432
        %v3565 = vunpack.c.l.b16 %v3433
        %v3566 = vunpack.c.l.b16 %v3434
        %v3567 = vunpack.c.l.b16 %v3435
        %v3568 = vunpack.c.l.b16 %v3436
        %v3569 = vunpack.c.l.b16 %v3437
        %v3570 = vunpack.c.l.b16 %v3438
        %v3571 = vunpack.c.l.b16 %v3439
        %v3572 = vunpack.c.l.b16 %v3440
        %v3573 = vunpack.c.l.b16 %v3441
        %v3574 = vunpack.c.l.b16 %v3442
        %v3575 = vunpack.c.l.b16 %v3443
        %v3576 = vunpack.c.l.b16 %v3444
        %v3577 = vunpack.c.l.b16 %v3445
        %v3578 = vunpack.c.l.b16 %v3446
        %v3579 = vunpack.c.l.b16 %v3447
        %v3580 = vunpack.c.l.b16 %v3448
        %v3581 = vunpack.c.l.b16 %v3449
        %v3582 = vunpack.c.l.b16 %v3450
        %v3583 = vunpack.c.l.b16 %v3451
        %v3584 = vunpack.c.l.b16 %v3452
        %v3585 = vunpack.c.l.b16 %v3453
        %v3586 = vunpack.c.l.b16 %v3454
        %v3587 = vunpack.c.l.b16 %v3455
        %v3588 = vunpack.c.l.b16 %v3456
        %v3589 = vunpack.c.l.b16 %v3457
        %v3590 = vunpack.c.l.b16 %v3458
        %v3591 = vunpack.c.l.b16 %v3459
        %v3592 = vunpack.c.l.b16 %v3460
        %v3593 = vunpack.c.l.b16 %v3461
        %v3594 = vunpack.c.l.b16 %v3462
        %v3595 = vunpack.c.l.b16 %v3463
        %v3596 = vunpack.c.l.b16 %v3464
        %v3597 = vunpack.c.l.b16 %v3465
        %v3598 = vunpack.c.l.b16 %v3466
        %v3599 = vunpack.c.l.b16 %v3467
        %v3600 = vunpack.c.l.b16 %v3468
        %v3601 = vunpack.c.l.b16 %v3469
        %v3602 = vunpack.c.l.b16 %v3470
        %v3603 = vunpack.c.l.b16 %v3471
        %v3604 = vunpack.c.l.b16 %v3472
        %v3605 = vunpack.c.l.b16 %v3473
        %v3606 = vunpack.c.l.b16 %v3474
        %v3607 = vunpack.c.l.b16 %v3475
        %v3608 = vunpack.c.l.b16 %v3476
        %v3609 = vunpack.c.l.b16 %v3477
        %v3610 = vunpack.c.l.b16 %v3478
        %v3611 = vunpack.c.l.b16 %v3479
        %v3612 = vunpack.c.l.b16 %v3480
        %v3613 = vunpack.c.l.b16 %v3481
        %v3614 = vunpack.c.l.b16 %v3482
        %v3615 = vunpack.c.l.b16 %v3483
        %v3616 = vunpack.c.l.b16 %v3484
        %v3617 = vunpack.c.l.b16 %v3485
        %v3618 = vpack.c.b16 %v3555, %v3554
        %v3619 = vpack.c.b16 %v3557, %v3556
        %v3620 = vpack.c.b16 %v3559, %v3558
        %v3621 = vpack.c.b16 %v3561, %v3560
        %v3622 = vpack.c.b16 %v3563, %v3562
        %v3623 = vpack.c.b16 %v3565, %v3564
        %v3624 = vpack.c.b16 %v3567, %v3566
        %v3625 = vpack.c.b16 %v3569, %v3568
        %v3626 = vpack.c.b16 %v3571, %v3570
        %v3627 = vpack.c.b16 %v3573, %v3572
        %v3628 = vpack.c.b16 %v3575, %v3574
        %v3629 = vpack.c.b16 %v3577, %v3576
        %v3630 = vpack.c.b16 %v3579, %v3578
        %v3631 = vpack.c.b16 %v3581, %v3580
        %v3632 = vpack.c.b16 %v3583, %v3582
        %v3633 = vpack.c.b16 %v3585, %v3584
        %v3634 = vpack.c.b16 %v3587, %v3586
        %v3635 = vpack.c.b16 %v3589, %v3588
        %v3636 = vpack.c.b16 %v3591, %v3590
        %v3637 = vpack.c.b16 %v3593, %v3592
        %v3638 = vpack.c.b16 %v3595, %v3594
        %v3639 = vpack.c.b16 %v3597, %v3596
        %v3640 = vpack.c.b16 %v3599, %v3598
        %v3641 = vpack.c.b16 %v3601, %v3600
        %v3642 = vpack.c.b16 %v3603, %v3602
        %v3643 = vpack.c.b16 %v3605, %v3604
        %v3644 = vpack.c.b16 %v3607, %v3606
        %v3645 = vpack.c.b16 %v3609, %v3608
        %v3646 = vpack.c.b16 %v3611, %v3610
        %v3647 = vpack.c.b16 %v3613, %v3612
        %v3648 = vpack.c.b16 %v3615, %v3614
        %v3649 = vpack.c.b16 %v3617, %v3616
        %3682 = vmatpush.bf16.msra.mxu0 %v3625
        %3683 = vmatpush.bf16.msra.mxu0 %v3624
        %3684 = vmatpush.bf16.msra.mxu0 %v3623
        %3685 = vmatpush.bf16.msra.mxu0 %v3622
        %3686 = vmatpush.bf16.msra.mxu0 %v3621
        %3687 = vmatpush.bf16.msra.mxu0 %v3620
        %3688 = vmatpush.bf16.msra.mxu0 %v3619
        %3689 = vmatpush.bf16.msra.mxu0 %v3618
        %3690 = vmatmul.bf16.gmra.mxu0 %v3406
        %v3691 = vpop.f32.mrf.mxu0
        %v3692 = vadd.f32 %v3488, %v3691
        %v3693 = vpop.f32.mrf.mxu0
        %v3694 = vadd.f32 %v3488, %v3693
        %3695 = vmatmul.bf16.gmra.mxu0 %v3410
        %v3696 = vpop.f32.mrf.mxu0
        %v3697 = vadd.f32 %v3488, %v3696
        %v3698 = vpop.f32.mrf.mxu0
        %v3699 = vadd.f32 %v3488, %v3698
        %3700 = vmatmul.bf16.gmra.mxu0 %v3414
        %v3701 = vpop.f32.mrf.mxu0
        %v3702 = vadd.f32 %v3488, %v3701
        %v3703 = vpop.f32.mrf.mxu0
        %v3704 = vadd.f32 %v3488, %v3703
        %3705 = vmatmul.bf16.gmra.mxu0 %v3418
        %v3706 = vpop.f32.mrf.mxu0
        %v3707 = vadd.f32 %v3488, %v3706
        %v3708 = vpop.f32.mrf.mxu0
        %v3709 = vadd.f32 %v3488, %v3708
        %3710 = vdwg.mxu0
        %3711 = vmatpush.bf16.msra.mxu0 %v3633
        %3712 = vmatpush.bf16.msra.mxu0 %v3632
        %3713 = vmatpush.bf16.msra.mxu0 %v3631
        %3714 = vmatpush.bf16.msra.mxu0 %v3630
        %3715 = vmatpush.bf16.msra.mxu0 %v3629
        %3716 = vmatpush.bf16.msra.mxu0 %v3628
        %3717 = vmatpush.bf16.msra.mxu0 %v3627
        %3718 = vmatpush.bf16.msra.mxu0 %v3626
        %3719 = vmatmul.bf16.gmra.mxu0 %v3407
        %v3720 = vpop.f32.mrf.mxu0
        %v3721 = vadd.f32 %v3692, %v3720
        %v3722 = vpop.f32.mrf.mxu0
        %v3723 = vadd.f32 %v3694, %v3722
        %3724 = vmatmul.bf16.gmra.mxu0 %v3411
        %v3725 = vpop.f32.mrf.mxu0
        %v3726 = vadd.f32 %v3697, %v3725
        %v3727 = vpop.f32.mrf.mxu0
        %v3728 = vadd.f32 %v3699, %v3727
        %3729 = vmatmul.bf16.gmra.mxu0 %v3415
        %v3730 = vpop.f32.mrf.mxu0
        %v3731 = vadd.f32 %v3702, %v3730
        %v3732 = vpop.f32.mrf.mxu0
        %v3733 = vadd.f32 %v3704, %v3732
        %3734 = vmatmul.bf16.gmra.mxu0 %v3419
        %v3735 = vpop.f32.mrf.mxu0
        %v3736 = vadd.f32 %v3707, %v3735
        %v3737 = vpop.f32.mrf.mxu0
        %v3738 = vadd.f32 %v3709, %v3737
        %3739 = vdwg.mxu0
        %3740 = vmatpush.bf16.msra.mxu0 %v3641
        %3741 = vmatpush.bf16.msra.mxu0 %v3640
        %3742 = vmatpush.bf16.msra.mxu0 %v3639
        %3743 = vmatpush.bf16.msra.mxu0 %v3638
        %3744 = vmatpush.bf16.msra.mxu0 %v3637
        %3745 = vmatpush.bf16.msra.mxu0 %v3636
        %3746 = vmatpush.bf16.msra.mxu0 %v3635
        %3747 = vmatpush.bf16.msra.mxu0 %v3634
        %3748 = vmatmul.bf16.gmra.mxu0 %v3408
        %v3749 = vpop.f32.mrf.mxu0
        %v3750 = vadd.f32 %v3721, %v3749
        %v3751 = vpop.f32.mrf.mxu0
        %v3752 = vadd.f32 %v3723, %v3751
        %3753 = vmatmul.bf16.gmra.mxu0 %v3412
        %v3754 = vpop.f32.mrf.mxu0
        %v3755 = vadd.f32 %v3726, %v3754
        %v3756 = vpop.f32.mrf.mxu0
        %v3757 = vadd.f32 %v3728, %v3756
        %3758 = vmatmul.bf16.gmra.mxu0 %v3416
        %v3759 = vpop.f32.mrf.mxu0
        %v3760 = vadd.f32 %v3731, %v3759
        %v3761 = vpop.f32.mrf.mxu0
        %v3762 = vadd.f32 %v3733, %v3761
        %3763 = vmatmul.bf16.gmra.mxu0 %v3420
        %v3764 = vpop.f32.mrf.mxu0
        %v3765 = vadd.f32 %v3736, %v3764
        %v3766 = vpop.f32.mrf.mxu0
        %v3767 = vadd.f32 %v3738, %v3766
        %3768 = vdwg.mxu0
        %3769 = vmatpush.bf16.msra.mxu0 %v3649
        %3770 = vmatpush.bf16.msra.mxu0 %v3648
        %3771 = vmatpush.bf16.msra.mxu0 %v3647
        %3772 = vmatpush.bf16.msra.mxu0 %v3646
        %3773 = vmatpush.bf16.msra.mxu0 %v3645
        %3774 = vmatpush.bf16.msra.mxu0 %v3644
        %3775 = vmatpush.bf16.msra.mxu0 %v3643
        %3776 = vmatpush.bf16.msra.mxu0 %v3642
        %3777 = vmatmul.bf16.gmra.mxu0 %v3409
        %v3778 = vpop.f32.mrf.mxu0
        %v3779 = vadd.f32 %v3750, %v3778
        %v3780 = vpop.f32.mrf.mxu0
        %v3781 = vadd.f32 %v3752, %v3780
        %3782 = vmatmul.bf16.gmra.mxu0 %v3413
        %v3783 = vpop.f32.mrf.mxu0
        %v3784 = vadd.f32 %v3755, %v3783
        %v3785 = vpop.f32.mrf.mxu0
        %v3786 = vadd.f32 %v3757, %v3785
        %3787 = vmatmul.bf16.gmra.mxu0 %v3417
        %v3788 = vpop.f32.mrf.mxu0
        %v3789 = vadd.f32 %v3760, %v3788
        %v3790 = vpop.f32.mrf.mxu0
        %v3791 = vadd.f32 %v3762, %v3790
        %3792 = vmatmul.bf16.gmra.mxu0 %v3421
        %v3793 = vpop.f32.mrf.mxu0
        %v3794 = vadd.f32 %v3765, %v3793
        %v3795 = vpop.f32.mrf.mxu0
        %v3796 = vadd.f32 %v3767, %v3795
        %3797 = vdwg.mxu0
        %v3799 = vperm.slane %v645, 0
        %v3801 = vmul.f32 %v3779, %v3799
        %v3802 = vmul.f32 %v3781, %v3799
        %v3803 = vmul.f32 %v3784, %v3799
        %v3804 = vmul.f32 %v3786, %v3799
        %v3805 = vmul.f32 %v3789, %v3799
        %v3806 = vmul.f32 %v3791, %v3799
        %v3807 = vmul.f32 %v3794, %v3799
        %v3808 = vmul.f32 %v3796, %v3799
        %v3809 = vadd.f32 %v2252, %v3801
        %v3810 = vadd.f32 %v2253, %v3802
        %v3811 = vadd.f32 %v2254, %v3803
        %v3812 = vadd.f32 %v2255, %v3804
        %v3813 = vadd.f32 %v2256, %v3805
        %v3814 = vadd.f32 %v2257, %v3806
        %v3815 = vadd.f32 %v2258, %v3807
        %v3816 = vadd.f32 %v2259, %v3808
        %3817 = vst [vmem:[%s624] sm:$0xff] %v3809
        %3818 = vst [vmem:[%s624 + $0x8] sm:$0xff] %v3810
        %3819 = vst [vmem:[%s624 + $0x10] sm:$0xff] %v3811
        %3820 = vst [vmem:[%s624 + $0x18] sm:$0xff] %v3812
        %3821 = vst [vmem:[%s624 + $0x20] sm:$0xff] %v3813
        %3822 = vst [vmem:[%s624 + $0x28] sm:$0xff] %v3814
        %3823 = vst [vmem:[%s624 + $0x30] sm:$0xff] %v3815
        %3824 = vst [vmem:[%s624 + $0x38] sm:$0xff] %v3816
        %s3825 = sand.u32 %s399, 1
        %s3826 = scalar_lea.sflag [#allocation5], %s3825
        %s3827 = sand.u32 %s399, 1
        %s3828 = smul.addr %s3827, 64
        %s3829 = scalar_lea.vmem [#allocation11], %s3828
        // Predicated region
        $region101: #{token_refiner_block.1} parent=83 // pred_check
          %p3830 = pneg %p409
        $region102: #{token_refiner_block.1} parent=83 // pred_check_branch
          %3832 = sbr.rel (%p3830) target = $region104
        $region103: #{token_refiner_block.1} parent=83 // pred_region
          %3834 = vsyncadd %s3826, 0
          %s3835 = smul.addr %s35, 8
          %s3836 = smul.addr %s3835, 8
          %s3837 = scalar_lea.hbm %s16, %s3836
          %s3838 = sshll.u32 %s3829, 4
          %s3839 = int_to_ptr.vmem [resolvable:$true] %s3838
          %s3840 = sshll.u32 %s3837, 4
          %s3841 = int_to_ptr.hbm [resolvable:$true] %s3840
          %3846 = dma.vmem_to_hbm [thread:$0]  %s3839, 1024, %s3841, %s3826, 128, 128, 8
        $region104: #{token_refiner_block.1} parent=83 // pred_fallthru
          _
      $region84: #{token_refiner_block.1} parent=5 // pred_fallthru
        _
      %p3847 = scmp.le.s32.totalorder 2, %s30
      // Predicated region
      $region105: #{token_refiner_block.1} parent=5 // pred_check
        %p3848 = pneg %p3847
      $region106: #{token_refiner_block.1} parent=5 // pred_check_branch
        %3850 = sbr.rel (%p3848) target = $region108
      $region107: #{token_refiner_block.1} parent=5 // pred_region
        %s3851 = ssub.s32 %s30, 2
        // Predicated region
        $region109: #{token_refiner_block.1} parent=107 // pred_check
          %p3852 = pneg %p415
        $region110: #{token_refiner_block.1} parent=107 // pred_check_branch
          %3854 = sbr.rel (%p3852) target = $region112
        $region111: #{token_refiner_block.1} parent=107 // pred_region
          %s3855 = sand.u32 %s400, 1
          %s3856 = scalar_lea.sflag [#allocation5], %s3855
          %s3857 = sand.u32 %s400, 1
          %s3858 = smul.addr %s3857, 64
          %s3859 = scalar_lea.vmem [#allocation11], %s3858
          %3861 = dma.done %s3856, 1024
        $region112: #{token_refiner_block.1} parent=107 // pred_fallthru
          _
      $region108: #{token_refiner_block.1} parent=5 // pred_fallthru
        _
    $region6: #{token_refiner_block.1} parent=1 // loop_footer
      %s34 = sadd.s32 1, %s30
    $region7: #{token_refiner_block.1} parent=1 // loop_footer_branch
      %29 = sbr.rel target = $region3
    $region8: #{token_refiner_block.1} parent=1 // loop_exit
      _
    %3862 = vsyncpa [#allocation4], 1
    %s3863 = scalar_lea.sflag [#allocation4], 1
    %3864 = vsyncpa %s3863, 1
    %3865 = vsyncpa [#allocation7], 1
    %3866 = vsyncpa [#allocation10], 1
    %3867 = vsyncpa [#allocation5], 1
    %s3868 = scalar_lea.sflag [#allocation5], 1
    %3869 = vsyncpa %s3868, 1

</llo_original>
